<compile_context>
chip_gen: v6e
topology: v6e:2x2x1
jax: 0.10.0
libtpu: 0.0.40
codegen_flags: <defaults>
</compile_context>

<pallas_src>
import functools

import jax
import jax.numpy as jnp
from jax import lax
from jax.experimental import pallas as pl
from jax.experimental.pallas import tpu as pltpu

LANES = 128
NEG_INF_BIAS = -1e30
C1_KEEP = 32    # conv1 has 20 real channels; keep 32 (8-aligned) feeding conv2's K
C2_KEEP = 64    # conv2 has 50 real channels; keep 64 (8-aligned) feeding fc1's K


def _pick_tile(m, cap, need8):
    """Largest divisor of m that is <= min(cap, m//2) (=> >=2 grid steps for the
    v7x second TensorCore), preferring multiples of 8 when the tile is a
    second-minor dim; falls back to the full (always-legal) extent."""
    if m <= (16 if need8 else 2):
        return m
    limit = max(1, min(cap, m // 2))
    for t in range(limit, 0, -1):
        if m % t == 0 and (not need8 or t % 8 == 0):
            return t
    return m


# ---------------------------------------------------------------------------
# Pallas kernels
# ---------------------------------------------------------------------------

def _matmul_bias_act_kernel(x_ref, w_ref, b_ref, o_ref, *, act):
    """o = act(x @ w + b) for one M-tile. bf16 MXU inputs, f32 accumulate."""
    z = jnp.dot(x_ref[...], w_ref[...], preferred_element_type=jnp.float32)
    z = z + b_ref[...]                               # (1, N) f32, broadcasts
    if act == "relu":
        z = jnp.maximum(z, 0.0)
    elif act == "relu6":
        z = jnp.clip(z, 0.0, 6.0)
    o_ref[...] = z.astype(o_ref.dtype)


def matmul_bias_act(x, w, b, act, out_dtype=jnp.bfloat16):
    """x: (M, K) bf16, w: (K, N) bf16 with N % 128 == 0, b: (N,) f32 -> (M, N)."""
    m, k = x.shape
    kw_, n = w.shape
    assert k == kw_ and n % LANES == 0
    tm = _pick_tile(m, cap=512, need8=True)
    return pl.pallas_call(
        functools.partial(_matmul_bias_act_kernel, act=act),
        out_shape=jax.ShapeDtypeStruct((m, n), out_dtype),
        grid=(m // tm,),
        in_specs=[
            pl.BlockSpec((tm, k), lambda i: (i, 0)),     # M-tiled activations
            pl.BlockSpec((k, n), lambda i: (0, 0)),      # replicated weight
            pl.BlockSpec((1, n), lambda i: (0, 0)),      # replicated bias
        ],
        out_specs=pl.BlockSpec((tm, n), lambda i: (i, 0)),
        compiler_params=pltpu.CompilerParams(
            dimension_semantics=("parallel",),
            vmem_limit_bytes=32 * 1024 * 1024,
        ),
    )(x, w, b.reshape(1, n))


def _maxpool_kernel(x_ref, o_ref):
    """2x2 max pool on a block shaped (tm, 2[h-pair], Wo, 2*C[w-pair packed in lanes])."""
    v = x_ref[...]
    v = jnp.maximum(v[:, 0], v[:, 1])                # H direction: leading-axis max
    c = v.shape[-1] // 2
    v = jnp.maximum(v[..., :c], v[..., c:])          # W direction: 128-aligned lane halves
    o_ref[...] = v[..., : o_ref.shape[-1]].astype(o_ref.dtype)   # keep real channels


def maxpool2x2(x, c_keep, out_dtype=jnp.bfloat16):
    """x: (N, H, W, 128) bf16, H/W even -> (N*Ho, Wo, c_keep).

    The 2x2 window is gathered by the block DMA itself: a free row-major reshape
    puts the h-pair on a full block axis and the w-pair in the lane dimension,
    so no strided slices are materialized in HBM by XLA."""
    n, h, w, c = x.shape
    assert h % 2 == 0 and w % 2 == 0 and c == LANES and c_keep <= c
    ho, wo = h // 2, w // 2
    m = n * ho
    x4 = x.reshape(m, 2, wo, 2 * c)                  # free row-major regroup
    tm = _pick_tile(m, cap=128, need8=False)
    return pl.pallas_call(
        _maxpool_kernel,
        out_shape=jax.ShapeDtypeStruct((m, wo, c_keep), out_dtype),
        grid=(m // tm,),
        in_specs=[pl.BlockSpec((tm, 2, wo, 2 * c), lambda i: (i, 0, 0, 0))],
        out_specs=pl.BlockSpec((tm, wo, c_keep), lambda i: (i, 0, 0)),
        compiler_params=pltpu.CompilerParams(dimension_semantics=("parallel",)),
    )(x4)


def _head_kernel(x_ref, w1_ref, b1_ref, w2_ref, b2_ref, o_ref):
    """Fused fc1 + ReLU6 + fc2 + log_softmax (no HBM round trip for the hidden)."""
    h = jnp.dot(x_ref[...], w1_ref[...], preferred_element_type=jnp.float32)
    h = jnp.clip(h + b1_ref[...], 0.0, 6.0)
    z = jnp.dot(h.astype(jnp.bfloat16), w2_ref[...],
                preferred_element_type=jnp.float32)
    z = z + b2_ref[...]                              # padded classes carry -1e30 bias
    m = jnp.max(z, axis=-1, keepdims=True)
    e = z - m
    o_ref[...] = (e - jnp.log(jnp.sum(jnp.exp(e), axis=-1, keepdims=True))
                  ).astype(o_ref.dtype)


def fc_head(x, w1, b1, w2, b2):
    """x: (n, 1024) bf16 -> log-probs (n, 128) f32 (cols >= 10 are padding)."""
    n, k1 = x.shape
    hdim = w1.shape[1]
    ncls = w2.shape[1]
    assert w1.shape[0] == k1 and w2.shape[0] == hdim and ncls % LANES == 0
    tm = _pick_tile(n, cap=256, need8=True)
    return pl.pallas_call(
        _head_kernel,
        out_shape=jax.ShapeDtypeStruct((n, ncls), jnp.float32),
        grid=(n // tm,),
        in_specs=[
            pl.BlockSpec((tm, k1), lambda i: (i, 0)),
            pl.BlockSpec((k1, hdim), lambda i: (0, 0)),
            pl.BlockSpec((1, hdim), lambda i: (0, 0)),
            pl.BlockSpec((hdim, ncls), lambda i: (0, 0)),
            pl.BlockSpec((1, ncls), lambda i: (0, 0)),
        ],
        out_specs=pl.BlockSpec((tm, ncls), lambda i: (i, 0)),
        compiler_params=pltpu.CompilerParams(
            dimension_semantics=("parallel",),
            vmem_limit_bytes=32 * 1024 * 1024,
        ),
    )(x, w1, b1.reshape(1, hdim), w2, b2.reshape(1, ncls))


# ---------------------------------------------------------------------------
# Glue: patch extraction (single XLA op) feeding the Pallas matmul kernels
# ---------------------------------------------------------------------------

def _patches_nhwc(x, k):
    """(N,H,W,C) -> (N*Ho*Wo, C*k*k); feature order (c, kh, kw) = PyTorch weight order."""
    n, h, w, c = x.shape
    ho, wo = h - k + 1, w - k + 1
    p = lax.conv_general_dilated_patches(
        x, (k, k), (1, 1), "VALID",
        dimension_numbers=("NHWC", "HWIO", "NHWC"))
    return p.reshape(n * ho * wo, c * k * k), (ho, wo)


# ---------------------------------------------------------------------------
# Full forward pass
# ---------------------------------------------------------------------------

def torch_model_forward(x_nchw, params):
    n, cin, hh, ww = x_nchw.shape
    # Cin == 1, so NCHW and NHWC are bit-identical: reshape instead of transpose.
    x = x_nchw.reshape(n, hh, ww, cin).astype(jnp.bfloat16)

    # conv1 (K=25, Cout padded 20->128) + ReLU
    p1, (h1, w1) = _patches_nhwc(x, 5)                          # (n*576, 25) bf16
    y = matmul_bias_act(p1, params["conv1_w"], params["conv1_b"], "relu")
    # 2x2 max pool; keep only 32 channels (20 real + 12 zero) for conv2's K
    y = maxpool2x2(y.reshape(n, h1, w1, LANES), C1_KEEP)        # (n*12, 12, 32)

    # conv2 (K=32*25=800, Cout padded 50->128) + ReLU6
    p2, (h2, w2) = _patches_nhwc(y.reshape(n, h1 // 2, w1 // 2, C1_KEEP), 5)
    y = matmul_bias_act(p2, params["conv2_w"], params["conv2_b"], "relu6")
    y = maxpool2x2(y.reshape(n, h2, w2, LANES), C2_KEEP)        # (n*4, 4, 64)

    # flatten (fc1 weight rows pre-permuted to this (h, w, c) order, folding in
    # PyTorch's channel-major x.view(-1, 800)); fused fc1+fc2+log_softmax head.
    f = y.reshape(n, -1)                                        # (n, 1024) bf16
    logits = fc_head(f, params["fc1_w"], params["fc1_b"],
                     params["fc2_w"], params["fc2_b"])          # (n, 128) f32
    return logits[:, :10]                                       # drop padded classes


# ---------------------------------------------------------------------------
# Parameters: raw PyTorch-layout params + one-time padded/permuted/bf16 prep
# ---------------------------------------------------------------------------

def init_raw_params(key):
    """PyTorch layouts: conv (Cout, Cin, kh, kw); fc stored as (in, out)."""
    ks = jax.random.split(key, 8)
    s = 0.05
    return {
        "conv1_w": s * jax.random.normal(ks[0], (20, 1, 5, 5), jnp.float32),
        "conv1_b": s * jax.random.normal(ks[1], (20,), jnp.float32),
        "conv2_w": s * jax.random.normal(ks[2], (50, 20, 5, 5), jnp.float32),
        "conv2_b": s * jax.random.normal(ks[3], (50,), jnp.float32),
        "fc1_w": s * jax.random.normal(ks[4], (800, 500), jnp.float32),
        "fc1_b": s * jax.random.normal(ks[5], (500,), jnp.float32),
        "fc2_w": s * jax.random.normal(ks[6], (500, 10), jnp.float32),
        "fc2_b": s * jax.random.normal(ks[7], (10,), jnp.float32),
    }


def prepare_params(raw):
    """One-time prep: 128-lane-dense matmul outputs, de-padded contraction dims,
    PyTorch channel-major flatten folded into fc1's rows, bf16 weights."""
    f32, bf16 = jnp.float32, jnp.bfloat16
    # conv1: (20,1,5,5) -> (K=25, N=128); patch feature order (kh, kw)
    w1 = raw["conv1_w"].reshape(20, 25).T                               # (25, 20)
    w1p = jnp.zeros((25, LANES), f32).at[:, :20].set(w1).astype(bf16)
    b1p = jnp.zeros((LANES,), f32).at[:20].set(raw["conv1_b"])
    # conv2: (50,20,5,5) -> (K=32*25=800, N=128); patch feature order (cin, kh, kw)
    w2 = jnp.transpose(raw["conv2_w"], (1, 2, 3, 0))                    # (20,5,5,50)
    w2p = (jnp.zeros((C1_KEEP, 5, 5, LANES), f32).at[:20, :, :, :50].set(w2)
           .reshape(C1_KEEP * 25, LANES).astype(bf16))
    b2p = jnp.zeros((LANES,), f32).at[:50].set(raw["conv2_b"])
    # fc1: (800,500) indexed (c*16+h*4+w) -> (K=4*4*64=1024, N=512) indexed ((h*4+w)*64+c)
    wf1 = jnp.transpose(raw["fc1_w"].reshape(50, 4, 4, 500), (1, 2, 0, 3))   # (4,4,50,500)
    wf1p = (jnp.zeros((4, 4, C2_KEEP, 512), f32).at[:, :, :50, :500].set(wf1)
            .reshape(4 * 4 * C2_KEEP, 512).astype(bf16))
    bf1p = jnp.zeros((512,), f32).at[:500].set(raw["fc1_b"])
    # fc2: (500,10) -> (K=512, N=128); padded class columns get -1e30 bias so the
    # fused log_softmax normalizer only sees the 10 real classes.
    wf2p = jnp.zeros((512, LANES), f32).at[:500, :10].set(raw["fc2_w"]).astype(bf16)
    bf2p = jnp.full((LANES,), NEG_INF_BIAS, f32).at[:10].set(raw["fc2_b"])
    return {
        "conv1_w": w1p, "conv1_b": b1p,
        "conv2_w": w2p, "conv2_b": b2p,
        "fc1_w": wf1p, "fc1_b": bf1p,
        "fc2_w": wf2p, "fc2_b": bf2p,
    }


def reference_forward(x_nchw, raw):
    """Pure-JAX/XLA replica of the PyTorch module (f32), for numerical validation."""
    dn = ("NCHW", "OIHW", "NCHW")
    y = lax.conv_general_dilated(x_nchw, raw["conv1_w"], (1, 1), "VALID",
                                 dimension_numbers=dn)
    y = jnp.maximum(y + raw["conv1_b"][None, :, None, None], 0.0)
    y = lax.reduce_window(y, -jnp.inf, lax.max, (1, 1, 2, 2), (1, 1, 2, 2), "VALID")
    y = lax.conv_general_dilated(y, raw["conv2_w"], (1, 1), "VALID",
                                 dimension_numbers=dn)
    y = jnp.clip(y + raw["conv2_b"][None, :, None, None], 0.0, 6.0)
    y = lax.reduce_window(y, -jnp.inf, lax.max, (1, 1, 2, 2), (1, 1, 2, 2), "VALID")
    y = y.reshape(y.shape[0], -1)                       # (N, 800) channel-major flatten
    y = jnp.clip(y @ raw["fc1_w"] + raw["fc1_b"], 0.0, 6.0)
    y = y @ raw["fc2_w"] + raw["fc2_b"]
    return jax.nn.log_softmax(y, axis=1)


if __name__ == "__main__":
    key = jax.random.PRNGKey(0)
    k_in, k_par = jax.random.split(key)

    # fc1 expects 4*4*50 features, which pins the input spatial size to 28x28.
    x = jax.random.normal(k_in, (2, 1, 28, 28), jnp.float32)   # NCHW, like PyTorch
    raw = init_raw_params(k_par)
    params = prepare_params(raw)

    fwd = jax.jit(torch_model_forward)
    out = jax.block_until_ready(fwd(x, params))

    assert out.shape == (2, 10)
    # log_softmax rows should sum (in prob space) to ~1
    assert jnp.allclose(jnp.sum(jnp.exp(out), axis=1), 1.0, atol=1e-4)
    # match the pure-XLA f32 reference (bf16 activations/weights -> loose tolerance)
    ref = reference_forward(x, raw)
    assert jnp.max(jnp.abs(out - ref)) < 5e-2, float(jnp.max(jnp.abs(out - ref)))

    print("KERNEL_OK")
</pallas_src>

<mosaic_0001>
module attributes {stable_mosaic.version = 11 : i64} {
  func.func @_matmul_bias_act_kernel(%arg0: i32, %arg1: memref<384x25xbf16, #tpu.memory_space<vmem>>, %arg2: memref<25x128xbf16, #tpu.memory_space<vmem>>, %arg3: memref<1x128xf32, #tpu.memory_space<vmem>>, %arg4: memref<384x128xbf16, #tpu.memory_space<vmem>>) attributes {dimension_semantics = [#tpu.dimension_semantics<parallel>], iteration_bounds = array<i64: 3>, scalar_prefetch = 0 : i64, scratch_operands = 0 : i64, tpu.core_type = #tpu.core_type<tc>, window_params = [{transform_indices = @transform_0, window_bounds = array<i64: 384, 25>}, {pipeline_mode = #tpu.pipeline_mode<synchronous>, transform_indices = @transform_1, window_bounds = array<i64: 25, 128>}, {pipeline_mode = #tpu.pipeline_mode<synchronous>, transform_indices = @transform_2, window_bounds = array<i64: 1, 128>}, {transform_indices = @transform_3, window_bounds = array<i64: 384, 128>}]} {
    %c0 = arith.constant 0 : index
    %c0_0 = arith.constant 0 : index
    %0 = vector.load %arg1[%c0, %c0_0] : memref<384x25xbf16, #tpu.memory_space<vmem>>, vector<384x25xbf16>
    %c0_1 = arith.constant 0 : index
    %c0_2 = arith.constant 0 : index
    %1 = vector.load %arg2[%c0_1, %c0_2] : memref<25x128xbf16, #tpu.memory_space<vmem>>, vector<25x128xbf16>
    %cst = arith.constant dense<0.000000e+00> : vector<384x128xf32>
    %2 = tpu.matmul %0, %1, %cst {dimension_numbers = #tpu.dot_dimension_numbers<[1], [0], [0], [1], [0, 0, 1, 1], [], []>} : vector<384x25xbf16>, vector<25x128xbf16>, vector<384x128xf32> -> vector<384x128xf32>
    %c0_3 = arith.constant 0 : index
    %c0_4 = arith.constant 0 : index
    %3 = vector.load %arg3[%c0_3, %c0_4] : memref<1x128xf32, #tpu.memory_space<vmem>>, vector<1x128xf32>
    %4 = vector.broadcast %3 : vector<1x128xf32> to vector<384x128xf32>
    %5 = arith.addf %2, %4 : vector<384x128xf32>
    %cst_5 = arith.constant 0.000000e+00 : f32
    %6 = vector.broadcast %cst_5 : f32 to vector<384x128xf32>
    %7 = arith.maximumf %5, %6 : vector<384x128xf32>
    %8 = arith.truncf %7 : vector<384x128xf32> to vector<384x128xbf16>
    %c0_6 = arith.constant 0 : index
    %c0_7 = arith.constant 0 : index
    %9 = vector.load %arg4[%c0_6, %c0_7] : memref<384x128xbf16, #tpu.memory_space<vmem>>, vector<384x128xbf16>
    tpu.vector_store %arg4[%c0_6, %c0_7], %8 {strides = array<i32>} : memref<384x128xbf16, #tpu.memory_space<vmem>>, vector<384x128xbf16>,
    return
  }
  func.func @transform_0(%arg0: i32) -> (i32, i32) {
    %c0_i32 = arith.constant 0 : i32
    %c0_i32_0 = arith.constant 0 : i32
    return %arg0, %c0_i32 : i32, i32
  }
  func.func @transform_1(%arg0: i32) -> (i32, i32) {
    %c0_i32 = arith.constant 0 : i32
    %c0_i32_0 = arith.constant 0 : i32
    %c0_i32_1 = arith.constant 0 : i32
    return %c0_i32, %c0_i32_0 : i32, i32
  }
  func.func @transform_2(%arg0: i32) -> (i32, i32) {
    %c0_i32 = arith.constant 0 : i32
    %c0_i32_0 = arith.constant 0 : i32
    %c0_i32_1 = arith.constant 0 : i32
    return %c0_i32, %c0_i32_0 : i32, i32
  }
  func.func @transform_3(%arg0: i32) -> (i32, i32) {
    %c0_i32 = arith.constant 0 : i32
    %c0_i32_0 = arith.constant 0 : i32
    return %arg0, %c0_i32 : i32, i32
  }
}

module attributes {stable_mosaic.version = 11 : i64} {
  func.func @_maxpool_kernel(%arg0: i32, %arg1: memref<12x2x12x256xbf16, #tpu.memory_space<vmem>>, %arg2: memref<12x12x32xbf16, #tpu.memory_space<vmem>>) attributes {dimension_semantics = [#tpu.dimension_semantics<parallel>], iteration_bounds = array<i64: 2>, scalar_prefetch = 0 : i64, scratch_operands = 0 : i64, tpu.core_type = #tpu.core_type<tc>, window_params = [{transform_indices = @transform_0, window_bounds = array<i64: 12, 2, 12, 256>}, {transform_indices = @transform_1, window_bounds = array<i64: 12, 12, 32>}]} {
    %c0 = arith.constant 0 : index
    %c0_0 = arith.constant 0 : index
    %c0_1 = arith.constant 0 : index
    %c0_2 = arith.constant 0 : index
    %0 = vector.load %arg1[%c0, %c0_0, %c0_1, %c0_2] : memref<12x2x12x256xbf16, #tpu.memory_space<vmem>>, vector<12x2x12x256xbf16>
    %1 = vector.extract_strided_slice %0 {offsets = [0, 0, 0, 0], sizes = [12, 1, 12, 256], strides = [1, 1, 1, 1]} : vector<12x2x12x256xbf16> to vector<12x1x12x256xbf16>
    %2 = vector.shape_cast %1 : vector<12x1x12x256xbf16> to vector<12x12x256xbf16>
    %3 = vector.extract_strided_slice %0 {offsets = [0, 1, 0, 0], sizes = [12, 1, 12, 256], strides = [1, 1, 1, 1]} : vector<12x2x12x256xbf16> to vector<12x1x12x256xbf16>
    %4 = vector.shape_cast %3 : vector<12x1x12x256xbf16> to vector<12x12x256xbf16>
    %5 = arith.maximumf %2, %4 : vector<12x12x256xbf16>
    %6 = vector.extract_strided_slice %5 {offsets = [0, 0, 0], sizes = [12, 12, 128], strides = [1, 1, 1]} : vector<12x12x256xbf16> to vector<12x12x128xbf16>
    %7 = vector.extract_strided_slice %5 {offsets = [0, 0, 128], sizes = [12, 12, 128], strides = [1, 1, 1]} : vector<12x12x256xbf16> to vector<12x12x128xbf16>
    %8 = arith.maximumf %6, %7 : vector<12x12x128xbf16>
    %9 = vector.extract_strided_slice %8 {offsets = [0, 0, 0], sizes = [12, 12, 32], strides = [1, 1, 1]} : vector<12x12x128xbf16> to vector<12x12x32xbf16>
    %c0_3 = arith.constant 0 : index
    %c0_4 = arith.constant 0 : index
    %c0_5 = arith.constant 0 : index
    %10 = vector.load %arg2[%c0_3, %c0_4, %c0_5] : memref<12x12x32xbf16, #tpu.memory_space<vmem>>, vector<12x12x32xbf16>
    tpu.vector_store %arg2[%c0_3, %c0_4, %c0_5], %9 {strides = array<i32>} : memref<12x12x32xbf16, #tpu.memory_space<vmem>>, vector<12x12x32xbf16>,
    return
  }
  func.func @transform_0(%arg0: i32) -> (i32, i32, i32, i32) {
    %c0_i32 = arith.constant 0 : i32
    %c0_i32_0 = arith.constant 0 : i32
    %c0_i32_1 = arith.constant 0 : i32
    %c0_i32_2 = arith.constant 0 : i32
    return %arg0, %c0_i32, %c0_i32_0, %c0_i32_1 : i32, i32, i32, i32
  }
  func.func @transform_1(%arg0: i32) -> (i32, i32, i32) {
    %c0_i32 = arith.constant 0 : i32
    %c0_i32_0 = arith.constant 0 : i32
    %c0_i32_1 = arith.constant 0 : i32
    return %arg0, %c0_i32, %c0_i32_0 : i32, i32, i32
  }
}

module attributes {stable_mosaic.version = 11 : i64} {
  func.func @_matmul_bias_act_kernel(%arg0: i32, %arg1: memref<64x800xbf16, #tpu.memory_space<vmem>>, %arg2: memref<800x128xbf16, #tpu.memory_space<vmem>>, %arg3: memref<1x128xf32, #tpu.memory_space<vmem>>, %arg4: memref<64x128xbf16, #tpu.memory_space<vmem>>) attributes {dimension_semantics = [#tpu.dimension_semantics<parallel>], iteration_bounds = array<i64: 2>, scalar_prefetch = 0 : i64, scratch_operands = 0 : i64, tpu.core_type = #tpu.core_type<tc>, window_params = [{transform_indices = @transform_0, window_bounds = array<i64: 64, 800>}, {pipeline_mode = #tpu.pipeline_mode<synchronous>, transform_indices = @transform_1, window_bounds = array<i64: 800, 128>}, {pipeline_mode = #tpu.pipeline_mode<synchronous>, transform_indices = @transform_2, window_bounds = array<i64: 1, 128>}, {transform_indices = @transform_3, window_bounds = array<i64: 64, 128>}]} {
    %c0 = arith.constant 0 : index
    %c0_0 = arith.constant 0 : index
    %0 = vector.load %arg1[%c0, %c0_0] : memref<64x800xbf16, #tpu.memory_space<vmem>>, vector<64x800xbf16>
    %c0_1 = arith.constant 0 : index
    %c0_2 = arith.constant 0 : index
    %1 = vector.load %arg2[%c0_1, %c0_2] : memref<800x128xbf16, #tpu.memory_space<vmem>>, vector<800x128xbf16>
    %cst = arith.constant dense<0.000000e+00> : vector<64x128xf32>
    %2 = tpu.matmul %0, %1, %cst {dimension_numbers = #tpu.dot_dimension_numbers<[1], [0], [0], [1], [0, 0, 1, 1], [], []>} : vector<64x800xbf16>, vector<800x128xbf16>, vector<64x128xf32> -> vector<64x128xf32>
    %c0_3 = arith.constant 0 : index
    %c0_4 = arith.constant 0 : index
    %3 = vector.load %arg3[%c0_3, %c0_4] : memref<1x128xf32, #tpu.memory_space<vmem>>, vector<1x128xf32>
    %4 = vector.broadcast %3 : vector<1x128xf32> to vector<64x128xf32>
    %5 = arith.addf %2, %4 : vector<64x128xf32>
    %cst_5 = arith.constant 0.000000e+00 : f32
    %cst_6 = arith.constant 6.000000e+00 : f32
    %6 = vector.broadcast %cst_5 : f32 to vector<64x128xf32>
    %7 = arith.maximumf %6, %5 : vector<64x128xf32>
    %8 = vector.broadcast %cst_6 : f32 to vector<64x128xf32>
    %9 = arith.minimumf %8, %7 : vector<64x128xf32>
    %10 = arith.truncf %9 : vector<64x128xf32> to vector<64x128xbf16>
    %c0_7 = arith.constant 0 : index
    %c0_8 = arith.constant 0 : index
    %11 = vector.load %arg4[%c0_7, %c0_8] : memref<64x128xbf16, #tpu.memory_space<vmem>>, vector<64x128xbf16>
    tpu.vector_store %arg4[%c0_7, %c0_8], %10 {strides = array<i32>} : memref<64x128xbf16, #tpu.memory_space<vmem>>, vector<64x128xbf16>,
    return
  }
  func.func @transform_0(%arg0: i32) -> (i32, i32) {
    %c0_i32 = arith.constant 0 : i32
    %c0_i32_0 = arith.constant 0 : i32
    return %arg0, %c0_i32 : i32, i32
  }
  func.func @transform_1(%arg0: i32) -> (i32, i32) {
    %c0_i32 = arith.constant 0 : i32
    %c0_i32_0 = arith.constant 0 : i32
    %c0_i32_1 = arith.constant 0 : i32
    return %c0_i32, %c0_i32_0 : i32, i32
  }
  func.func @transform_2(%arg0: i32) -> (i32, i32) {
    %c0_i32 = arith.constant 0 : i32
    %c0_i32_0 = arith.constant 0 : i32
    %c0_i32_1 = arith.constant 0 : i32
    return %c0_i32, %c0_i32_0 : i32, i32
  }
  func.func @transform_3(%arg0: i32) -> (i32, i32) {
    %c0_i32 = arith.constant 0 : i32
    %c0_i32_0 = arith.constant 0 : i32
    return %arg0, %c0_i32 : i32, i32
  }
}

module attributes {stable_mosaic.version = 11 : i64} {
  func.func @_maxpool_kernel(%arg0: i32, %arg1: memref<4x2x4x256xbf16, #tpu.memory_space<vmem>>, %arg2: memref<4x4x64xbf16, #tpu.memory_space<vmem>>) attributes {dimension_semantics = [#tpu.dimension_semantics<parallel>], iteration_bounds = array<i64: 2>, scalar_prefetch = 0 : i64, scratch_operands = 0 : i64, tpu.core_type = #tpu.core_type<tc>, window_params = [{transform_indices = @transform_0, window_bounds = array<i64: 4, 2, 4, 256>}, {transform_indices = @transform_1, window_bounds = array<i64: 4, 4, 64>}]} {
    %c0 = arith.constant 0 : index
    %c0_0 = arith.constant 0 : index
    %c0_1 = arith.constant 0 : index
    %c0_2 = arith.constant 0 : index
    %0 = vector.load %arg1[%c0, %c0_0, %c0_1, %c0_2] : memref<4x2x4x256xbf16, #tpu.memory_space<vmem>>, vector<4x2x4x256xbf16>
    %1 = vector.extract_strided_slice %0 {offsets = [0, 0, 0, 0], sizes = [4, 1, 4, 256], strides = [1, 1, 1, 1]} : vector<4x2x4x256xbf16> to vector<4x1x4x256xbf16>
    %2 = vector.shape_cast %1 : vector<4x1x4x256xbf16> to vector<4x4x256xbf16>
    %3 = vector.extract_strided_slice %0 {offsets = [0, 1, 0, 0], sizes = [4, 1, 4, 256], strides = [1, 1, 1, 1]} : vector<4x2x4x256xbf16> to vector<4x1x4x256xbf16>
    %4 = vector.shape_cast %3 : vector<4x1x4x256xbf16> to vector<4x4x256xbf16>
    %5 = arith.maximumf %2, %4 : vector<4x4x256xbf16>
    %6 = vector.extract_strided_slice %5 {offsets = [0, 0, 0], sizes = [4, 4, 128], strides = [1, 1, 1]} : vector<4x4x256xbf16> to vector<4x4x128xbf16>
    %7 = vector.extract_strided_slice %5 {offsets = [0, 0, 128], sizes = [4, 4, 128], strides = [1, 1, 1]} : vector<4x4x256xbf16> to vector<4x4x128xbf16>
    %8 = arith.maximumf %6, %7 : vector<4x4x128xbf16>
    %9 = vector.extract_strided_slice %8 {offsets = [0, 0, 0], sizes = [4, 4, 64], strides = [1, 1, 1]} : vector<4x4x128xbf16> to vector<4x4x64xbf16>
    %c0_3 = arith.constant 0 : index
    %c0_4 = arith.constant 0 : index
    %c0_5 = arith.constant 0 : index
    %10 = vector.load %arg2[%c0_3, %c0_4, %c0_5] : memref<4x4x64xbf16, #tpu.memory_space<vmem>>, vector<4x4x64xbf16>
    tpu.vector_store %arg2[%c0_3, %c0_4, %c0_5], %9 {strides = array<i32>} : memref<4x4x64xbf16, #tpu.memory_space<vmem>>, vector<4x4x64xbf16>,
    return
  }
  func.func @transform_0(%arg0: i32) -> (i32, i32, i32, i32) {
    %c0_i32 = arith.constant 0 : i32
    %c0_i32_0 = arith.constant 0 : i32
    %c0_i32_1 = arith.constant 0 : i32
    %c0_i32_2 = arith.constant 0 : i32
    return %arg0, %c0_i32, %c0_i32_0, %c0_i32_1 : i32, i32, i32, i32
  }
  func.func @transform_1(%arg0: i32) -> (i32, i32, i32) {
    %c0_i32 = arith.constant 0 : i32
    %c0_i32_0 = arith.constant 0 : i32
    %c0_i32_1 = arith.constant 0 : i32
    return %arg0, %c0_i32, %c0_i32_0 : i32, i32, i32
  }
}

module attributes {stable_mosaic.version = 11 : i64} {
  func.func @_head_kernel(%arg0: i32, %arg1: memref<2x1024xbf16, #tpu.memory_space<vmem>>, %arg2: memref<1024x512xbf16, #tpu.memory_space<vmem>>, %arg3: memref<1x512xf32, #tpu.memory_space<vmem>>, %arg4: memref<512x128xbf16, #tpu.memory_space<vmem>>, %arg5: memref<1x128xf32, #tpu.memory_space<vmem>>, %arg6: memref<2x128xf32, #tpu.memory_space<vmem>>) attributes {dimension_semantics = [#tpu.dimension_semantics<parallel>], iteration_bounds = array<i64: 1>, scalar_prefetch = 0 : i64, scratch_operands = 0 : i64, tpu.core_type = #tpu.core_type<tc>, window_params = [{transform_indices = @transform_0, window_bounds = array<i64: 2, 1024>}, {pipeline_mode = #tpu.pipeline_mode<synchronous>, transform_indices = @transform_1, window_bounds = array<i64: 1024, 512>}, {pipeline_mode = #tpu.pipeline_mode<synchronous>, transform_indices = @transform_2, window_bounds = array<i64: 1, 512>}, {pipeline_mode = #tpu.pipeline_mode<synchronous>, transform_indices = @transform_3, window_bounds = array<i64: 512, 128>}, {pipeline_mode = #tpu.pipeline_mode<synchronous>, transform_indices = @transform_4, window_bounds = array<i64: 1, 128>}, {transform_indices = @transform_5, window_bounds = array<i64: 2, 128>}]} {
    %c0 = arith.constant 0 : index
    %c0_0 = arith.constant 0 : index
    %0 = vector.load %arg1[%c0, %c0_0] : memref<2x1024xbf16, #tpu.memory_space<vmem>>, vector<2x1024xbf16>
    %c0_1 = arith.constant 0 : index
    %c0_2 = arith.constant 0 : index
    %1 = vector.load %arg2[%c0_1, %c0_2] : memref<1024x512xbf16, #tpu.memory_space<vmem>>, vector<1024x512xbf16>
    %cst = arith.constant dense<0.000000e+00> : vector<2x512xf32>
    %2 = tpu.matmul %0, %1, %cst {dimension_numbers = #tpu.dot_dimension_numbers<[1], [0], [0], [1], [0, 0, 1, 1], [], []>} : vector<2x1024xbf16>, vector<1024x512xbf16>, vector<2x512xf32> -> vector<2x512xf32>
    %c0_3 = arith.constant 0 : index
    %c0_4 = arith.constant 0 : index
    %3 = vector.load %arg3[%c0_3, %c0_4] : memref<1x512xf32, #tpu.memory_space<vmem>>, vector<1x512xf32>
    %4 = vector.broadcast %3 : vector<1x512xf32> to vector<2x512xf32>
    %5 = arith.addf %2, %4 : vector<2x512xf32>
    %cst_5 = arith.constant 0.000000e+00 : f32
    %cst_6 = arith.constant 6.000000e+00 : f32
    %6 = vector.broadcast %cst_5 : f32 to vector<2x512xf32>
    %7 = arith.maximumf %6, %5 : vector<2x512xf32>
    %8 = vector.broadcast %cst_6 : f32 to vector<2x512xf32>
    %9 = arith.minimumf %8, %7 : vector<2x512xf32>
    %10 = arith.truncf %9 : vector<2x512xf32> to vector<2x512xbf16>
    %c0_7 = arith.constant 0 : index
    %c0_8 = arith.constant 0 : index
    %11 = vector.load %arg4[%c0_7, %c0_8] : memref<512x128xbf16, #tpu.memory_space<vmem>>, vector<512x128xbf16>
    %cst_9 = arith.constant dense<0.000000e+00> : vector<2x128xf32>
    %12 = tpu.matmul %10, %11, %cst_9 {dimension_numbers = #tpu.dot_dimension_numbers<[1], [0], [0], [1], [0, 0, 1, 1], [], []>} : vector<2x512xbf16>, vector<512x128xbf16>, vector<2x128xf32> -> vector<2x128xf32>
    %c0_10 = arith.constant 0 : index
    %c0_11 = arith.constant 0 : index
    %13 = vector.load %arg5[%c0_10, %c0_11] : memref<1x128xf32, #tpu.memory_space<vmem>>, vector<1x128xf32>
    %14 = vector.broadcast %13 : vector<1x128xf32> to vector<2x128xf32>
    %15 = arith.addf %12, %14 : vector<2x128xf32>
    %cst_12 = arith.constant dense<0xFF800000> : vector<2xf32>
    %16 = vector.multi_reduction <maximumf>, %15, %cst_12 [1] : vector<2x128xf32> to vector<2xf32>
    %17 = vector.shape_cast %16 : vector<2xf32> to vector<2x1xf32>
    %18 = vector.broadcast %17 : vector<2x1xf32> to vector<2x128xf32>
    %19 = arith.subf %15, %18 : vector<2x128xf32>
    %20 = math.exp %19 : vector<2x128xf32>
    %cst_13 = arith.constant dense<0.000000e+00> : vector<2xf32>
    %21 = vector.multi_reduction <add>, %20, %cst_13 [1] : vector<2x128xf32> to vector<2xf32>
    %22 = vector.shape_cast %21 : vector<2xf32> to vector<2x1xf32>
    %23 = math.log %22 : vector<2x1xf32>
    %24 = vector.broadcast %23 : vector<2x1xf32> to vector<2x128xf32>
    %25 = arith.subf %19, %24 : vector<2x128xf32>
    %c0_14 = arith.constant 0 : index
    %c0_15 = arith.constant 0 : index
    %26 = vector.load %arg6[%c0_14, %c0_15] : memref<2x128xf32, #tpu.memory_space<vmem>>, vector<2x128xf32>
    tpu.vector_store %arg6[%c0_14, %c0_15], %25 {strides = array<i32>} : memref<2x128xf32, #tpu.memory_space<vmem>>, vector<2x128xf32>,
    return
  }
  func.func @transform_0(%arg0: i32) -> (i32, i32) {
    %c0_i32 = arith.constant 0 : i32
    %c0_i32_0 = arith.constant 0 : i32
    return %arg0, %c0_i32 : i32, i32
  }
  func.func @transform_1(%arg0: i32) -> (i32, i32) {
    %c0_i32 = arith.constant 0 : i32
    %c0_i32_0 = arith.constant 0 : i32
    %c0_i32_1 = arith.constant 0 : i32
    return %c0_i32, %c0_i32_0 : i32, i32
  }
  func.func @transform_2(%arg0: i32) -> (i32, i32) {
    %c0_i32 = arith.constant 0 : i32
    %c0_i32_0 = arith.constant 0 : i32
    %c0_i32_1 = arith.constant 0 : i32
    return %c0_i32, %c0_i32_0 : i32, i32
  }
  func.func @transform_3(%arg0: i32) -> (i32, i32) {
    %c0_i32 = arith.constant 0 : i32
    %c0_i32_0 = arith.constant 0 : i32
    %c0_i32_1 = arith.constant 0 : i32
    return %c0_i32, %c0_i32_0 : i32, i32
  }
  func.func @transform_4(%arg0: i32) -> (i32, i32) {
    %c0_i32 = arith.constant 0 : i32
    %c0_i32_0 = arith.constant 0 : i32
    %c0_i32_1 = arith.constant 0 : i32
    return %c0_i32, %c0_i32_0 : i32, i32
  }
  func.func @transform_5(%arg0: i32) -> (i32, i32) {
    %c0_i32 = arith.constant 0 : i32
    %c0_i32_0 = arith.constant 0 : i32
    return %arg0, %c0_i32 : i32, i32
  }
}

</mosaic_0001>

<llo_original>
// kernel: torch_model_forward.6
$region0: #{torch_model_forward.6}
  #allocation0 [shape = 'u32[]', space=smem, size = 0x4, offset = 0x4, fixed_abs, tag = 'smem constant byte address 0x4 - core index']
  #allocation1 [shape = 'u32[144,128]{1,0:T(1,128)}', space=vmem, size = 0x12000, scoped, tag = 'internal scratch']
  %s0 = inlined_call_operand.vmem [shape: bf16[24,2,12,256], index: 0, kind: input, shape index: {}]
  %s1 = inlined_call_operand.vmem [shape: bf16[24,12,32], index: 1, kind: output, shape index: {}]
  %s2 = sld [smem:[#allocation0]]
  $region37: #{torch_model_forward.6} parent=0
    _
  %s4 = ssub.s32 1, %s2
  %s5 = scalar_select 0, %s4, %s2
  loop: start=0, step=1, limit=4
  $region2: #{torch_model_forward.6} parent=0 // loop_pre_header
    _
  $region3: #{torch_model_forward.6} parent=0 // loop_header
    %s7 = sphi 0, %s11
    %p8 = scmp.ge.s32.totalorder %s7, 4
    %s17 = sphi 0, %s19
    %s20 = sphi 0, %s17
    %s21 = sphi 0, %s20
    %s37 = sphi 0, %s21
    %s43 = sphi 0, %s45
    %s46 = sphi 0, %s43
    %s47 = sphi 0, %s46
    %s63 = sphi 0, %s47
  $region4: #{torch_model_forward.6} parent=0 // loop_header_branch
    %10 = sbr.rel (%p8) target = $region8
  $region5: #{torch_model_forward.6} parent=0 // loop_body
    %s12 = ssub.s32 %s7, 1
    %s13 = ssub.s32 %s7, 2
    %s14 = sadd.s32 %s7, 1
    %s15 = ssub.s32 %s7, %s14
    %p16 = scmp.eq.s32.totalorder %s15, 0
    %s18 = sadd.s32 %s17, 1
    %s19 = scalar_select %p16, %s17, %s18
    %p22 = pneg %p16
    %p23 = scmp.eq.s32.totalorder %s7, 1
    %p24 = por %p22, %p23
    %p25 = scmp.ne.s32.totalorder %s17, %s20
    %p26 = scmp.eq.s32.totalorder %s7, 0
    %p27 = por %p25, %p26
    %p28 = scmp.ne.s32.totalorder %s17, %s20
    %p29 = scmp.eq.s32.totalorder %s12, 1
    %p30 = por %p28, %p29
    %p31 = scmp.ne.s32.totalorder %s20, %s21
    %p32 = scmp.eq.s32.totalorder %s12, 0
    %p33 = por %p31, %p32
    %p34 = scmp.ne.s32.totalorder %s20, %s21
    %p35 = scmp.eq.s32.totalorder %s13, 1
    %p36 = por %p34, %p35
    %p38 = scmp.ne.s32.totalorder %s21, %s37
    %p39 = scmp.eq.s32.totalorder %s13, 0
    %p40 = por %p38, %p39
    %s41 = ssub.s32 %s7, %s14
    %p42 = scmp.eq.s32.totalorder %s41, 0
    %s44 = sadd.s32 %s43, 1
    %s45 = scalar_select %p42, %s43, %s44
    %p48 = pneg %p42
    %p49 = scmp.eq.s32.totalorder %s7, 1
    %p50 = por %p48, %p49
    %p51 = scmp.ne.s32.totalorder %s43, %s46
    %p52 = scmp.eq.s32.totalorder %s7, 0
    %p53 = por %p51, %p52
    %p54 = scmp.ne.s32.totalorder %s43, %s46
    %p55 = scmp.eq.s32.totalorder %s12, 1
    %p56 = por %p54, %p55
    %p57 = scmp.ne.s32.totalorder %s46, %s47
    %p58 = scmp.eq.s32.totalorder %s12, 0
    %p59 = por %p57, %p58
    %p60 = scmp.ne.s32.totalorder %s46, %s47
    %p61 = scmp.eq.s32.totalorder %s13, 1
    %p62 = por %p60, %p61
    %p64 = scmp.ne.s32.totalorder %s47, %s63
    %p65 = scmp.eq.s32.totalorder %s13, 0
    %p66 = por %p64, %p65
    %p67 = scmp.le.s32.totalorder 1, %s7
    %p68 = scmp.lt.s32.totalorder %s7, 3
    %p69 = pnand %p67, %p68
    %p70 = pneg %p69
    // Predicated region
    $region9: #{torch_model_forward.6} parent=5 // pred_check
      _
    $region10: #{torch_model_forward.6} parent=5 // pred_check_branch
      %72 = sbr.rel (%p69) target = $region12
    $region11: #{torch_model_forward.6} parent=5 // pred_region
      %s73 = ssub.s32 %s7, 1
    $region12: #{torch_model_forward.6} parent=5 // pred_fallthru
      _
    %p74 = scmp.lt.s32.totalorder %s7, 2
    // Predicated region
    $region13: #{torch_model_forward.6} parent=5 // pred_check
      %p75 = pneg %p74
    $region14: #{torch_model_forward.6} parent=5 // pred_check_branch
      %77 = sbr.rel (%p75) target = $region16
    $region15: #{torch_model_forward.6} parent=5 // pred_region
      // Predicated region
      $region17: #{torch_model_forward.6} parent=15 // pred_check
        %p78 = pneg %p27
      $region18: #{torch_model_forward.6} parent=15 // pred_check_branch
        %80 = sbr.rel (%p78) target = $region20
      $region19: #{torch_model_forward.6} parent=15 // pred_region
        %s81 = smul.u32 12, %s7
        %p82 = scmp.lt.s32.totalorder %s81, 23
        %s83 = scalar_select %p82, %s81, 23
        %s84 = smul.addr %s83, 8
        %s85 = smul.addr %s84, 4
        %s86 = scalar_lea.vmem %s0, %s85
        %s87 = smul.u32 12, %s7
      $region20: #{torch_model_forward.6} parent=15 // pred_fallthru
        _
    $region16: #{torch_model_forward.6} parent=5 // pred_fallthru
      _
    %p88 = scmp.le.s32.totalorder 1, %s7
    %p89 = scmp.lt.s32.totalorder %s7, 3
    %p90 = pnand %p88, %p89
    %p91 = pneg %p90
    // Predicated region
    $region21: #{torch_model_forward.6} parent=5 // pred_check
      _
    $region22: #{torch_model_forward.6} parent=5 // pred_check_branch
      %93 = sbr.rel (%p90) target = $region24
    $region23: #{torch_model_forward.6} parent=5 // pred_region
      %s94 = ssub.s32 %s7, 1
      %s95 = smul.u32 12, %s12
      %p96 = scmp.lt.s32.totalorder %s95, 23
      %s97 = scalar_select %p96, %s95, 23
      %s98 = smul.addr %s97, 8
      %s99 = smul.addr %s98, 4
      %s100 = scalar_lea.vmem %s0, %s99
      %p101 = pneg %p33
      %p102 = pneg %p30
      %p103 = pneg %p59
      %p104 = pneg %p56
      %s105 = smul.u32 12, %s12
      %p106 = scmp.lt.s32.totalorder %s105, 23
      %s107 = scalar_select %p106, %s105, 23
      %s108 = smul.addr %s107, 2
      %s109 = smul.addr %s108, 4
      %s110 = scalar_lea.vmem %s1, %s109
      %s111 = smul.u32 12, %s12
      %p112 = scmp.lt.s32.totalorder %s111, 23
      %s113 = scalar_select %p112, %s111, 23
      %s114 = smul.addr %s113, 8
      %s115 = smul.addr %s114, 4
      %s116 = scalar_lea.vmem %s0, %s115
      %s117 = smul.u32 12, %s12
      %s118 = smul.u32 12, %s12
      %p119 = scmp.lt.s32.totalorder %s118, 23
      %s120 = scalar_select %p119, %s118, 23
      %s121 = smul.addr %s120, 2
      %s122 = smul.addr %s121, 4
      %s123 = scalar_lea.vmem %s1, %s122
      %s124 = smul.u32 12, %s12
      %v125 = vld [vmem:[%s116] sm:$0xff]
      %v126 = vld [vmem:[%s116 + $0x8] sm:$0x33]
      %v127 = vld [vmem:[%s116 + $0x10] sm:$0xff]
      %v128 = vld [vmem:[%s116 + $0x18] sm:$0x33]
      %v129 = vld [vmem:[%s116 + $0x20] sm:$0xff]
      %v130 = vld [vmem:[%s116 + $0x28] sm:$0x33]
      %v131 = vld [vmem:[%s116 + $0x30] sm:$0xff]
      %v132 = vld [vmem:[%s116 + $0x38] sm:$0x33]
      %v133 = vld [vmem:[%s116 + $0x40] sm:$0xff]
      %v134 = vld [vmem:[%s116 + $0x48] sm:$0x33]
      %v135 = vld [vmem:[%s116 + $0x50] sm:$0xff]
      %v136 = vld [vmem:[%s116 + $0x58] sm:$0x33]
      %v137 = vld [vmem:[%s116 + $0x60] sm:$0xff]
      %v138 = vld [vmem:[%s116 + $0x68] sm:$0x33]
      %v139 = vld [vmem:[%s116 + $0x70] sm:$0xff]
      %v140 = vld [vmem:[%s116 + $0x78] sm:$0x33]
      %v141 = vld [vmem:[%s116 + $0x80] sm:$0xff]
      %v142 = vld [vmem:[%s116 + $0x88] sm:$0x33]
      %v143 = vld [vmem:[%s116 + $0x90] sm:$0xff]
      %v144 = vld [vmem:[%s116 + $0x98] sm:$0x33]
      %v145 = vld [vmem:[%s116 + $0xa0] sm:$0xff]
      %v146 = vld [vmem:[%s116 + $0xa8] sm:$0x33]
      %v147 = vld [vmem:[%s116 + $0xb0] sm:$0xff]
      %v148 = vld [vmem:[%s116 + $0xb8] sm:$0x33]
      %v149 = vld [vmem:[%s116 + $0xc0] sm:$0xff]
      %v150 = vld [vmem:[%s116 + $0xc8] sm:$0x33]
      %v151 = vld [vmem:[%s116 + $0xd0] sm:$0xff]
      %v152 = vld [vmem:[%s116 + $0xd8] sm:$0x33]
      %v153 = vld [vmem:[%s116 + $0xe0] sm:$0xff]
      %v154 = vld [vmem:[%s116 + $0xe8] sm:$0x33]
      %v155 = vld [vmem:[%s116 + $0xf0] sm:$0xff]
      %v156 = vld [vmem:[%s116 + $0xf8] sm:$0x33]
      %v157 = vld [vmem:[%s116 + $0x100] sm:$0xff]
      %v158 = vld [vmem:[%s116 + $0x108] sm:$0x33]
      %v159 = vld [vmem:[%s116 + $0x110] sm:$0xff]
      %v160 = vld [vmem:[%s116 + $0x118] sm:$0x33]
      %v161 = vld [vmem:[%s116 + $0x120] sm:$0xff]
      %v162 = vld [vmem:[%s116 + $0x128] sm:$0x33]
      %v163 = vld [vmem:[%s116 + $0x130] sm:$0xff]
      %v164 = vld [vmem:[%s116 + $0x138] sm:$0x33]
      %v165 = vld [vmem:[%s116 + $0x140] sm:$0xff]
      %v166 = vld [vmem:[%s116 + $0x148] sm:$0x33]
      %v167 = vld [vmem:[%s116 + $0x150] sm:$0xff]
      %v168 = vld [vmem:[%s116 + $0x158] sm:$0x33]
      %v169 = vld [vmem:[%s116 + $0x160] sm:$0xff]
      %v170 = vld [vmem:[%s116 + $0x168] sm:$0x33]
      %v171 = vld [vmem:[%s116 + $0x170] sm:$0xff]
      %v172 = vld [vmem:[%s116 + $0x178] sm:$0x33]
      %v173 = vmax.bf16 %v125, %v127
      %v174 = vmax.bf16 %v126, %v128
      %v175 = vmax.bf16 %v129, %v131
      %v176 = vmax.bf16 %v130, %v132
      %v177 = vmax.bf16 %v133, %v135
      %v178 = vmax.bf16 %v134, %v136
      %v179 = vmax.bf16 %v137, %v139
      %v180 = vmax.bf16 %v138, %v140
      %v181 = vmax.bf16 %v141, %v143
      %v182 = vmax.bf16 %v142, %v144
      %v183 = vmax.bf16 %v145, %v147
      %v184 = vmax.bf16 %v146, %v148
      %v185 = vmax.bf16 %v149, %v151
      %v186 = vmax.bf16 %v150, %v152
      %v187 = vmax.bf16 %v153, %v155
      %v188 = vmax.bf16 %v154, %v156
      %v189 = vmax.bf16 %v157, %v159
      %v190 = vmax.bf16 %v158, %v160
      %v191 = vmax.bf16 %v161, %v163
      %v192 = vmax.bf16 %v162, %v164
      %v193 = vmax.bf16 %v165, %v167
      %v194 = vmax.bf16 %v166, %v168
      %v195 = vmax.bf16 %v169, %v171
      %v196 = vmax.bf16 %v170, %v172
      %v221 = vrot.slane %v173, 4
      %v222 = vrot.slane %v174, 4
      %v223 = vrot.slane %v175, 4
      %v224 = vrot.slane %v176, 4
      %v225 = vrot.slane %v177, 4
      %v226 = vrot.slane %v178, 4
      %v227 = vrot.slane %v179, 4
      %v228 = vrot.slane %v180, 4
      %v229 = vrot.slane %v181, 4
      %v230 = vrot.slane %v182, 4
      %v231 = vrot.slane %v183, 4
      %v232 = vrot.slane %v184, 4
      %v233 = vrot.slane %v185, 4
      %v234 = vrot.slane %v186, 4
      %v235 = vrot.slane %v187, 4
      %v236 = vrot.slane %v188, 4
      %v237 = vrot.slane %v189, 4
      %v238 = vrot.slane %v190, 4
      %v239 = vrot.slane %v191, 4
      %v240 = vrot.slane %v192, 4
      %v241 = vrot.slane %v193, 4
      %v242 = vrot.slane %v194, 4
      %v243 = vrot.slane %v195, 4
      %v244 = vrot.slane %v196, 4
      %v269 = vmax.bf16 %v173, %v221
      %v270 = vmax.bf16 %v174, %v222
      %v271 = vmax.bf16 %v175, %v223
      %v272 = vmax.bf16 %v176, %v224
      %v273 = vmax.bf16 %v177, %v225
      %v274 = vmax.bf16 %v178, %v226
      %v275 = vmax.bf16 %v179, %v227
      %v276 = vmax.bf16 %v180, %v228
      %v277 = vmax.bf16 %v181, %v229
      %v278 = vmax.bf16 %v182, %v230
      %v279 = vmax.bf16 %v183, %v231
      %v280 = vmax.bf16 %v184, %v232
      %v281 = vmax.bf16 %v185, %v233
      %v282 = vmax.bf16 %v186, %v234
      %v283 = vmax.bf16 %v187, %v235
      %v284 = vmax.bf16 %v188, %v236
      %v285 = vmax.bf16 %v189, %v237
      %v286 = vmax.bf16 %v190, %v238
      %v287 = vmax.bf16 %v191, %v239
      %v288 = vmax.bf16 %v192, %v240
      %v289 = vmax.bf16 %v193, %v241
      %v290 = vmax.bf16 %v194, %v242
      %v291 = vmax.bf16 %v195, %v243
      %v292 = vmax.bf16 %v196, %v244
      %vm293 = vcmask 257024
      %294 = vst.msk [vmem:[%s123] sm:$0xf] %vm293, %v269
      %vm295 = vcmask 254976
      %296 = vst.msk [vmem:[%s123 + $0x4] sm:$0x3] %vm295, %v270
      %297 = vst.msk [vmem:[%s123 + $0x8] sm:$0xf] %vm293, %v271
      %298 = vst.msk [vmem:[%s123 + $0xc] sm:$0x3] %vm295, %v272
      %299 = vst.msk [vmem:[%s123 + $0x10] sm:$0xf] %vm293, %v273
      %300 = vst.msk [vmem:[%s123 + $0x14] sm:$0x3] %vm295, %v274
      %301 = vst.msk [vmem:[%s123 + $0x18] sm:$0xf] %vm293, %v275
      %302 = vst.msk [vmem:[%s123 + $0x1c] sm:$0x3] %vm295, %v276
      %303 = vst.msk [vmem:[%s123 + $0x20] sm:$0xf] %vm293, %v277
      %304 = vst.msk [vmem:[%s123 + $0x24] sm:$0x3] %vm295, %v278
      %305 = vst.msk [vmem:[%s123 + $0x28] sm:$0xf] %vm293, %v279
      %306 = vst.msk [vmem:[%s123 + $0x2c] sm:$0x3] %vm295, %v280
      %307 = vst.msk [vmem:[%s123 + $0x30] sm:$0xf] %vm293, %v281
      %308 = vst.msk [vmem:[%s123 + $0x34] sm:$0x3] %vm295, %v282
      %309 = vst.msk [vmem:[%s123 + $0x38] sm:$0xf] %vm293, %v283
      %310 = vst.msk [vmem:[%s123 + $0x3c] sm:$0x3] %vm295, %v284
      %311 = vst.msk [vmem:[%s123 + $0x40] sm:$0xf] %vm293, %v285
      %312 = vst.msk [vmem:[%s123 + $0x44] sm:$0x3] %vm295, %v286
      %313 = vst.msk [vmem:[%s123 + $0x48] sm:$0xf] %vm293, %v287
      %314 = vst.msk [vmem:[%s123 + $0x4c] sm:$0x3] %vm295, %v288
      %315 = vst.msk [vmem:[%s123 + $0x50] sm:$0xf] %vm293, %v289
      %316 = vst.msk [vmem:[%s123 + $0x54] sm:$0x3] %vm295, %v290
      %317 = vst.msk [vmem:[%s123 + $0x58] sm:$0xf] %vm293, %v291
      %318 = vst.msk [vmem:[%s123 + $0x5c] sm:$0x3] %vm295, %v292
      %s319 = smul.u32 12, %s12
      %p320 = scmp.lt.s32.totalorder %s319, 23
      %s321 = scalar_select %p320, %s319, 23
      %s322 = smul.addr %s321, 2
      %s323 = smul.addr %s322, 4
      %s324 = scalar_lea.vmem %s1, %s323
      // Predicated region
      $region25: #{torch_model_forward.6} parent=23 // pred_check
        %p325 = pneg %p56
      $region26: #{torch_model_forward.6} parent=23 // pred_check_branch
        %327 = sbr.rel (%p325) target = $region28
      $region27: #{torch_model_forward.6} parent=23 // pred_region
        %s328 = smul.u32 12, %s12
      $region28: #{torch_model_forward.6} parent=23 // pred_fallthru
        _
    $region24: #{torch_model_forward.6} parent=5 // pred_fallthru
      _
    %p329 = scmp.le.s32.totalorder 2, %s7
    // Predicated region
    $region29: #{torch_model_forward.6} parent=5 // pred_check
      %p330 = pneg %p329
    $region30: #{torch_model_forward.6} parent=5 // pred_check_branch
      %332 = sbr.rel (%p330) target = $region32
    $region31: #{torch_model_forward.6} parent=5 // pred_region
      %s333 = ssub.s32 %s7, 2
      // Predicated region
      $region33: #{torch_model_forward.6} parent=31 // pred_check
        %p334 = pneg %p62
      $region34: #{torch_model_forward.6} parent=31 // pred_check_branch
        %336 = sbr.rel (%p334) target = $region36
      $region35: #{torch_model_forward.6} parent=31 // pred_region
        %s337 = smul.u32 12, %s13
        %p338 = scmp.lt.s32.totalorder %s337, 23
        %s339 = scalar_select %p338, %s337, 23
        %s340 = smul.addr %s339, 2
        %s341 = smul.addr %s340, 4
        %s342 = scalar_lea.vmem %s1, %s341
      $region36: #{torch_model_forward.6} parent=31 // pred_fallthru
        _
    $region32: #{torch_model_forward.6} parent=5 // pred_fallthru
      _
  $region6: #{torch_model_forward.6} parent=0 // loop_footer
    %s11 = sadd.s32 1, %s7
  $region7: #{torch_model_forward.6} parent=0 // loop_footer_branch
    %6 = sbr.rel target = $region3
  $region8: #{torch_model_forward.6} parent=0 // loop_exit
    _

// kernel: torch_model_forward.5
$region0: #{torch_model_forward.5}
  #allocation0 [shape = 'u32[]', space=smem, size = 0x4, offset = 0x4, fixed_abs, tag = 'smem constant byte address 0x4 - core index']
  #allocation1 [shape = 'u32[144,128]{1,0:T(1,128)}', space=vmem, size = 0x12000, scoped, tag = 'internal scratch']
  %s0 = inlined_call_operand.vmem [shape: bf16[1152,25], index: 0, kind: input, shape index: {}]
  %s1 = inlined_call_operand.vmem [shape: bf16[25,128], index: 1, kind: input, shape index: {}]
  %s2 = inlined_call_operand.vmem [shape: f32[1,128], index: 2, kind: input, shape index: {}]
  %s3 = inlined_call_operand.vmem [shape: bf16[1152,128], index: 3, kind: output, shape index: {}]
  %s4 = sld [smem:[#allocation0]]
  $region45: #{torch_model_forward.5} parent=0
    _
  %s6 = ssub.s32 1, %s4
  %s7 = scalar_select 0, %s6, %s4
  loop: start=0, step=1, limit=5
  $region2: #{torch_model_forward.5} parent=0 // loop_pre_header
    _
  $region3: #{torch_model_forward.5} parent=0 // loop_header
    %s9 = sphi 0, %s13
    %p10 = scmp.ge.s32.totalorder %s9, 5
    %s19 = sphi 0, %s21
    %s22 = sphi 0, %s19
    %s23 = sphi 0, %s22
    %s39 = sphi 0, %s23
    %s43 = sphi 0, %s43
    %s45 = sphi 0, %s43
    %s46 = sphi 0, %s45
    %s60 = sphi 0, %s46
    %s64 = sphi 0, %s64
    %s66 = sphi 0, %s64
    %s67 = sphi 0, %s66
    %s81 = sphi 0, %s67
    %s87 = sphi 0, %s89
    %s90 = sphi 0, %s87
    %s91 = sphi 0, %s90
    %s107 = sphi 0, %s91
  $region4: #{torch_model_forward.5} parent=0 // loop_header_branch
    %12 = sbr.rel (%p10) target = $region8
  $region5: #{torch_model_forward.5} parent=0 // loop_body
    %s14 = ssub.s32 %s9, 1
    %s15 = ssub.s32 %s9, 2
    %s16 = sadd.s32 %s9, 1
    %s17 = ssub.s32 %s9, %s16
    %p18 = scmp.eq.s32.totalorder %s17, 0
    %s20 = sadd.s32 %s19, 1
    %s21 = scalar_select %p18, %s19, %s20
    %p24 = pneg %p18
    %p25 = scmp.eq.s32.totalorder %s9, 2
    %p26 = por %p24, %p25
    %p27 = scmp.ne.s32.totalorder %s19, %s22
    %p28 = scmp.eq.s32.totalorder %s9, 0
    %p29 = por %p27, %p28
    %p30 = scmp.ne.s32.totalorder %s19, %s22
    %p31 = scmp.eq.s32.totalorder %s14, 2
    %p32 = por %p30, %p31
    %p33 = scmp.ne.s32.totalorder %s22, %s23
    %p34 = scmp.eq.s32.totalorder %s14, 0
    %p35 = por %p33, %p34
    %p36 = scmp.ne.s32.totalorder %s22, %s23
    %p37 = scmp.eq.s32.totalorder %s15, 2
    %p38 = por %p36, %p37
    %p40 = scmp.ne.s32.totalorder %s23, %s39
    %p41 = scmp.eq.s32.totalorder %s15, 0
    %p42 = por %p40, %p41
    %s44 = sadd.s32 %s43, 1
    %p47 = scmp.eq.s32.totalorder %s9, 2
    %p48 = scmp.ne.s32.totalorder %s43, %s45
    %p49 = scmp.eq.s32.totalorder %s9, 0
    %p50 = por %p48, %p49
    %p51 = scmp.ne.s32.totalorder %s43, %s45
    %p52 = scmp.eq.s32.totalorder %s14, 2
    %p53 = por %p51, %p52
    %p54 = scmp.ne.s32.totalorder %s45, %s46
    %p55 = scmp.eq.s32.totalorder %s14, 0
    %p56 = por %p54, %p55
    %p57 = scmp.ne.s32.totalorder %s45, %s46
    %p58 = scmp.eq.s32.totalorder %s15, 2
    %p59 = por %p57, %p58
    %p61 = scmp.ne.s32.totalorder %s46, %s60
    %p62 = scmp.eq.s32.totalorder %s15, 0
    %p63 = por %p61, %p62
    %s65 = sadd.s32 %s64, 1
    %p68 = scmp.eq.s32.totalorder %s9, 2
    %p69 = scmp.ne.s32.totalorder %s64, %s66
    %p70 = scmp.eq.s32.totalorder %s9, 0
    %p71 = por %p69, %p70
    %p72 = scmp.ne.s32.totalorder %s64, %s66
    %p73 = scmp.eq.s32.totalorder %s14, 2
    %p74 = por %p72, %p73
    %p75 = scmp.ne.s32.totalorder %s66, %s67
    %p76 = scmp.eq.s32.totalorder %s14, 0
    %p77 = por %p75, %p76
    %p78 = scmp.ne.s32.totalorder %s66, %s67
    %p79 = scmp.eq.s32.totalorder %s15, 2
    %p80 = por %p78, %p79
    %p82 = scmp.ne.s32.totalorder %s67, %s81
    %p83 = scmp.eq.s32.totalorder %s15, 0
    %p84 = por %p82, %p83
    %s85 = ssub.s32 %s9, %s16
    %p86 = scmp.eq.s32.totalorder %s85, 0
    %s88 = sadd.s32 %s87, 1
    %s89 = scalar_select %p86, %s87, %s88
    %p92 = pneg %p86
    %p93 = scmp.eq.s32.totalorder %s9, 2
    %p94 = por %p92, %p93
    %p95 = scmp.ne.s32.totalorder %s87, %s90
    %p96 = scmp.eq.s32.totalorder %s9, 0
    %p97 = por %p95, %p96
    %p98 = scmp.ne.s32.totalorder %s87, %s90
    %p99 = scmp.eq.s32.totalorder %s14, 2
    %p100 = por %p98, %p99
    %p101 = scmp.ne.s32.totalorder %s90, %s91
    %p102 = scmp.eq.s32.totalorder %s14, 0
    %p103 = por %p101, %p102
    %p104 = scmp.ne.s32.totalorder %s90, %s91
    %p105 = scmp.eq.s32.totalorder %s15, 2
    %p106 = por %p104, %p105
    %p108 = scmp.ne.s32.totalorder %s91, %s107
    %p109 = scmp.eq.s32.totalorder %s15, 0
    %p110 = por %p108, %p109
    %p111 = scmp.le.s32.totalorder 1, %s9
    %p112 = scmp.lt.s32.totalorder %s9, 4
    %p113 = pnand %p111, %p112
    %p114 = pneg %p113
    // Predicated region
    $region9: #{torch_model_forward.5} parent=5 // pred_check
      _
    $region10: #{torch_model_forward.5} parent=5 // pred_check_branch
      %116 = sbr.rel (%p113) target = $region12
    $region11: #{torch_model_forward.5} parent=5 // pred_region
      %s117 = ssub.s32 %s9, 1
      // Predicated region
      $region13: #{torch_model_forward.5} parent=11 // pred_check
        %p118 = pneg %p56
      $region14: #{torch_model_forward.5} parent=11 // pred_check_branch
        %120 = sbr.rel (%p118) target = $region16
      $region15: #{torch_model_forward.5} parent=11 // pred_region
        _
      $region16: #{torch_model_forward.5} parent=11 // pred_fallthru
        _
      // Predicated region
      $region17: #{torch_model_forward.5} parent=11 // pred_check
        %p121 = pneg %p77
      $region18: #{torch_model_forward.5} parent=11 // pred_check_branch
        %123 = sbr.rel (%p121) target = $region20
      $region19: #{torch_model_forward.5} parent=11 // pred_region
        _
      $region20: #{torch_model_forward.5} parent=11 // pred_fallthru
        _
    $region12: #{torch_model_forward.5} parent=5 // pred_fallthru
      _
    %p124 = scmp.lt.s32.totalorder %s9, 3
    // Predicated region
    $region21: #{torch_model_forward.5} parent=5 // pred_check
      %p125 = pneg %p124
    $region22: #{torch_model_forward.5} parent=5 // pred_check_branch
      %127 = sbr.rel (%p125) target = $region24
    $region23: #{torch_model_forward.5} parent=5 // pred_region
      // Predicated region
      $region25: #{torch_model_forward.5} parent=23 // pred_check
        %p128 = pneg %p29
      $region26: #{torch_model_forward.5} parent=23 // pred_check_branch
        %130 = sbr.rel (%p128) target = $region28
      $region27: #{torch_model_forward.5} parent=23 // pred_region
        %s131 = smul.u32 48, %s9
        %p132 = scmp.lt.s32.totalorder %s131, 143
        %s133 = scalar_select %p132, %s131, 143
        %s134 = smul.addr %s133, 4
        %s135 = scalar_lea.vmem %s0, %s134
        %s136 = smul.u32 48, %s9
      $region28: #{torch_model_forward.5} parent=23 // pred_fallthru
        _
    $region24: #{torch_model_forward.5} parent=5 // pred_fallthru
      _
    %p137 = scmp.le.s32.totalorder 1, %s9
    %p138 = scmp.lt.s32.totalorder %s9, 4
    %p139 = pnand %p137, %p138
    %p140 = pneg %p139
    // Predicated region
    $region29: #{torch_model_forward.5} parent=5 // pred_check
      _
    $region30: #{torch_model_forward.5} parent=5 // pred_check_branch
      %142 = sbr.rel (%p139) target = $region32
    $region31: #{torch_model_forward.5} parent=5 // pred_region
      %s143 = ssub.s32 %s9, 1
      %s144 = smul.u32 48, %s14
      %p145 = scmp.lt.s32.totalorder %s144, 143
      %s146 = scalar_select %p145, %s144, 143
      %s147 = smul.addr %s146, 4
      %s148 = scalar_lea.vmem %s0, %s147
      %p149 = pneg %p35
      %p150 = pneg %p32
      %p151 = pneg %p56
      %p152 = pneg %p53
      %p153 = pneg %p77
      %p154 = pneg %p74
      %p155 = pneg %p103
      %p156 = pneg %p100
      %s157 = smul.u32 48, %s14
      %p158 = scmp.lt.s32.totalorder %s157, 143
      %s159 = scalar_select %p158, %s157, 143
      %s160 = smul.addr %s159, 4
      %s161 = scalar_lea.vmem %s3, %s160
      %s162 = smul.u32 48, %s14
      %p163 = scmp.lt.s32.totalorder %s162, 143
      %s164 = scalar_select %p163, %s162, 143
      %s165 = smul.addr %s164, 4
      %s166 = scalar_lea.vmem %s0, %s165
      %s167 = smul.u32 48, %s14
      %s168 = smul.u32 48, %s14
      %p169 = scmp.lt.s32.totalorder %s168, 143
      %s170 = scalar_select %p169, %s168, 143
      %s171 = smul.addr %s170, 4
      %s172 = scalar_lea.vmem %s3, %s171
      %s173 = smul.u32 48, %s14
      %v175 = vld [vmem:[%s166] sm:$0xf]
      %v176 = vld [vmem:[%s166 + $0x4] sm:$0xf]
      %v177 = vld [vmem:[%s166 + $0x8] sm:$0xf]
      %v178 = vld [vmem:[%s166 + $0xc] sm:$0xf]
      %v179 = vld [vmem:[%s166 + $0x10] sm:$0xf]
      %v180 = vld [vmem:[%s166 + $0x14] sm:$0xf]
      %v181 = vld [vmem:[%s166 + $0x18] sm:$0xf]
      %v182 = vld [vmem:[%s166 + $0x1c] sm:$0xf]
      %v183 = vld [vmem:[%s166 + $0x20] sm:$0xf]
      %v184 = vld [vmem:[%s166 + $0x24] sm:$0xf]
      %v185 = vld [vmem:[%s166 + $0x28] sm:$0xf]
      %v186 = vld [vmem:[%s166 + $0x2c] sm:$0xf]
      %v187 = vld [vmem:[%s166 + $0x30] sm:$0xf]
      %v188 = vld [vmem:[%s166 + $0x34] sm:$0xf]
      %v189 = vld [vmem:[%s166 + $0x38] sm:$0xf]
      %v190 = vld [vmem:[%s166 + $0x3c] sm:$0xf]
      %v191 = vld [vmem:[%s166 + $0x40] sm:$0xf]
      %v192 = vld [vmem:[%s166 + $0x44] sm:$0xf]
      %v193 = vld [vmem:[%s166 + $0x48] sm:$0xf]
      %v194 = vld [vmem:[%s166 + $0x4c] sm:$0xf]
      %v195 = vld [vmem:[%s166 + $0x50] sm:$0xf]
      %v196 = vld [vmem:[%s166 + $0x54] sm:$0xf]
      %v197 = vld [vmem:[%s166 + $0x58] sm:$0xf]
      %v198 = vld [vmem:[%s166 + $0x5c] sm:$0xf]
      %v199 = vld [vmem:[%s166 + $0x60] sm:$0xf]
      %v200 = vld [vmem:[%s166 + $0x64] sm:$0xf]
      %v201 = vld [vmem:[%s166 + $0x68] sm:$0xf]
      %v202 = vld [vmem:[%s166 + $0x6c] sm:$0xf]
      %v203 = vld [vmem:[%s166 + $0x70] sm:$0xf]
      %v204 = vld [vmem:[%s166 + $0x74] sm:$0xf]
      %v205 = vld [vmem:[%s166 + $0x78] sm:$0xf]
      %v206 = vld [vmem:[%s166 + $0x7c] sm:$0xf]
      %v207 = vld [vmem:[%s166 + $0x80] sm:$0xf]
      %v208 = vld [vmem:[%s166 + $0x84] sm:$0xf]
      %v209 = vld [vmem:[%s166 + $0x88] sm:$0xf]
      %v210 = vld [vmem:[%s166 + $0x8c] sm:$0xf]
      %v211 = vld [vmem:[%s166 + $0x90] sm:$0xf]
      %v212 = vld [vmem:[%s166 + $0x94] sm:$0xf]
      %v213 = vld [vmem:[%s166 + $0x98] sm:$0xf]
      %v214 = vld [vmem:[%s166 + $0x9c] sm:$0xf]
      %v215 = vld [vmem:[%s166 + $0xa0] sm:$0xf]
      %v216 = vld [vmem:[%s166 + $0xa4] sm:$0xf]
      %v217 = vld [vmem:[%s166 + $0xa8] sm:$0xf]
      %v218 = vld [vmem:[%s166 + $0xac] sm:$0xf]
      %v219 = vld [vmem:[%s166 + $0xb0] sm:$0xf]
      %v220 = vld [vmem:[%s166 + $0xb4] sm:$0xf]
      %v221 = vld [vmem:[%s166 + $0xb8] sm:$0xf]
      %v222 = vld [vmem:[%s166 + $0xbc] sm:$0xf]
      %v223 = vld [vmem:[%s1] sm:$0xf]
      %v224 = vld [vmem:[%s1 + $0x4] sm:$0xf]
      %v225 = vld [vmem:[%s1 + $0x8] sm:$0xf]
      %v226 = vld [vmem:[%s1 + $0xc] sm:$0x1]
      %v227 = vld [vmem:[%s2] sm:$0x1]
      %v229 = vlaneseq
      %v230 = vshrl.u32 %v229, 7
      %v231 = vsub.s32 0, %v230
      %v232 = vrot.slane %v227, %v231
      %v282 = vunpack.c.l.b16 %v175
      %v283 = vunpack.c.l.b16 %v176
      %v284 = vunpack.c.l.b16 %v177
      %v285 = vunpack.c.l.b16 %v178
      %v286 = vunpack.c.l.b16 %v179
      %v287 = vunpack.c.l.b16 %v180
      %v288 = vunpack.c.l.b16 %v181
      %v289 = vunpack.c.l.b16 %v182
      %v290 = vunpack.c.l.b16 %v183
      %v291 = vunpack.c.l.b16 %v184
      %v292 = vunpack.c.l.b16 %v185
      %v293 = vunpack.c.l.b16 %v186
      %v294 = vunpack.c.l.b16 %v187
      %v295 = vunpack.c.l.b16 %v188
      %v296 = vunpack.c.l.b16 %v189
      %v297 = vunpack.c.l.b16 %v190
      %v298 = vunpack.c.l.b16 %v191
      %v299 = vunpack.c.l.b16 %v192
      %v300 = vunpack.c.l.b16 %v193
      %v301 = vunpack.c.l.b16 %v194
      %v302 = vunpack.c.l.b16 %v195
      %v303 = vunpack.c.l.b16 %v196
      %v304 = vunpack.c.l.b16 %v197
      %v305 = vunpack.c.l.b16 %v198
      %v306 = vunpack.c.l.b16 %v199
      %v307 = vunpack.c.l.b16 %v200
      %v308 = vunpack.c.l.b16 %v201
      %v309 = vunpack.c.l.b16 %v202
      %v310 = vunpack.c.l.b16 %v203
      %v311 = vunpack.c.l.b16 %v204
      %v312 = vunpack.c.l.b16 %v205
      %v313 = vunpack.c.l.b16 %v206
      %v314 = vunpack.c.l.b16 %v207
      %v315 = vunpack.c.l.b16 %v208
      %v316 = vunpack.c.l.b16 %v209
      %v317 = vunpack.c.l.b16 %v210
      %v318 = vunpack.c.l.b16 %v211
      %v319 = vunpack.c.l.b16 %v212
      %v320 = vunpack.c.l.b16 %v213
      %v321 = vunpack.c.l.b16 %v214
      %v322 = vunpack.c.l.b16 %v215
      %v323 = vunpack.c.l.b16 %v216
      %v324 = vunpack.c.l.b16 %v217
      %v325 = vunpack.c.l.b16 %v218
      %v326 = vunpack.c.l.b16 %v219
      %v327 = vunpack.c.l.b16 %v220
      %v328 = vunpack.c.l.b16 %v221
      %v329 = vunpack.c.l.b16 %v222
      %v330 = vpack.c.b16 %v283, %v282
      %v331 = vpack.c.b16 %v285, %v284
      %v332 = vpack.c.b16 %v287, %v286
      %v333 = vpack.c.b16 %v289, %v288
      %v334 = vpack.c.b16 %v291, %v290
      %v335 = vpack.c.b16 %v293, %v292
      %v336 = vpack.c.b16 %v295, %v294
      %v337 = vpack.c.b16 %v297, %v296
      %v338 = vpack.c.b16 %v299, %v298
      %v339 = vpack.c.b16 %v301, %v300
      %v340 = vpack.c.b16 %v303, %v302
      %v341 = vpack.c.b16 %v305, %v304
      %v342 = vpack.c.b16 %v307, %v306
      %v343 = vpack.c.b16 %v309, %v308
      %v344 = vpack.c.b16 %v311, %v310
      %v345 = vpack.c.b16 %v313, %v312
      %v346 = vpack.c.b16 %v315, %v314
      %v347 = vpack.c.b16 %v317, %v316
      %v348 = vpack.c.b16 %v319, %v318
      %v349 = vpack.c.b16 %v321, %v320
      %v350 = vpack.c.b16 %v323, %v322
      %v351 = vpack.c.b16 %v325, %v324
      %v352 = vpack.c.b16 %v327, %v326
      %v353 = vpack.c.b16 %v329, %v328
      %v358 = vunpack.c.l.b16 %v223
      %v359 = vunpack.c.l.b16 %v224
      %v360 = vunpack.c.l.b16 %v225
      %v361 = vunpack.c.l.b16 %v226
      %v362 = vpack.c.b16 %v359, %v358
      %v363 = vpack.c.b16 %v361, %v360
      %vm365 = vcmask 203776
      %v367 = vsel %vm365, %v330, 0
      %v370 = vsel %vm365, %v331, 0
      %v373 = vsel %vm365, %v332, 0
      %v376 = vsel %vm365, %v333, 0
      %v379 = vsel %vm365, %v334, 0
      %v382 = vsel %vm365, %v335, 0
      %v385 = vsel %vm365, %v336, 0
      %v388 = vsel %vm365, %v337, 0
      %v391 = vsel %vm365, %v338, 0
      %v394 = vsel %vm365, %v339, 0
      %v397 = vsel %vm365, %v340, 0
      %v400 = vsel %vm365, %v341, 0
      %v403 = vsel %vm365, %v342, 0
      %v406 = vsel %vm365, %v343, 0
      %v409 = vsel %vm365, %v344, 0
      %v412 = vsel %vm365, %v345, 0
      %v415 = vsel %vm365, %v346, 0
      %v418 = vsel %vm365, %v347, 0
      %v421 = vsel %vm365, %v348, 0
      %v424 = vsel %vm365, %v349, 0
      %v427 = vsel %vm365, %v350, 0
      %v430 = vsel %vm365, %v351, 0
      %v433 = vsel %vm365, %v352, 0
      %v436 = vsel %vm365, %v353, 0
      %vm438 = vcmask 1043456
      %vm439 = vcmask 1044480
      %v440 = vsel %vm438, 4294967295, 65535
      %v441 = vsel %vm439, %v440, 0
      %v443 = vand.u32 %v363, %v441
      %445 = vmatprep.subr.bf16.mxu0 0
      %446 = vmatpush1.bf16.msra.mxu0 0
      %447 = vmatprep.subr.bf16.mxu0 0
      %448 = vmatpush1.bf16.msra.mxu0 0
      %449 = vmatprep.subr.bf16.mxu0 0
      %450 = vmatpush1.bf16.msra.mxu0 0
      %451 = vmatprep.subr.bf16.mxu0 0
      %452 = vmatpush1.bf16.msra.mxu0 0
      %453 = vmatprep.subr.bf16.mxu0 0
      %454 = vmatpush1.bf16.msra.mxu0 0
      %455 = vmatprep.subr.bf16.mxu0 0
      %456 = vmatpush1.bf16.msra.mxu0 0
      %457 = vmatprep.subr.bf16.mxu0 0
      %458 = vmatpush1.bf16.msra.mxu0 %v443
      %459 = vmatprep.subr.bf16.mxu0 0
      %460 = vmatpush1.bf16.msra.mxu0 %v362
      %461 = vmatprep.subr.bf16.mxu0 0
      %462 = vmatpush2.bf16.msra.mxu0 0
      %463 = vmatprep.subr.bf16.mxu0 0
      %464 = vmatpush2.bf16.msra.mxu0 0
      %465 = vmatprep.subr.bf16.mxu0 0
      %466 = vmatpush2.bf16.msra.mxu0 0
      %467 = vmatprep.subr.bf16.mxu0 0
      %468 = vmatpush2.bf16.msra.mxu0 0
      %469 = vmatprep.subr.bf16.mxu0 0
      %470 = vmatpush2.bf16.msra.mxu0 0
      %471 = vmatprep.subr.bf16.mxu0 0
      %472 = vmatpush2.bf16.msra.mxu0 0
      %473 = vmatprep.subr.bf16.mxu0 0
      %474 = vmatpush2.bf16.msra.mxu0 0
      %475 = vmatprep.subr.bf16.mxu0 0
      %476 = vmatpush2.bf16.msra.mxu0 0
      %477 = vmatprep.mubr.bf16.mxu0 0
      %478 = vmatmul.mubr.bf16.gmra.mxu0 %v367
      %v479 = vpop.f32.mrf.mxu0
      %v480 = vadd.f32 %v232, %v479
      %v481 = vpop.f32.mrf.mxu0
      %v482 = vpop.f32.mrf.mxu0
      %v483 = vadd.f32 %v232, %v482
      %v484 = vpop.f32.mrf.mxu0
      %485 = vmatprep.mubr.bf16.mxu0 0
      %486 = vmatmul.mubr.bf16.gmra.mxu0 %v370
      %v487 = vpop.f32.mrf.mxu0
      %v488 = vadd.f32 %v232, %v487
      %v489 = vpop.f32.mrf.mxu0
      %v490 = vpop.f32.mrf.mxu0
      %v491 = vadd.f32 %v232, %v490
      %v492 = vpop.f32.mrf.mxu0
      %493 = vmatprep.mubr.bf16.mxu0 0
      %494 = vmatmul.mubr.bf16.gmra.mxu0 %v373
      %v495 = vpop.f32.mrf.mxu0
      %v496 = vadd.f32 %v232, %v495
      %v497 = vpop.f32.mrf.mxu0
      %v498 = vpop.f32.mrf.mxu0
      %v499 = vadd.f32 %v232, %v498
      %v500 = vpop.f32.mrf.mxu0
      %501 = vmatprep.mubr.bf16.mxu0 0
      %502 = vmatmul.mubr.bf16.gmra.mxu0 %v376
      %v503 = vpop.f32.mrf.mxu0
      %v504 = vadd.f32 %v232, %v503
      %v505 = vpop.f32.mrf.mxu0
      %v506 = vpop.f32.mrf.mxu0
      %v507 = vadd.f32 %v232, %v506
      %v508 = vpop.f32.mrf.mxu0
      %509 = vmatprep.mubr.bf16.mxu0 0
      %510 = vmatmul.mubr.bf16.gmra.mxu0 %v379
      %v511 = vpop.f32.mrf.mxu0
      %v512 = vadd.f32 %v232, %v511
      %v513 = vpop.f32.mrf.mxu0
      %v514 = vpop.f32.mrf.mxu0
      %v515 = vadd.f32 %v232, %v514
      %v516 = vpop.f32.mrf.mxu0
      %517 = vmatprep.mubr.bf16.mxu0 0
      %518 = vmatmul.mubr.bf16.gmra.mxu0 %v382
      %v519 = vpop.f32.mrf.mxu0
      %v520 = vadd.f32 %v232, %v519
      %v521 = vpop.f32.mrf.mxu0
      %v522 = vpop.f32.mrf.mxu0
      %v523 = vadd.f32 %v232, %v522
      %v524 = vpop.f32.mrf.mxu0
      %525 = vmatprep.mubr.bf16.mxu0 0
      %526 = vmatmul.mubr.bf16.gmra.mxu0 %v385
      %v527 = vpop.f32.mrf.mxu0
      %v528 = vadd.f32 %v232, %v527
      %v529 = vpop.f32.mrf.mxu0
      %v530 = vpop.f32.mrf.mxu0
      %v531 = vadd.f32 %v232, %v530
      %v532 = vpop.f32.mrf.mxu0
      %533 = vmatprep.mubr.bf16.mxu0 0
      %534 = vmatmul.mubr.bf16.gmra.mxu0 %v388
      %v535 = vpop.f32.mrf.mxu0
      %v536 = vadd.f32 %v232, %v535
      %v537 = vpop.f32.mrf.mxu0
      %v538 = vpop.f32.mrf.mxu0
      %v539 = vadd.f32 %v232, %v538
      %v540 = vpop.f32.mrf.mxu0
      %541 = vmatprep.mubr.bf16.mxu0 0
      %542 = vmatmul.mubr.bf16.gmra.mxu0 %v391
      %v543 = vpop.f32.mrf.mxu0
      %v544 = vadd.f32 %v232, %v543
      %v545 = vpop.f32.mrf.mxu0
      %v546 = vpop.f32.mrf.mxu0
      %v547 = vadd.f32 %v232, %v546
      %v548 = vpop.f32.mrf.mxu0
      %549 = vmatprep.mubr.bf16.mxu0 0
      %550 = vmatmul.mubr.bf16.gmra.mxu0 %v394
      %v551 = vpop.f32.mrf.mxu0
      %v552 = vadd.f32 %v232, %v551
      %v553 = vpop.f32.mrf.mxu0
      %v554 = vpop.f32.mrf.mxu0
      %v555 = vadd.f32 %v232, %v554
      %v556 = vpop.f32.mrf.mxu0
      %557 = vmatprep.mubr.bf16.mxu0 0
      %558 = vmatmul.mubr.bf16.gmra.mxu0 %v397
      %v559 = vpop.f32.mrf.mxu0
      %v560 = vadd.f32 %v232, %v559
      %v561 = vpop.f32.mrf.mxu0
      %v562 = vpop.f32.mrf.mxu0
      %v563 = vadd.f32 %v232, %v562
      %v564 = vpop.f32.mrf.mxu0
      %565 = vmatprep.mubr.bf16.mxu0 0
      %566 = vmatmul.mubr.bf16.gmra.mxu0 %v400
      %v567 = vpop.f32.mrf.mxu0
      %v568 = vadd.f32 %v232, %v567
      %v569 = vpop.f32.mrf.mxu0
      %v570 = vpop.f32.mrf.mxu0
      %v571 = vadd.f32 %v232, %v570
      %v572 = vpop.f32.mrf.mxu0
      %573 = vmatprep.mubr.bf16.mxu0 0
      %574 = vmatmul.mubr.bf16.gmra.mxu0 %v403
      %v575 = vpop.f32.mrf.mxu0
      %v576 = vadd.f32 %v232, %v575
      %v577 = vpop.f32.mrf.mxu0
      %v578 = vpop.f32.mrf.mxu0
      %v579 = vadd.f32 %v232, %v578
      %v580 = vpop.f32.mrf.mxu0
      %581 = vmatprep.mubr.bf16.mxu0 0
      %582 = vmatmul.mubr.bf16.gmra.mxu0 %v406
      %v583 = vpop.f32.mrf.mxu0
      %v584 = vadd.f32 %v232, %v583
      %v585 = vpop.f32.mrf.mxu0
      %v586 = vpop.f32.mrf.mxu0
      %v587 = vadd.f32 %v232, %v586
      %v588 = vpop.f32.mrf.mxu0
      %589 = vmatprep.mubr.bf16.mxu0 0
      %590 = vmatmul.mubr.bf16.gmra.mxu0 %v409
      %v591 = vpop.f32.mrf.mxu0
      %v592 = vadd.f32 %v232, %v591
      %v593 = vpop.f32.mrf.mxu0
      %v594 = vpop.f32.mrf.mxu0
      %v595 = vadd.f32 %v232, %v594
      %v596 = vpop.f32.mrf.mxu0
      %597 = vmatprep.mubr.bf16.mxu0 0
      %598 = vmatmul.mubr.bf16.gmra.mxu0 %v412
      %v599 = vpop.f32.mrf.mxu0
      %v600 = vadd.f32 %v232, %v599
      %v601 = vpop.f32.mrf.mxu0
      %v602 = vpop.f32.mrf.mxu0
      %v603 = vadd.f32 %v232, %v602
      %v604 = vpop.f32.mrf.mxu0
      %605 = vmatprep.mubr.bf16.mxu0 0
      %606 = vmatmul.mubr.bf16.gmra.mxu0 %v415
      %v607 = vpop.f32.mrf.mxu0
      %v608 = vadd.f32 %v232, %v607
      %v609 = vpop.f32.mrf.mxu0
      %v610 = vpop.f32.mrf.mxu0
      %v611 = vadd.f32 %v232, %v610
      %v612 = vpop.f32.mrf.mxu0
      %613 = vmatprep.mubr.bf16.mxu0 0
      %614 = vmatmul.mubr.bf16.gmra.mxu0 %v418
      %v615 = vpop.f32.mrf.mxu0
      %v616 = vadd.f32 %v232, %v615
      %v617 = vpop.f32.mrf.mxu0
      %v618 = vpop.f32.mrf.mxu0
      %v619 = vadd.f32 %v232, %v618
      %v620 = vpop.f32.mrf.mxu0
      %621 = vmatprep.mubr.bf16.mxu0 0
      %622 = vmatmul.mubr.bf16.gmra.mxu0 %v421
      %v623 = vpop.f32.mrf.mxu0
      %v624 = vadd.f32 %v232, %v623
      %v625 = vpop.f32.mrf.mxu0
      %v626 = vpop.f32.mrf.mxu0
      %v627 = vadd.f32 %v232, %v626
      %v628 = vpop.f32.mrf.mxu0
      %629 = vmatprep.mubr.bf16.mxu0 0
      %630 = vmatmul.mubr.bf16.gmra.mxu0 %v424
      %v631 = vpop.f32.mrf.mxu0
      %v632 = vadd.f32 %v232, %v631
      %v633 = vpop.f32.mrf.mxu0
      %v634 = vpop.f32.mrf.mxu0
      %v635 = vadd.f32 %v232, %v634
      %v636 = vpop.f32.mrf.mxu0
      %637 = vmatprep.mubr.bf16.mxu0 0
      %638 = vmatmul.mubr.bf16.gmra.mxu0 %v427
      %v639 = vpop.f32.mrf.mxu0
      %v640 = vadd.f32 %v232, %v639
      %v641 = vpop.f32.mrf.mxu0
      %v642 = vpop.f32.mrf.mxu0
      %v643 = vadd.f32 %v232, %v642
      %v644 = vpop.f32.mrf.mxu0
      %645 = vmatprep.mubr.bf16.mxu0 0
      %646 = vmatmul.mubr.bf16.gmra.mxu0 %v430
      %v647 = vpop.f32.mrf.mxu0
      %v648 = vadd.f32 %v232, %v647
      %v649 = vpop.f32.mrf.mxu0
      %v650 = vpop.f32.mrf.mxu0
      %v651 = vadd.f32 %v232, %v650
      %v652 = vpop.f32.mrf.mxu0
      %653 = vmatprep.mubr.bf16.mxu0 0
      %654 = vmatmul.mubr.bf16.gmra.mxu0 %v433
      %v655 = vpop.f32.mrf.mxu0
      %v656 = vadd.f32 %v232, %v655
      %v657 = vpop.f32.mrf.mxu0
      %v658 = vpop.f32.mrf.mxu0
      %v659 = vadd.f32 %v232, %v658
      %v660 = vpop.f32.mrf.mxu0
      %661 = vmatprep.mubr.bf16.mxu0 0
      %662 = vmatmul.mubr.bf16.gmra.mxu0 %v436
      %v663 = vpop.f32.mrf.mxu0
      %v664 = vadd.f32 %v232, %v663
      %v665 = vpop.f32.mrf.mxu0
      %v666 = vpop.f32.mrf.mxu0
      %v667 = vadd.f32 %v232, %v666
      %v668 = vpop.f32.mrf.mxu0
      %669 = vdwg.mxu0
      %v670 = vmax.f32 %v480, 0.0
      %v671 = vmax.f32 %v483, 0.0
      %v672 = vmax.f32 %v488, 0.0
      %v673 = vmax.f32 %v491, 0.0
      %v674 = vmax.f32 %v496, 0.0
      %v675 = vmax.f32 %v499, 0.0
      %v676 = vmax.f32 %v504, 0.0
      %v677 = vmax.f32 %v507, 0.0
      %v678 = vmax.f32 %v512, 0.0
      %v679 = vmax.f32 %v515, 0.0
      %v680 = vmax.f32 %v520, 0.0
      %v681 = vmax.f32 %v523, 0.0
      %v682 = vmax.f32 %v528, 0.0
      %v683 = vmax.f32 %v531, 0.0
      %v684 = vmax.f32 %v536, 0.0
      %v685 = vmax.f32 %v539, 0.0
      %v686 = vmax.f32 %v544, 0.0
      %v687 = vmax.f32 %v547, 0.0
      %v688 = vmax.f32 %v552, 0.0
      %v689 = vmax.f32 %v555, 0.0
      %v690 = vmax.f32 %v560, 0.0
      %v691 = vmax.f32 %v563, 0.0
      %v692 = vmax.f32 %v568, 0.0
      %v693 = vmax.f32 %v571, 0.0
      %v694 = vmax.f32 %v576, 0.0
      %v695 = vmax.f32 %v579, 0.0
      %v696 = vmax.f32 %v584, 0.0
      %v697 = vmax.f32 %v587, 0.0
      %v698 = vmax.f32 %v592, 0.0
      %v699 = vmax.f32 %v595, 0.0
      %v700 = vmax.f32 %v600, 0.0
      %v701 = vmax.f32 %v603, 0.0
      %v702 = vmax.f32 %v608, 0.0
      %v703 = vmax.f32 %v611, 0.0
      %v704 = vmax.f32 %v616, 0.0
      %v705 = vmax.f32 %v619, 0.0
      %v706 = vmax.f32 %v624, 0.0
      %v707 = vmax.f32 %v627, 0.0
      %v708 = vmax.f32 %v632, 0.0
      %v709 = vmax.f32 %v635, 0.0
      %v710 = vmax.f32 %v640, 0.0
      %v711 = vmax.f32 %v643, 0.0
      %v712 = vmax.f32 %v648, 0.0
      %v713 = vmax.f32 %v651, 0.0
      %v714 = vmax.f32 %v656, 0.0
      %v715 = vmax.f32 %v659, 0.0
      %v716 = vmax.f32 %v664, 0.0
      %v717 = vmax.f32 %v667, 0.0
      %v718 = vpack.c.bf16 %v671, %v670
      %v719 = vpack.c.bf16 %v673, %v672
      %v720 = vpack.c.bf16 %v675, %v674
      %v721 = vpack.c.bf16 %v677, %v676
      %v722 = vpack.c.bf16 %v679, %v678
      %v723 = vpack.c.bf16 %v681, %v680
      %v724 = vpack.c.bf16 %v683, %v682
      %v725 = vpack.c.bf16 %v685, %v684
      %v726 = vpack.c.bf16 %v687, %v686
      %v727 = vpack.c.bf16 %v689, %v688
      %v728 = vpack.c.bf16 %v691, %v690
      %v729 = vpack.c.bf16 %v693, %v692
      %v730 = vpack.c.bf16 %v695, %v694
      %v731 = vpack.c.bf16 %v697, %v696
      %v732 = vpack.c.bf16 %v699, %v698
      %v733 = vpack.c.bf16 %v701, %v700
      %v734 = vpack.c.bf16 %v703, %v702
      %v735 = vpack.c.bf16 %v705, %v704
      %v736 = vpack.c.bf16 %v707, %v706
      %v737 = vpack.c.bf16 %v709, %v708
      %v738 = vpack.c.bf16 %v711, %v710
      %v739 = vpack.c.bf16 %v713, %v712
      %v740 = vpack.c.bf16 %v715, %v714
      %v741 = vpack.c.bf16 %v717, %v716
      %v766 = vunpack.c.l.b16 %v718
      %v767 = vunpack.c.h.b16 %v718
      %v768 = vunpack.c.l.b16 %v719
      %v769 = vunpack.c.h.b16 %v719
      %v770 = vunpack.c.l.b16 %v720
      %v771 = vunpack.c.h.b16 %v720
      %v772 = vunpack.c.l.b16 %v721
      %v773 = vunpack.c.h.b16 %v721
      %v774 = vunpack.c.l.b16 %v722
      %v775 = vunpack.c.h.b16 %v722
      %v776 = vunpack.c.l.b16 %v723
      %v777 = vunpack.c.h.b16 %v723
      %v778 = vunpack.c.l.b16 %v724
      %v779 = vunpack.c.h.b16 %v724
      %v780 = vunpack.c.l.b16 %v725
      %v781 = vunpack.c.h.b16 %v725
      %v782 = vunpack.c.l.b16 %v726
      %v783 = vunpack.c.h.b16 %v726
      %v784 = vunpack.c.l.b16 %v727
      %v785 = vunpack.c.h.b16 %v727
      %v786 = vunpack.c.l.b16 %v728
      %v787 = vunpack.c.h.b16 %v728
      %v788 = vunpack.c.l.b16 %v729
      %v789 = vunpack.c.h.b16 %v729
      %v790 = vunpack.c.l.b16 %v730
      %v791 = vunpack.c.h.b16 %v730
      %v792 = vunpack.c.l.b16 %v731
      %v793 = vunpack.c.h.b16 %v731
      %v794 = vunpack.c.l.b16 %v732
      %v795 = vunpack.c.h.b16 %v732
      %v796 = vunpack.c.l.b16 %v733
      %v797 = vunpack.c.h.b16 %v733
      %v798 = vunpack.c.l.b16 %v734
      %v799 = vunpack.c.h.b16 %v734
      %v800 = vunpack.c.l.b16 %v735
      %v801 = vunpack.c.h.b16 %v735
      %v802 = vunpack.c.l.b16 %v736
      %v803 = vunpack.c.h.b16 %v736
      %v804 = vunpack.c.l.b16 %v737
      %v805 = vunpack.c.h.b16 %v737
      %v806 = vunpack.c.l.b16 %v738
      %v807 = vunpack.c.h.b16 %v738
      %v808 = vunpack.c.l.b16 %v739
      %v809 = vunpack.c.h.b16 %v739
      %v810 = vunpack.c.l.b16 %v740
      %v811 = vunpack.c.h.b16 %v740
      %v812 = vunpack.c.l.b16 %v741
      %v813 = vunpack.c.h.b16 %v741
      %v814 = vpack.c.b16 %v766, %v766
      %v815 = vpack.c.b16 %v767, %v767
      %v816 = vpack.c.b16 %v768, %v768
      %v817 = vpack.c.b16 %v769, %v769
      %v818 = vpack.c.b16 %v770, %v770
      %v819 = vpack.c.b16 %v771, %v771
      %v820 = vpack.c.b16 %v772, %v772
      %v821 = vpack.c.b16 %v773, %v773
      %v822 = vpack.c.b16 %v774, %v774
      %v823 = vpack.c.b16 %v775, %v775
      %v824 = vpack.c.b16 %v776, %v776
      %v825 = vpack.c.b16 %v777, %v777
      %v826 = vpack.c.b16 %v778, %v778
      %v827 = vpack.c.b16 %v779, %v779
      %v828 = vpack.c.b16 %v780, %v780
      %v829 = vpack.c.b16 %v781, %v781
      %v830 = vpack.c.b16 %v782, %v782
      %v831 = vpack.c.b16 %v783, %v783
      %v832 = vpack.c.b16 %v784, %v784
      %v833 = vpack.c.b16 %v785, %v785
      %v834 = vpack.c.b16 %v786, %v786
      %v835 = vpack.c.b16 %v787, %v787
      %v836 = vpack.c.b16 %v788, %v788
      %v837 = vpack.c.b16 %v789, %v789
      %v838 = vpack.c.b16 %v790, %v790
      %v839 = vpack.c.b16 %v791, %v791
      %v840 = vpack.c.b16 %v792, %v792
      %v841 = vpack.c.b16 %v793, %v793
      %v842 = vpack.c.b16 %v794, %v794
      %v843 = vpack.c.b16 %v795, %v795
      %v844 = vpack.c.b16 %v796, %v796
      %v845 = vpack.c.b16 %v797, %v797
      %v846 = vpack.c.b16 %v798, %v798
      %v847 = vpack.c.b16 %v799, %v799
      %v848 = vpack.c.b16 %v800, %v800
      %v849 = vpack.c.b16 %v801, %v801
      %v850 = vpack.c.b16 %v802, %v802
      %v851 = vpack.c.b16 %v803, %v803
      %v852 = vpack.c.b16 %v804, %v804
      %v853 = vpack.c.b16 %v805, %v805
      %v854 = vpack.c.b16 %v806, %v806
      %v855 = vpack.c.b16 %v807, %v807
      %v856 = vpack.c.b16 %v808, %v808
      %v857 = vpack.c.b16 %v809, %v809
      %v858 = vpack.c.b16 %v810, %v810
      %v859 = vpack.c.b16 %v811, %v811
      %v860 = vpack.c.b16 %v812, %v812
      %v861 = vpack.c.b16 %v813, %v813
      %910 = vst [vmem:[%s172] sm:$0xf] %v814
      %911 = vst [vmem:[%s172 + $0x4] sm:$0xf] %v815
      %912 = vst [vmem:[%s172 + $0x8] sm:$0xf] %v816
      %913 = vst [vmem:[%s172 + $0xc] sm:$0xf] %v817
      %914 = vst [vmem:[%s172 + $0x10] sm:$0xf] %v818
      %915 = vst [vmem:[%s172 + $0x14] sm:$0xf] %v819
      %916 = vst [vmem:[%s172 + $0x18] sm:$0xf] %v820
      %917 = vst [vmem:[%s172 + $0x1c] sm:$0xf] %v821
      %918 = vst [vmem:[%s172 + $0x20] sm:$0xf] %v822
      %919 = vst [vmem:[%s172 + $0x24] sm:$0xf] %v823
      %920 = vst [vmem:[%s172 + $0x28] sm:$0xf] %v824
      %921 = vst [vmem:[%s172 + $0x2c] sm:$0xf] %v825
      %922 = vst [vmem:[%s172 + $0x30] sm:$0xf] %v826
      %923 = vst [vmem:[%s172 + $0x34] sm:$0xf] %v827
      %924 = vst [vmem:[%s172 + $0x38] sm:$0xf] %v828
      %925 = vst [vmem:[%s172 + $0x3c] sm:$0xf] %v829
      %926 = vst [vmem:[%s172 + $0x40] sm:$0xf] %v830
      %927 = vst [vmem:[%s172 + $0x44] sm:$0xf] %v831
      %928 = vst [vmem:[%s172 + $0x48] sm:$0xf] %v832
      %929 = vst [vmem:[%s172 + $0x4c] sm:$0xf] %v833
      %930 = vst [vmem:[%s172 + $0x50] sm:$0xf] %v834
      %931 = vst [vmem:[%s172 + $0x54] sm:$0xf] %v835
      %932 = vst [vmem:[%s172 + $0x58] sm:$0xf] %v836
      %933 = vst [vmem:[%s172 + $0x5c] sm:$0xf] %v837
      %934 = vst [vmem:[%s172 + $0x60] sm:$0xf] %v838
      %935 = vst [vmem:[%s172 + $0x64] sm:$0xf] %v839
      %936 = vst [vmem:[%s172 + $0x68] sm:$0xf] %v840
      %937 = vst [vmem:[%s172 + $0x6c] sm:$0xf] %v841
      %938 = vst [vmem:[%s172 + $0x70] sm:$0xf] %v842
      %939 = vst [vmem:[%s172 + $0x74] sm:$0xf] %v843
      %940 = vst [vmem:[%s172 + $0x78] sm:$0xf] %v844
      %941 = vst [vmem:[%s172 + $0x7c] sm:$0xf] %v845
      %942 = vst [vmem:[%s172 + $0x80] sm:$0xf] %v846
      %943 = vst [vmem:[%s172 + $0x84] sm:$0xf] %v847
      %944 = vst [vmem:[%s172 + $0x88] sm:$0xf] %v848
      %945 = vst [vmem:[%s172 + $0x8c] sm:$0xf] %v849
      %946 = vst [vmem:[%s172 + $0x90] sm:$0xf] %v850
      %947 = vst [vmem:[%s172 + $0x94] sm:$0xf] %v851
      %948 = vst [vmem:[%s172 + $0x98] sm:$0xf] %v852
      %949 = vst [vmem:[%s172 + $0x9c] sm:$0xf] %v853
      %950 = vst [vmem:[%s172 + $0xa0] sm:$0xf] %v854
      %951 = vst [vmem:[%s172 + $0xa4] sm:$0xf] %v855
      %952 = vst [vmem:[%s172 + $0xa8] sm:$0xf] %v856
      %953 = vst [vmem:[%s172 + $0xac] sm:$0xf] %v857
      %954 = vst [vmem:[%s172 + $0xb0] sm:$0xf] %v858
      %955 = vst [vmem:[%s172 + $0xb4] sm:$0xf] %v859
      %956 = vst [vmem:[%s172 + $0xb8] sm:$0xf] %v860
      %957 = vst [vmem:[%s172 + $0xbc] sm:$0xf] %v861
      %s958 = smul.u32 48, %s14
      %p959 = scmp.lt.s32.totalorder %s958, 143
      %s960 = scalar_select %p959, %s958, 143
      %s961 = smul.addr %s960, 4
      %s962 = scalar_lea.vmem %s3, %s961
      // Predicated region
      $region33: #{torch_model_forward.5} parent=31 // pred_check
        %p963 = pneg %p100
      $region34: #{torch_model_forward.5} parent=31 // pred_check_branch
        %965 = sbr.rel (%p963) target = $region36
      $region35: #{torch_model_forward.5} parent=31 // pred_region
        %s966 = smul.u32 48, %s14
      $region36: #{torch_model_forward.5} parent=31 // pred_fallthru
        _
    $region32: #{torch_model_forward.5} parent=5 // pred_fallthru
      _
    %p967 = scmp.le.s32.totalorder 2, %s9
    // Predicated region
    $region37: #{torch_model_forward.5} parent=5 // pred_check
      %p968 = pneg %p967
    $region38: #{torch_model_forward.5} parent=5 // pred_check_branch
      %970 = sbr.rel (%p968) target = $region40
    $region39: #{torch_model_forward.5} parent=5 // pred_region
      %s971 = ssub.s32 %s9, 2
      // Predicated region
      $region41: #{torch_model_forward.5} parent=39 // pred_check
        %p972 = pneg %p106
      $region42: #{torch_model_forward.5} parent=39 // pred_check_branch
        %974 = sbr.rel (%p972) target = $region44
      $region43: #{torch_model_forward.5} parent=39 // pred_region
        %s975 = smul.u32 48, %s15
        %p976 = scmp.lt.s32.totalorder %s975, 143
        %s977 = scalar_select %p976, %s975, 143
        %s978 = smul.addr %s977, 4
        %s979 = scalar_lea.vmem %s3, %s978
      $region44: #{torch_model_forward.5} parent=39 // pred_fallthru
        _
    $region40: #{torch_model_forward.5} parent=5 // pred_fallthru
      _
  $region6: #{torch_model_forward.5} parent=0 // loop_footer
    %s13 = sadd.s32 1, %s9
  $region7: #{torch_model_forward.5} parent=0 // loop_footer_branch
    %8 = sbr.rel target = $region3
  $region8: #{torch_model_forward.5} parent=0 // loop_exit
    _

// kernel: torch_model_forward.7
$region0: #{torch_model_forward.7}
  #allocation0 [shape = 'u32[]', space=smem, size = 0x4, offset = 0x4, fixed_abs, tag = 'smem constant byte address 0x4 - core index']
  #allocation1 [shape = 'u32[144,128]{1,0:T(1,128)}', space=vmem, size = 0x12000, scoped, tag = 'internal scratch']
  %s0 = inlined_call_operand.vmem [shape: bf16[128,800], index: 0, kind: input, shape index: {}]
  %s1 = inlined_call_operand.vmem [shape: bf16[800,128], index: 1, kind: input, shape index: {}]
  %s2 = inlined_call_operand.vmem [shape: f32[1,128], index: 2, kind: input, shape index: {}]
  %s3 = inlined_call_operand.vmem [shape: bf16[128,128], index: 3, kind: output, shape index: {}]
  %s4 = sld [smem:[#allocation0]]
  $region45: #{torch_model_forward.7} parent=0
    _
  %s6 = ssub.s32 1, %s4
  %s7 = scalar_select 0, %s6, %s4
  loop: start=0, step=1, limit=4
  $region2: #{torch_model_forward.7} parent=0 // loop_pre_header
    _
  $region3: #{torch_model_forward.7} parent=0 // loop_header
    %s9 = sphi 0, %s13
    %p10 = scmp.ge.s32.totalorder %s9, 4
    %s19 = sphi 0, %s21
    %s22 = sphi 0, %s19
    %s23 = sphi 0, %s22
    %s39 = sphi 0, %s23
    %s43 = sphi 0, %s43
    %s45 = sphi 0, %s43
    %s46 = sphi 0, %s45
    %s60 = sphi 0, %s46
    %s64 = sphi 0, %s64
    %s66 = sphi 0, %s64
    %s67 = sphi 0, %s66
    %s81 = sphi 0, %s67
    %s87 = sphi 0, %s89
    %s90 = sphi 0, %s87
    %s91 = sphi 0, %s90
    %s107 = sphi 0, %s91
  $region4: #{torch_model_forward.7} parent=0 // loop_header_branch
    %12 = sbr.rel (%p10) target = $region8
  $region5: #{torch_model_forward.7} parent=0 // loop_body
    %s14 = ssub.s32 %s9, 1
    %s15 = ssub.s32 %s9, 2
    %s16 = sadd.s32 %s9, 1
    %s17 = ssub.s32 %s9, %s16
    %p18 = scmp.eq.s32.totalorder %s17, 0
    %s20 = sadd.s32 %s19, 1
    %s21 = scalar_select %p18, %s19, %s20
    %p24 = pneg %p18
    %p25 = scmp.eq.s32.totalorder %s9, 1
    %p26 = por %p24, %p25
    %p27 = scmp.ne.s32.totalorder %s19, %s22
    %p28 = scmp.eq.s32.totalorder %s9, 0
    %p29 = por %p27, %p28
    %p30 = scmp.ne.s32.totalorder %s19, %s22
    %p31 = scmp.eq.s32.totalorder %s14, 1
    %p32 = por %p30, %p31
    %p33 = scmp.ne.s32.totalorder %s22, %s23
    %p34 = scmp.eq.s32.totalorder %s14, 0
    %p35 = por %p33, %p34
    %p36 = scmp.ne.s32.totalorder %s22, %s23
    %p37 = scmp.eq.s32.totalorder %s15, 1
    %p38 = por %p36, %p37
    %p40 = scmp.ne.s32.totalorder %s23, %s39
    %p41 = scmp.eq.s32.totalorder %s15, 0
    %p42 = por %p40, %p41
    %s44 = sadd.s32 %s43, 1
    %p47 = scmp.eq.s32.totalorder %s9, 1
    %p48 = scmp.ne.s32.totalorder %s43, %s45
    %p49 = scmp.eq.s32.totalorder %s9, 0
    %p50 = por %p48, %p49
    %p51 = scmp.ne.s32.totalorder %s43, %s45
    %p52 = scmp.eq.s32.totalorder %s14, 1
    %p53 = por %p51, %p52
    %p54 = scmp.ne.s32.totalorder %s45, %s46
    %p55 = scmp.eq.s32.totalorder %s14, 0
    %p56 = por %p54, %p55
    %p57 = scmp.ne.s32.totalorder %s45, %s46
    %p58 = scmp.eq.s32.totalorder %s15, 1
    %p59 = por %p57, %p58
    %p61 = scmp.ne.s32.totalorder %s46, %s60
    %p62 = scmp.eq.s32.totalorder %s15, 0
    %p63 = por %p61, %p62
    %s65 = sadd.s32 %s64, 1
    %p68 = scmp.eq.s32.totalorder %s9, 1
    %p69 = scmp.ne.s32.totalorder %s64, %s66
    %p70 = scmp.eq.s32.totalorder %s9, 0
    %p71 = por %p69, %p70
    %p72 = scmp.ne.s32.totalorder %s64, %s66
    %p73 = scmp.eq.s32.totalorder %s14, 1
    %p74 = por %p72, %p73
    %p75 = scmp.ne.s32.totalorder %s66, %s67
    %p76 = scmp.eq.s32.totalorder %s14, 0
    %p77 = por %p75, %p76
    %p78 = scmp.ne.s32.totalorder %s66, %s67
    %p79 = scmp.eq.s32.totalorder %s15, 1
    %p80 = por %p78, %p79
    %p82 = scmp.ne.s32.totalorder %s67, %s81
    %p83 = scmp.eq.s32.totalorder %s15, 0
    %p84 = por %p82, %p83
    %s85 = ssub.s32 %s9, %s16
    %p86 = scmp.eq.s32.totalorder %s85, 0
    %s88 = sadd.s32 %s87, 1
    %s89 = scalar_select %p86, %s87, %s88
    %p92 = pneg %p86
    %p93 = scmp.eq.s32.totalorder %s9, 1
    %p94 = por %p92, %p93
    %p95 = scmp.ne.s32.totalorder %s87, %s90
    %p96 = scmp.eq.s32.totalorder %s9, 0
    %p97 = por %p95, %p96
    %p98 = scmp.ne.s32.totalorder %s87, %s90
    %p99 = scmp.eq.s32.totalorder %s14, 1
    %p100 = por %p98, %p99
    %p101 = scmp.ne.s32.totalorder %s90, %s91
    %p102 = scmp.eq.s32.totalorder %s14, 0
    %p103 = por %p101, %p102
    %p104 = scmp.ne.s32.totalorder %s90, %s91
    %p105 = scmp.eq.s32.totalorder %s15, 1
    %p106 = por %p104, %p105
    %p108 = scmp.ne.s32.totalorder %s91, %s107
    %p109 = scmp.eq.s32.totalorder %s15, 0
    %p110 = por %p108, %p109
    %p111 = scmp.le.s32.totalorder 1, %s9
    %p112 = scmp.lt.s32.totalorder %s9, 3
    %p113 = pnand %p111, %p112
    %p114 = pneg %p113
    // Predicated region
    $region9: #{torch_model_forward.7} parent=5 // pred_check
      _
    $region10: #{torch_model_forward.7} parent=5 // pred_check_branch
      %116 = sbr.rel (%p113) target = $region12
    $region11: #{torch_model_forward.7} parent=5 // pred_region
      %s117 = ssub.s32 %s9, 1
      // Predicated region
      $region13: #{torch_model_forward.7} parent=11 // pred_check
        %p118 = pneg %p56
      $region14: #{torch_model_forward.7} parent=11 // pred_check_branch
        %120 = sbr.rel (%p118) target = $region16
      $region15: #{torch_model_forward.7} parent=11 // pred_region
        _
      $region16: #{torch_model_forward.7} parent=11 // pred_fallthru
        _
      // Predicated region
      $region17: #{torch_model_forward.7} parent=11 // pred_check
        %p121 = pneg %p77
      $region18: #{torch_model_forward.7} parent=11 // pred_check_branch
        %123 = sbr.rel (%p121) target = $region20
      $region19: #{torch_model_forward.7} parent=11 // pred_region
        _
      $region20: #{torch_model_forward.7} parent=11 // pred_fallthru
        _
    $region12: #{torch_model_forward.7} parent=5 // pred_fallthru
      _
    %p124 = scmp.lt.s32.totalorder %s9, 2
    // Predicated region
    $region21: #{torch_model_forward.7} parent=5 // pred_check
      %p125 = pneg %p124
    $region22: #{torch_model_forward.7} parent=5 // pred_check_branch
      %127 = sbr.rel (%p125) target = $region24
    $region23: #{torch_model_forward.7} parent=5 // pred_region
      // Predicated region
      $region25: #{torch_model_forward.7} parent=23 // pred_check
        %p128 = pneg %p29
      $region26: #{torch_model_forward.7} parent=23 // pred_check_branch
        %130 = sbr.rel (%p128) target = $region28
      $region27: #{torch_model_forward.7} parent=23 // pred_region
        %s131 = smul.u32 8, %s9
        %p132 = scmp.lt.s32.totalorder %s131, 15
        %s133 = scalar_select %p132, %s131, 15
        %s134 = smul.addr %s133, 7
        %s135 = smul.addr %s134, 4
        %s136 = scalar_lea.vmem %s0, %s135
        %s137 = smul.u32 8, %s9
      $region28: #{torch_model_forward.7} parent=23 // pred_fallthru
        _
    $region24: #{torch_model_forward.7} parent=5 // pred_fallthru
      _
    %p138 = scmp.le.s32.totalorder 1, %s9
    %p139 = scmp.lt.s32.totalorder %s9, 3
    %p140 = pnand %p138, %p139
    %p141 = pneg %p140
    // Predicated region
    $region29: #{torch_model_forward.7} parent=5 // pred_check
      _
    $region30: #{torch_model_forward.7} parent=5 // pred_check_branch
      %143 = sbr.rel (%p140) target = $region32
    $region31: #{torch_model_forward.7} parent=5 // pred_region
      %s144 = ssub.s32 %s9, 1
      %s145 = smul.u32 8, %s14
      %p146 = scmp.lt.s32.totalorder %s145, 15
      %s147 = scalar_select %p146, %s145, 15
      %s148 = smul.addr %s147, 7
      %s149 = smul.addr %s148, 4
      %s150 = scalar_lea.vmem %s0, %s149
      %p151 = pneg %p35
      %p152 = pneg %p32
      %p153 = pneg %p56
      %p154 = pneg %p53
      %p155 = pneg %p77
      %p156 = pneg %p74
      %p157 = pneg %p103
      %p158 = pneg %p100
      %s159 = smul.u32 8, %s14
      %p160 = scmp.lt.s32.totalorder %s159, 15
      %s161 = scalar_select %p160, %s159, 15
      %s162 = smul.addr %s161, 4
      %s163 = scalar_lea.vmem %s3, %s162
      %s164 = smul.u32 8, %s14
      %p165 = scmp.lt.s32.totalorder %s164, 15
      %s166 = scalar_select %p165, %s164, 15
      %s167 = smul.addr %s166, 7
      %s168 = smul.addr %s167, 4
      %s169 = scalar_lea.vmem %s0, %s168
      %s170 = smul.u32 8, %s14
      %s171 = smul.u32 8, %s14
      %p172 = scmp.lt.s32.totalorder %s171, 15
      %s173 = scalar_select %p172, %s171, 15
      %s174 = smul.addr %s173, 4
      %s175 = scalar_lea.vmem %s3, %s174
      %s176 = smul.u32 8, %s14
      %v178 = vld [vmem:[%s169] sm:$0xff]
      %v179 = vld [vmem:[%s169 + $0x8] sm:$0xff]
      %v180 = vld [vmem:[%s169 + $0x10] sm:$0xff]
      %v181 = vld [vmem:[%s169 + $0x18] sm:$0xf]
      %v182 = vld [vmem:[%s169 + $0x1c] sm:$0xff]
      %v183 = vld [vmem:[%s169 + $0x24] sm:$0xff]
      %v184 = vld [vmem:[%s169 + $0x2c] sm:$0xff]
      %v185 = vld [vmem:[%s169 + $0x34] sm:$0xf]
      %v186 = vld [vmem:[%s169 + $0x38] sm:$0xff]
      %v187 = vld [vmem:[%s169 + $0x40] sm:$0xff]
      %v188 = vld [vmem:[%s169 + $0x48] sm:$0xff]
      %v189 = vld [vmem:[%s169 + $0x50] sm:$0xf]
      %v190 = vld [vmem:[%s169 + $0x54] sm:$0xff]
      %v191 = vld [vmem:[%s169 + $0x5c] sm:$0xff]
      %v192 = vld [vmem:[%s169 + $0x64] sm:$0xff]
      %v193 = vld [vmem:[%s169 + $0x6c] sm:$0xf]
      %v194 = vld [vmem:[%s169 + $0x70] sm:$0xff]
      %v195 = vld [vmem:[%s169 + $0x78] sm:$0xff]
      %v196 = vld [vmem:[%s169 + $0x80] sm:$0xff]
      %v197 = vld [vmem:[%s169 + $0x88] sm:$0xf]
      %v198 = vld [vmem:[%s169 + $0x8c] sm:$0xff]
      %v199 = vld [vmem:[%s169 + $0x94] sm:$0xff]
      %v200 = vld [vmem:[%s169 + $0x9c] sm:$0xff]
      %v201 = vld [vmem:[%s169 + $0xa4] sm:$0xf]
      %v202 = vld [vmem:[%s169 + $0xa8] sm:$0xff]
      %v203 = vld [vmem:[%s169 + $0xb0] sm:$0xff]
      %v204 = vld [vmem:[%s169 + $0xb8] sm:$0xff]
      %v205 = vld [vmem:[%s169 + $0xc0] sm:$0xf]
      %v206 = vld [vmem:[%s169 + $0xc4] sm:$0xff]
      %v207 = vld [vmem:[%s169 + $0xcc] sm:$0xff]
      %v208 = vld [vmem:[%s169 + $0xd4] sm:$0xff]
      %v209 = vld [vmem:[%s169 + $0xdc] sm:$0xf]
      %v210 = vld [vmem:[%s1] sm:$0xf]
      %v211 = vld [vmem:[%s1 + $0x4] sm:$0xf]
      %v212 = vld [vmem:[%s1 + $0x8] sm:$0xf]
      %v213 = vld [vmem:[%s1 + $0xc] sm:$0xf]
      %v214 = vld [vmem:[%s1 + $0x10] sm:$0xf]
      %v215 = vld [vmem:[%s1 + $0x14] sm:$0xf]
      %v216 = vld [vmem:[%s1 + $0x18] sm:$0xf]
      %v217 = vld [vmem:[%s1 + $0x1c] sm:$0xf]
      %v218 = vld [vmem:[%s1 + $0x20] sm:$0xf]
      %v219 = vld [vmem:[%s1 + $0x24] sm:$0xf]
      %v220 = vld [vmem:[%s1 + $0x28] sm:$0xf]
      %v221 = vld [vmem:[%s1 + $0x2c] sm:$0xf]
      %v222 = vld [vmem:[%s1 + $0x30] sm:$0xf]
      %v223 = vld [vmem:[%s1 + $0x34] sm:$0xf]
      %v224 = vld [vmem:[%s1 + $0x38] sm:$0xf]
      %v225 = vld [vmem:[%s1 + $0x3c] sm:$0xf]
      %v226 = vld [vmem:[%s1 + $0x40] sm:$0xf]
      %v227 = vld [vmem:[%s1 + $0x44] sm:$0xf]
      %v228 = vld [vmem:[%s1 + $0x48] sm:$0xf]
      %v229 = vld [vmem:[%s1 + $0x4c] sm:$0xf]
      %v230 = vld [vmem:[%s1 + $0x50] sm:$0xf]
      %v231 = vld [vmem:[%s1 + $0x54] sm:$0xf]
      %v232 = vld [vmem:[%s1 + $0x58] sm:$0xf]
      %v233 = vld [vmem:[%s1 + $0x5c] sm:$0xf]
      %v234 = vld [vmem:[%s1 + $0x60] sm:$0xf]
      %v235 = vld [vmem:[%s1 + $0x64] sm:$0xf]
      %v236 = vld [vmem:[%s1 + $0x68] sm:$0xf]
      %v237 = vld [vmem:[%s1 + $0x6c] sm:$0xf]
      %v238 = vld [vmem:[%s1 + $0x70] sm:$0xf]
      %v239 = vld [vmem:[%s1 + $0x74] sm:$0xf]
      %v240 = vld [vmem:[%s1 + $0x78] sm:$0xf]
      %v241 = vld [vmem:[%s1 + $0x7c] sm:$0xf]
      %v242 = vld [vmem:[%s1 + $0x80] sm:$0xf]
      %v243 = vld [vmem:[%s1 + $0x84] sm:$0xf]
      %v244 = vld [vmem:[%s1 + $0x88] sm:$0xf]
      %v245 = vld [vmem:[%s1 + $0x8c] sm:$0xf]
      %v246 = vld [vmem:[%s1 + $0x90] sm:$0xf]
      %v247 = vld [vmem:[%s1 + $0x94] sm:$0xf]
      %v248 = vld [vmem:[%s1 + $0x98] sm:$0xf]
      %v249 = vld [vmem:[%s1 + $0x9c] sm:$0xf]
      %v250 = vld [vmem:[%s1 + $0xa0] sm:$0xf]
      %v251 = vld [vmem:[%s1 + $0xa4] sm:$0xf]
      %v252 = vld [vmem:[%s1 + $0xa8] sm:$0xf]
      %v253 = vld [vmem:[%s1 + $0xac] sm:$0xf]
      %v254 = vld [vmem:[%s1 + $0xb0] sm:$0xf]
      %v255 = vld [vmem:[%s1 + $0xb4] sm:$0xf]
      %v256 = vld [vmem:[%s1 + $0xb8] sm:$0xf]
      %v257 = vld [vmem:[%s1 + $0xbc] sm:$0xf]
      %v258 = vld [vmem:[%s1 + $0xc0] sm:$0xf]
      %v259 = vld [vmem:[%s1 + $0xc4] sm:$0xf]
      %v260 = vld [vmem:[%s1 + $0xc8] sm:$0xf]
      %v261 = vld [vmem:[%s1 + $0xcc] sm:$0xf]
      %v262 = vld [vmem:[%s1 + $0xd0] sm:$0xf]
      %v263 = vld [vmem:[%s1 + $0xd4] sm:$0xf]
      %v264 = vld [vmem:[%s1 + $0xd8] sm:$0xf]
      %v265 = vld [vmem:[%s1 + $0xdc] sm:$0xf]
      %v266 = vld [vmem:[%s1 + $0xe0] sm:$0xf]
      %v267 = vld [vmem:[%s1 + $0xe4] sm:$0xf]
      %v268 = vld [vmem:[%s1 + $0xe8] sm:$0xf]
      %v269 = vld [vmem:[%s1 + $0xec] sm:$0xf]
      %v270 = vld [vmem:[%s1 + $0xf0] sm:$0xf]
      %v271 = vld [vmem:[%s1 + $0xf4] sm:$0xf]
      %v272 = vld [vmem:[%s1 + $0xf8] sm:$0xf]
      %v273 = vld [vmem:[%s1 + $0xfc] sm:$0xf]
      %v274 = vld [vmem:[%s1 + $0x100] sm:$0xf]
      %v275 = vld [vmem:[%s1 + $0x104] sm:$0xf]
      %v276 = vld [vmem:[%s1 + $0x108] sm:$0xf]
      %v277 = vld [vmem:[%s1 + $0x10c] sm:$0xf]
      %v278 = vld [vmem:[%s1 + $0x110] sm:$0xf]
      %v279 = vld [vmem:[%s1 + $0x114] sm:$0xf]
      %v280 = vld [vmem:[%s1 + $0x118] sm:$0xf]
      %v281 = vld [vmem:[%s1 + $0x11c] sm:$0xf]
      %v282 = vld [vmem:[%s1 + $0x120] sm:$0xf]
      %v283 = vld [vmem:[%s1 + $0x124] sm:$0xf]
      %v284 = vld [vmem:[%s1 + $0x128] sm:$0xf]
      %v285 = vld [vmem:[%s1 + $0x12c] sm:$0xf]
      %v286 = vld [vmem:[%s1 + $0x130] sm:$0xf]
      %v287 = vld [vmem:[%s1 + $0x134] sm:$0xf]
      %v288 = vld [vmem:[%s1 + $0x138] sm:$0xf]
      %v289 = vld [vmem:[%s1 + $0x13c] sm:$0xf]
      %v290 = vld [vmem:[%s1 + $0x140] sm:$0xf]
      %v291 = vld [vmem:[%s1 + $0x144] sm:$0xf]
      %v292 = vld [vmem:[%s1 + $0x148] sm:$0xf]
      %v293 = vld [vmem:[%s1 + $0x14c] sm:$0xf]
      %v294 = vld [vmem:[%s1 + $0x150] sm:$0xf]
      %v295 = vld [vmem:[%s1 + $0x154] sm:$0xf]
      %v296 = vld [vmem:[%s1 + $0x158] sm:$0xf]
      %v297 = vld [vmem:[%s1 + $0x15c] sm:$0xf]
      %v298 = vld [vmem:[%s1 + $0x160] sm:$0xf]
      %v299 = vld [vmem:[%s1 + $0x164] sm:$0xf]
      %v300 = vld [vmem:[%s1 + $0x168] sm:$0xf]
      %v301 = vld [vmem:[%s1 + $0x16c] sm:$0xf]
      %v302 = vld [vmem:[%s1 + $0x170] sm:$0xf]
      %v303 = vld [vmem:[%s1 + $0x174] sm:$0xf]
      %v304 = vld [vmem:[%s1 + $0x178] sm:$0xf]
      %v305 = vld [vmem:[%s1 + $0x17c] sm:$0xf]
      %v306 = vld [vmem:[%s1 + $0x180] sm:$0xf]
      %v307 = vld [vmem:[%s1 + $0x184] sm:$0xf]
      %v308 = vld [vmem:[%s1 + $0x188] sm:$0xf]
      %v309 = vld [vmem:[%s1 + $0x18c] sm:$0xf]
      %v310 = vld [vmem:[%s2] sm:$0x1]
      %v312 = vlaneseq
      %v313 = vshrl.u32 %v312, 7
      %v314 = vsub.s32 0, %v313
      %v315 = vrot.slane %v310, %v314
      %v349 = vunpack.c.l.b16 %v178
      %v350 = vunpack.c.h.b16 %v178
      %v351 = vunpack.c.l.b16 %v179
      %v352 = vunpack.c.h.b16 %v179
      %v353 = vunpack.c.l.b16 %v180
      %v354 = vunpack.c.h.b16 %v180
      %v355 = vunpack.c.l.b16 %v181
      %v356 = vunpack.c.l.b16 %v182
      %v357 = vunpack.c.h.b16 %v182
      %v358 = vunpack.c.l.b16 %v183
      %v359 = vunpack.c.h.b16 %v183
      %v360 = vunpack.c.l.b16 %v184
      %v361 = vunpack.c.h.b16 %v184
      %v362 = vunpack.c.l.b16 %v185
      %v363 = vunpack.c.l.b16 %v186
      %v364 = vunpack.c.h.b16 %v186
      %v365 = vunpack.c.l.b16 %v187
      %v366 = vunpack.c.h.b16 %v187
      %v367 = vunpack.c.l.b16 %v188
      %v368 = vunpack.c.h.b16 %v188
      %v369 = vunpack.c.l.b16 %v189
      %v370 = vunpack.c.l.b16 %v190
      %v371 = vunpack.c.h.b16 %v190
      %v372 = vunpack.c.l.b16 %v191
      %v373 = vunpack.c.h.b16 %v191
      %v374 = vunpack.c.l.b16 %v192
      %v375 = vunpack.c.h.b16 %v192
      %v376 = vunpack.c.l.b16 %v193
      %v377 = vunpack.c.l.b16 %v194
      %v378 = vunpack.c.h.b16 %v194
      %v379 = vunpack.c.l.b16 %v195
      %v380 = vunpack.c.h.b16 %v195
      %v381 = vunpack.c.l.b16 %v196
      %v382 = vunpack.c.h.b16 %v196
      %v383 = vunpack.c.l.b16 %v197
      %v384 = vunpack.c.l.b16 %v198
      %v385 = vunpack.c.h.b16 %v198
      %v386 = vunpack.c.l.b16 %v199
      %v387 = vunpack.c.h.b16 %v199
      %v388 = vunpack.c.l.b16 %v200
      %v389 = vunpack.c.h.b16 %v200
      %v390 = vunpack.c.l.b16 %v201
      %v391 = vunpack.c.l.b16 %v202
      %v392 = vunpack.c.h.b16 %v202
      %v393 = vunpack.c.l.b16 %v203
      %v394 = vunpack.c.h.b16 %v203
      %v395 = vunpack.c.l.b16 %v204
      %v396 = vunpack.c.h.b16 %v204
      %v397 = vunpack.c.l.b16 %v205
      %v398 = vunpack.c.l.b16 %v206
      %v399 = vunpack.c.h.b16 %v206
      %v400 = vunpack.c.l.b16 %v207
      %v401 = vunpack.c.h.b16 %v207
      %v402 = vunpack.c.l.b16 %v208
      %v403 = vunpack.c.h.b16 %v208
      %v404 = vunpack.c.l.b16 %v209
      %v405 = vpack.c.b16 %v356, %v349
      %v406 = vpack.c.b16 %v357, %v350
      %v407 = vpack.c.b16 %v358, %v351
      %v408 = vpack.c.b16 %v359, %v352
      %v409 = vpack.c.b16 %v360, %v353
      %v410 = vpack.c.b16 %v361, %v354
      %v411 = vpack.c.b16 %v362, %v355
      %v412 = vpack.c.b16 %v370, %v363
      %v413 = vpack.c.b16 %v371, %v364
      %v414 = vpack.c.b16 %v372, %v365
      %v415 = vpack.c.b16 %v373, %v366
      %v416 = vpack.c.b16 %v374, %v367
      %v417 = vpack.c.b16 %v375, %v368
      %v418 = vpack.c.b16 %v376, %v369
      %v419 = vpack.c.b16 %v384, %v377
      %v420 = vpack.c.b16 %v385, %v378
      %v421 = vpack.c.b16 %v386, %v379
      %v422 = vpack.c.b16 %v387, %v380
      %v423 = vpack.c.b16 %v388, %v381
      %v424 = vpack.c.b16 %v389, %v382
      %v425 = vpack.c.b16 %v390, %v383
      %v426 = vpack.c.b16 %v398, %v391
      %v427 = vpack.c.b16 %v399, %v392
      %v428 = vpack.c.b16 %v400, %v393
      %v429 = vpack.c.b16 %v401, %v394
      %v430 = vpack.c.b16 %v402, %v395
      %v431 = vpack.c.b16 %v403, %v396
      %v432 = vpack.c.b16 %v404, %v397
      %v557 = vunpack.c.l.b16 %v210
      %v558 = vunpack.c.l.b16 %v211
      %v559 = vunpack.c.l.b16 %v212
      %v560 = vunpack.c.l.b16 %v213
      %v561 = vunpack.c.l.b16 %v214
      %v562 = vunpack.c.l.b16 %v215
      %v563 = vunpack.c.l.b16 %v216
      %v564 = vunpack.c.l.b16 %v217
      %v565 = vunpack.c.l.b16 %v218
      %v566 = vunpack.c.l.b16 %v219
      %v567 = vunpack.c.l.b16 %v220
      %v568 = vunpack.c.l.b16 %v221
      %v569 = vunpack.c.l.b16 %v222
      %v570 = vunpack.c.l.b16 %v223
      %v571 = vunpack.c.l.b16 %v224
      %v572 = vunpack.c.l.b16 %v225
      %v573 = vunpack.c.l.b16 %v226
      %v574 = vunpack.c.l.b16 %v227
      %v575 = vunpack.c.l.b16 %v228
      %v576 = vunpack.c.l.b16 %v229
      %v577 = vunpack.c.l.b16 %v230
      %v578 = vunpack.c.l.b16 %v231
      %v579 = vunpack.c.l.b16 %v232
      %v580 = vunpack.c.l.b16 %v233
      %v581 = vunpack.c.l.b16 %v234
      %v582 = vunpack.c.l.b16 %v235
      %v583 = vunpack.c.l.b16 %v236
      %v584 = vunpack.c.l.b16 %v237
      %v585 = vunpack.c.l.b16 %v238
      %v586 = vunpack.c.l.b16 %v239
      %v587 = vunpack.c.l.b16 %v240
      %v588 = vunpack.c.l.b16 %v241
      %v589 = vunpack.c.l.b16 %v242
      %v590 = vunpack.c.l.b16 %v243
      %v591 = vunpack.c.l.b16 %v244
      %v592 = vunpack.c.l.b16 %v245
      %v593 = vunpack.c.l.b16 %v246
      %v594 = vunpack.c.l.b16 %v247
      %v595 = vunpack.c.l.b16 %v248
      %v596 = vunpack.c.l.b16 %v249
      %v597 = vunpack.c.l.b16 %v250
      %v598 = vunpack.c.l.b16 %v251
      %v599 = vunpack.c.l.b16 %v252
      %v600 = vunpack.c.l.b16 %v253
      %v601 = vunpack.c.l.b16 %v254
      %v602 = vunpack.c.l.b16 %v255
      %v603 = vunpack.c.l.b16 %v256
      %v604 = vunpack.c.l.b16 %v257
      %v605 = vunpack.c.l.b16 %v258
      %v606 = vunpack.c.l.b16 %v259
      %v607 = vunpack.c.l.b16 %v260
      %v608 = vunpack.c.l.b16 %v261
      %v609 = vunpack.c.l.b16 %v262
      %v610 = vunpack.c.l.b16 %v263
      %v611 = vunpack.c.l.b16 %v264
      %v612 = vunpack.c.l.b16 %v265
      %v613 = vunpack.c.l.b16 %v266
      %v614 = vunpack.c.l.b16 %v267
      %v615 = vunpack.c.l.b16 %v268
      %v616 = vunpack.c.l.b16 %v269
      %v617 = vunpack.c.l.b16 %v270
      %v618 = vunpack.c.l.b16 %v271
      %v619 = vunpack.c.l.b16 %v272
      %v620 = vunpack.c.l.b16 %v273
      %v621 = vunpack.c.l.b16 %v274
      %v622 = vunpack.c.l.b16 %v275
      %v623 = vunpack.c.l.b16 %v276
      %v624 = vunpack.c.l.b16 %v277
      %v625 = vunpack.c.l.b16 %v278
      %v626 = vunpack.c.l.b16 %v279
      %v627 = vunpack.c.l.b16 %v280
      %v628 = vunpack.c.l.b16 %v281
      %v629 = vunpack.c.l.b16 %v282
      %v630 = vunpack.c.l.b16 %v283
      %v631 = vunpack.c.l.b16 %v284
      %v632 = vunpack.c.l.b16 %v285
      %v633 = vunpack.c.l.b16 %v286
      %v634 = vunpack.c.l.b16 %v287
      %v635 = vunpack.c.l.b16 %v288
      %v636 = vunpack.c.l.b16 %v289
      %v637 = vunpack.c.l.b16 %v290
      %v638 = vunpack.c.l.b16 %v291
      %v639 = vunpack.c.l.b16 %v292
      %v640 = vunpack.c.l.b16 %v293
      %v641 = vunpack.c.l.b16 %v294
      %v642 = vunpack.c.l.b16 %v295
      %v643 = vunpack.c.l.b16 %v296
      %v644 = vunpack.c.l.b16 %v297
      %v645 = vunpack.c.l.b16 %v298
      %v646 = vunpack.c.l.b16 %v299
      %v647 = vunpack.c.l.b16 %v300
      %v648 = vunpack.c.l.b16 %v301
      %v649 = vunpack.c.l.b16 %v302
      %v650 = vunpack.c.l.b16 %v303
      %v651 = vunpack.c.l.b16 %v304
      %v652 = vunpack.c.l.b16 %v305
      %v653 = vunpack.c.l.b16 %v306
      %v654 = vunpack.c.l.b16 %v307
      %v655 = vunpack.c.l.b16 %v308
      %v656 = vunpack.c.l.b16 %v309
      %v657 = vpack.c.b16 %v558, %v557
      %v658 = vpack.c.b16 %v560, %v559
      %v659 = vpack.c.b16 %v562, %v561
      %v660 = vpack.c.b16 %v564, %v563
      %v661 = vpack.c.b16 %v566, %v565
      %v662 = vpack.c.b16 %v568, %v567
      %v663 = vpack.c.b16 %v570, %v569
      %v664 = vpack.c.b16 %v572, %v571
      %v665 = vpack.c.b16 %v574, %v573
      %v666 = vpack.c.b16 %v576, %v575
      %v667 = vpack.c.b16 %v578, %v577
      %v668 = vpack.c.b16 %v580, %v579
      %v669 = vpack.c.b16 %v582, %v581
      %v670 = vpack.c.b16 %v584, %v583
      %v671 = vpack.c.b16 %v586, %v585
      %v672 = vpack.c.b16 %v588, %v587
      %v673 = vpack.c.b16 %v590, %v589
      %v674 = vpack.c.b16 %v592, %v591
      %v675 = vpack.c.b16 %v594, %v593
      %v676 = vpack.c.b16 %v596, %v595
      %v677 = vpack.c.b16 %v598, %v597
      %v678 = vpack.c.b16 %v600, %v599
      %v679 = vpack.c.b16 %v602, %v601
      %v680 = vpack.c.b16 %v604, %v603
      %v681 = vpack.c.b16 %v606, %v605
      %v682 = vpack.c.b16 %v608, %v607
      %v683 = vpack.c.b16 %v610, %v609
      %v684 = vpack.c.b16 %v612, %v611
      %v685 = vpack.c.b16 %v614, %v613
      %v686 = vpack.c.b16 %v616, %v615
      %v687 = vpack.c.b16 %v618, %v617
      %v688 = vpack.c.b16 %v620, %v619
      %v689 = vpack.c.b16 %v622, %v621
      %v690 = vpack.c.b16 %v624, %v623
      %v691 = vpack.c.b16 %v626, %v625
      %v692 = vpack.c.b16 %v628, %v627
      %v693 = vpack.c.b16 %v630, %v629
      %v694 = vpack.c.b16 %v632, %v631
      %v695 = vpack.c.b16 %v634, %v633
      %v696 = vpack.c.b16 %v636, %v635
      %v697 = vpack.c.b16 %v638, %v637
      %v698 = vpack.c.b16 %v640, %v639
      %v699 = vpack.c.b16 %v642, %v641
      %v700 = vpack.c.b16 %v644, %v643
      %v701 = vpack.c.b16 %v646, %v645
      %v702 = vpack.c.b16 %v648, %v647
      %v703 = vpack.c.b16 %v650, %v649
      %v704 = vpack.c.b16 %v652, %v651
      %v705 = vpack.c.b16 %v654, %v653
      %v706 = vpack.c.b16 %v656, %v655
      %vm757 = vcmask 261120
      %v759 = vsel %vm757, %v411, 0
      %v762 = vsel %vm757, %v418, 0
      %v765 = vsel %vm757, %v425, 0
      %v768 = vsel %vm757, %v432, 0
      %770 = vmatprep.subr.bf16.mxu0 0
      %771 = vmatpush1.bf16.msra.mxu0 %v664
      %772 = vmatprep.subr.bf16.mxu0 0
      %773 = vmatpush1.bf16.msra.mxu0 %v663
      %774 = vmatprep.subr.bf16.mxu0 0
      %775 = vmatpush1.bf16.msra.mxu0 %v662
      %776 = vmatprep.subr.bf16.mxu0 0
      %777 = vmatpush1.bf16.msra.mxu0 %v661
      %778 = vmatprep.subr.bf16.mxu0 0
      %779 = vmatpush1.bf16.msra.mxu0 %v660
      %780 = vmatprep.subr.bf16.mxu0 0
      %781 = vmatpush1.bf16.msra.mxu0 %v659
      %782 = vmatprep.subr.bf16.mxu0 0
      %783 = vmatpush1.bf16.msra.mxu0 %v658
      %784 = vmatprep.subr.bf16.mxu0 0
      %785 = vmatpush1.bf16.msra.mxu0 %v657
      %786 = vmatprep.subr.bf16.mxu0 0
      %787 = vmatpush2.bf16.msra.mxu0 %v672
      %788 = vmatprep.subr.bf16.mxu0 0
      %789 = vmatpush2.bf16.msra.mxu0 %v671
      %790 = vmatprep.subr.bf16.mxu0 0
      %791 = vmatpush2.bf16.msra.mxu0 %v670
      %792 = vmatprep.subr.bf16.mxu0 0
      %793 = vmatpush2.bf16.msra.mxu0 %v669
      %794 = vmatprep.subr.bf16.mxu0 0
      %795 = vmatpush2.bf16.msra.mxu0 %v668
      %796 = vmatprep.subr.bf16.mxu0 0
      %797 = vmatpush2.bf16.msra.mxu0 %v667
      %798 = vmatprep.subr.bf16.mxu0 0
      %799 = vmatpush2.bf16.msra.mxu0 %v666
      %800 = vmatprep.subr.bf16.mxu0 0
      %801 = vmatpush2.bf16.msra.mxu0 %v665
      %802 = vmatprep.mubr.bf16.mxu0 %v406
      %803 = vmatmul.mubr.bf16.gmra.mxu0 %v405
      %v804 = vpop.f32.mrf.mxu0
      %v805 = vadd.f32 %v315, %v804
      %v806 = vpop.f32.mrf.mxu0
      %v807 = vpop.f32.mrf.mxu0
      %v808 = vadd.f32 %v315, %v807
      %v809 = vpop.f32.mrf.mxu0
      %810 = vmatprep.mubr.bf16.mxu0 %v413
      %811 = vmatmul.mubr.bf16.gmra.mxu0 %v412
      %v812 = vpop.f32.mrf.mxu0
      %v813 = vadd.f32 %v315, %v812
      %v814 = vpop.f32.mrf.mxu0
      %v815 = vpop.f32.mrf.mxu0
      %v816 = vadd.f32 %v315, %v815
      %v817 = vpop.f32.mrf.mxu0
      %818 = vmatprep.mubr.bf16.mxu0 %v420
      %819 = vmatmul.mubr.bf16.gmra.mxu0 %v419
      %v820 = vpop.f32.mrf.mxu0
      %v821 = vadd.f32 %v315, %v820
      %v822 = vpop.f32.mrf.mxu0
      %v823 = vpop.f32.mrf.mxu0
      %v824 = vadd.f32 %v315, %v823
      %v825 = vpop.f32.mrf.mxu0
      %826 = vmatprep.mubr.bf16.mxu0 %v427
      %827 = vmatmul.mubr.bf16.gmra.mxu0 %v426
      %v828 = vpop.f32.mrf.mxu0
      %v829 = vadd.f32 %v315, %v828
      %v830 = vpop.f32.mrf.mxu0
      %v831 = vpop.f32.mrf.mxu0
      %v832 = vadd.f32 %v315, %v831
      %v833 = vpop.f32.mrf.mxu0
      %834 = vdwg.mxu0
      %835 = vmatprep.subr.bf16.mxu0 0
      %836 = vmatpush1.bf16.msra.mxu0 %v680
      %837 = vmatprep.subr.bf16.mxu0 0
      %838 = vmatpush1.bf16.msra.mxu0 %v679
      %839 = vmatprep.subr.bf16.mxu0 0
      %840 = vmatpush1.bf16.msra.mxu0 %v678
      %841 = vmatprep.subr.bf16.mxu0 0
      %842 = vmatpush1.bf16.msra.mxu0 %v677
      %843 = vmatprep.subr.bf16.mxu0 0
      %844 = vmatpush1.bf16.msra.mxu0 %v676
      %845 = vmatprep.subr.bf16.mxu0 0
      %846 = vmatpush1.bf16.msra.mxu0 %v675
      %847 = vmatprep.subr.bf16.mxu0 0
      %848 = vmatpush1.bf16.msra.mxu0 %v674
      %849 = vmatprep.subr.bf16.mxu0 0
      %850 = vmatpush1.bf16.msra.mxu0 %v673
      %851 = vmatprep.subr.bf16.mxu0 0
      %852 = vmatpush2.bf16.msra.mxu0 %v688
      %853 = vmatprep.subr.bf16.mxu0 0
      %854 = vmatpush2.bf16.msra.mxu0 %v687
      %855 = vmatprep.subr.bf16.mxu0 0
      %856 = vmatpush2.bf16.msra.mxu0 %v686
      %857 = vmatprep.subr.bf16.mxu0 0
      %858 = vmatpush2.bf16.msra.mxu0 %v685
      %859 = vmatprep.subr.bf16.mxu0 0
      %860 = vmatpush2.bf16.msra.mxu0 %v684
      %861 = vmatprep.subr.bf16.mxu0 0
      %862 = vmatpush2.bf16.msra.mxu0 %v683
      %863 = vmatprep.subr.bf16.mxu0 0
      %864 = vmatpush2.bf16.msra.mxu0 %v682
      %865 = vmatprep.subr.bf16.mxu0 0
      %866 = vmatpush2.bf16.msra.mxu0 %v681
      %867 = vmatprep.mubr.bf16.mxu0 %v408
      %868 = vmatmul.mubr.bf16.gmra.mxu0 %v407
      %v869 = vpop.f32.mrf.mxu0
      %v870 = vadd.f32 %v805, %v869
      %v871 = vpop.f32.mrf.mxu0
      %v872 = vpop.f32.mrf.mxu0
      %v873 = vadd.f32 %v808, %v872
      %v874 = vpop.f32.mrf.mxu0
      %875 = vmatprep.mubr.bf16.mxu0 %v415
      %876 = vmatmul.mubr.bf16.gmra.mxu0 %v414
      %v877 = vpop.f32.mrf.mxu0
      %v878 = vadd.f32 %v813, %v877
      %v879 = vpop.f32.mrf.mxu0
      %v880 = vpop.f32.mrf.mxu0
      %v881 = vadd.f32 %v816, %v880
      %v882 = vpop.f32.mrf.mxu0
      %883 = vmatprep.mubr.bf16.mxu0 %v422
      %884 = vmatmul.mubr.bf16.gmra.mxu0 %v421
      %v885 = vpop.f32.mrf.mxu0
      %v886 = vadd.f32 %v821, %v885
      %v887 = vpop.f32.mrf.mxu0
      %v888 = vpop.f32.mrf.mxu0
      %v889 = vadd.f32 %v824, %v888
      %v890 = vpop.f32.mrf.mxu0
      %891 = vmatprep.mubr.bf16.mxu0 %v429
      %892 = vmatmul.mubr.bf16.gmra.mxu0 %v428
      %v893 = vpop.f32.mrf.mxu0
      %v894 = vadd.f32 %v829, %v893
      %v895 = vpop.f32.mrf.mxu0
      %v896 = vpop.f32.mrf.mxu0
      %v897 = vadd.f32 %v832, %v896
      %v898 = vpop.f32.mrf.mxu0
      %899 = vdwg.mxu0
      %900 = vmatprep.subr.bf16.mxu0 0
      %901 = vmatpush1.bf16.msra.mxu0 %v696
      %902 = vmatprep.subr.bf16.mxu0 0
      %903 = vmatpush1.bf16.msra.mxu0 %v695
      %904 = vmatprep.subr.bf16.mxu0 0
      %905 = vmatpush1.bf16.msra.mxu0 %v694
      %906 = vmatprep.subr.bf16.mxu0 0
      %907 = vmatpush1.bf16.msra.mxu0 %v693
      %908 = vmatprep.subr.bf16.mxu0 0
      %909 = vmatpush1.bf16.msra.mxu0 %v692
      %910 = vmatprep.subr.bf16.mxu0 0
      %911 = vmatpush1.bf16.msra.mxu0 %v691
      %912 = vmatprep.subr.bf16.mxu0 0
      %913 = vmatpush1.bf16.msra.mxu0 %v690
      %914 = vmatprep.subr.bf16.mxu0 0
      %915 = vmatpush1.bf16.msra.mxu0 %v689
      %916 = vmatprep.subr.bf16.mxu0 0
      %917 = vmatpush2.bf16.msra.mxu0 %v704
      %918 = vmatprep.subr.bf16.mxu0 0
      %919 = vmatpush2.bf16.msra.mxu0 %v703
      %920 = vmatprep.subr.bf16.mxu0 0
      %921 = vmatpush2.bf16.msra.mxu0 %v702
      %922 = vmatprep.subr.bf16.mxu0 0
      %923 = vmatpush2.bf16.msra.mxu0 %v701
      %924 = vmatprep.subr.bf16.mxu0 0
      %925 = vmatpush2.bf16.msra.mxu0 %v700
      %926 = vmatprep.subr.bf16.mxu0 0
      %927 = vmatpush2.bf16.msra.mxu0 %v699
      %928 = vmatprep.subr.bf16.mxu0 0
      %929 = vmatpush2.bf16.msra.mxu0 %v698
      %930 = vmatprep.subr.bf16.mxu0 0
      %931 = vmatpush2.bf16.msra.mxu0 %v697
      %932 = vmatprep.mubr.bf16.mxu0 %v410
      %933 = vmatmul.mubr.bf16.gmra.mxu0 %v409
      %v934 = vpop.f32.mrf.mxu0
      %v935 = vadd.f32 %v870, %v934
      %v936 = vpop.f32.mrf.mxu0
      %v937 = vpop.f32.mrf.mxu0
      %v938 = vadd.f32 %v873, %v937
      %v939 = vpop.f32.mrf.mxu0
      %940 = vmatprep.mubr.bf16.mxu0 %v417
      %941 = vmatmul.mubr.bf16.gmra.mxu0 %v416
      %v942 = vpop.f32.mrf.mxu0
      %v943 = vadd.f32 %v878, %v942
      %v944 = vpop.f32.mrf.mxu0
      %v945 = vpop.f32.mrf.mxu0
      %v946 = vadd.f32 %v881, %v945
      %v947 = vpop.f32.mrf.mxu0
      %948 = vmatprep.mubr.bf16.mxu0 %v424
      %949 = vmatmul.mubr.bf16.gmra.mxu0 %v423
      %v950 = vpop.f32.mrf.mxu0
      %v951 = vadd.f32 %v886, %v950
      %v952 = vpop.f32.mrf.mxu0
      %v953 = vpop.f32.mrf.mxu0
      %v954 = vadd.f32 %v889, %v953
      %v955 = vpop.f32.mrf.mxu0
      %956 = vmatprep.mubr.bf16.mxu0 %v431
      %957 = vmatmul.mubr.bf16.gmra.mxu0 %v430
      %v958 = vpop.f32.mrf.mxu0
      %v959 = vadd.f32 %v894, %v958
      %v960 = vpop.f32.mrf.mxu0
      %v961 = vpop.f32.mrf.mxu0
      %v962 = vadd.f32 %v897, %v961
      %v963 = vpop.f32.mrf.mxu0
      %964 = vdwg.mxu0
      %965 = vmatprep.subr.bf16.mxu0 0
      %966 = vmatpush1.bf16.msra.mxu0 0
      %967 = vmatprep.subr.bf16.mxu0 0
      %968 = vmatpush1.bf16.msra.mxu0 0
      %969 = vmatprep.subr.bf16.mxu0 0
      %970 = vmatpush1.bf16.msra.mxu0 0
      %971 = vmatprep.subr.bf16.mxu0 0
      %972 = vmatpush1.bf16.msra.mxu0 0
      %973 = vmatprep.subr.bf16.mxu0 0
      %974 = vmatpush1.bf16.msra.mxu0 0
      %975 = vmatprep.subr.bf16.mxu0 0
      %976 = vmatpush1.bf16.msra.mxu0 0
      %977 = vmatprep.subr.bf16.mxu0 0
      %978 = vmatpush1.bf16.msra.mxu0 %v706
      %979 = vmatprep.subr.bf16.mxu0 0
      %980 = vmatpush1.bf16.msra.mxu0 %v705
      %981 = vmatprep.subr.bf16.mxu0 0
      %982 = vmatpush2.bf16.msra.mxu0 0
      %983 = vmatprep.subr.bf16.mxu0 0
      %984 = vmatpush2.bf16.msra.mxu0 0
      %985 = vmatprep.subr.bf16.mxu0 0
      %986 = vmatpush2.bf16.msra.mxu0 0
      %987 = vmatprep.subr.bf16.mxu0 0
      %988 = vmatpush2.bf16.msra.mxu0 0
      %989 = vmatprep.subr.bf16.mxu0 0
      %990 = vmatpush2.bf16.msra.mxu0 0
      %991 = vmatprep.subr.bf16.mxu0 0
      %992 = vmatpush2.bf16.msra.mxu0 0
      %993 = vmatprep.subr.bf16.mxu0 0
      %994 = vmatpush2.bf16.msra.mxu0 0
      %995 = vmatprep.subr.bf16.mxu0 0
      %996 = vmatpush2.bf16.msra.mxu0 0
      %997 = vmatprep.mubr.bf16.mxu0 0
      %998 = vmatmul.mubr.bf16.gmra.mxu0 %v759
      %v999 = vpop.f32.mrf.mxu0
      %v1000 = vadd.f32 %v935, %v999
      %v1001 = vpop.f32.mrf.mxu0
      %v1002 = vpop.f32.mrf.mxu0
      %v1003 = vadd.f32 %v938, %v1002
      %v1004 = vpop.f32.mrf.mxu0
      %1005 = vmatprep.mubr.bf16.mxu0 0
      %1006 = vmatmul.mubr.bf16.gmra.mxu0 %v762
      %v1007 = vpop.f32.mrf.mxu0
      %v1008 = vadd.f32 %v943, %v1007
      %v1009 = vpop.f32.mrf.mxu0
      %v1010 = vpop.f32.mrf.mxu0
      %v1011 = vadd.f32 %v946, %v1010
      %v1012 = vpop.f32.mrf.mxu0
      %1013 = vmatprep.mubr.bf16.mxu0 0
      %1014 = vmatmul.mubr.bf16.gmra.mxu0 %v765
      %v1015 = vpop.f32.mrf.mxu0
      %v1016 = vadd.f32 %v951, %v1015
      %v1017 = vpop.f32.mrf.mxu0
      %v1018 = vpop.f32.mrf.mxu0
      %v1019 = vadd.f32 %v954, %v1018
      %v1020 = vpop.f32.mrf.mxu0
      %1021 = vmatprep.mubr.bf16.mxu0 0
      %1022 = vmatmul.mubr.bf16.gmra.mxu0 %v768
      %v1023 = vpop.f32.mrf.mxu0
      %v1024 = vadd.f32 %v959, %v1023
      %v1025 = vpop.f32.mrf.mxu0
      %v1026 = vpop.f32.mrf.mxu0
      %v1027 = vadd.f32 %v962, %v1026
      %v1028 = vpop.f32.mrf.mxu0
      %1029 = vdwg.mxu0
      %v1030 = vmax.f32 %v1000, 0.0
      %v1031 = vmax.f32 %v1003, 0.0
      %v1032 = vmax.f32 %v1008, 0.0
      %v1033 = vmax.f32 %v1011, 0.0
      %v1034 = vmax.f32 %v1016, 0.0
      %v1035 = vmax.f32 %v1019, 0.0
      %v1036 = vmax.f32 %v1024, 0.0
      %v1037 = vmax.f32 %v1027, 0.0
      %v1038 = vmin.f32 %v1030, 6.0
      %v1039 = vmin.f32 %v1031, 6.0
      %v1040 = vmin.f32 %v1032, 6.0
      %v1041 = vmin.f32 %v1033, 6.0
      %v1042 = vmin.f32 %v1034, 6.0
      %v1043 = vmin.f32 %v1035, 6.0
      %v1044 = vmin.f32 %v1036, 6.0
      %v1045 = vmin.f32 %v1037, 6.0
      %v1046 = vpack.c.bf16 %v1039, %v1038
      %v1047 = vpack.c.bf16 %v1041, %v1040
      %v1048 = vpack.c.bf16 %v1043, %v1042
      %v1049 = vpack.c.bf16 %v1045, %v1044
      %v1054 = vunpack.c.l.b16 %v1046
      %v1055 = vunpack.c.h.b16 %v1046
      %v1056 = vunpack.c.l.b16 %v1047
      %v1057 = vunpack.c.h.b16 %v1047
      %v1058 = vunpack.c.l.b16 %v1048
      %v1059 = vunpack.c.h.b16 %v1048
      %v1060 = vunpack.c.l.b16 %v1049
      %v1061 = vunpack.c.h.b16 %v1049
      %v1062 = vpack.c.b16 %v1054, %v1054
      %v1063 = vpack.c.b16 %v1055, %v1055
      %v1064 = vpack.c.b16 %v1056, %v1056
      %v1065 = vpack.c.b16 %v1057, %v1057
      %v1066 = vpack.c.b16 %v1058, %v1058
      %v1067 = vpack.c.b16 %v1059, %v1059
      %v1068 = vpack.c.b16 %v1060, %v1060
      %v1069 = vpack.c.b16 %v1061, %v1061
      %1078 = vst [vmem:[%s175] sm:$0xf] %v1062
      %1079 = vst [vmem:[%s175 + $0x4] sm:$0xf] %v1063
      %1080 = vst [vmem:[%s175 + $0x8] sm:$0xf] %v1064
      %1081 = vst [vmem:[%s175 + $0xc] sm:$0xf] %v1065
      %1082 = vst [vmem:[%s175 + $0x10] sm:$0xf] %v1066
      %1083 = vst [vmem:[%s175 + $0x14] sm:$0xf] %v1067
      %1084 = vst [vmem:[%s175 + $0x18] sm:$0xf] %v1068
      %1085 = vst [vmem:[%s175 + $0x1c] sm:$0xf] %v1069
      %s1086 = smul.u32 8, %s14
      %p1087 = scmp.lt.s32.totalorder %s1086, 15
      %s1088 = scalar_select %p1087, %s1086, 15
      %s1089 = smul.addr %s1088, 4
      %s1090 = scalar_lea.vmem %s3, %s1089
      // Predicated region
      $region33: #{torch_model_forward.7} parent=31 // pred_check
        %p1091 = pneg %p100
      $region34: #{torch_model_forward.7} parent=31 // pred_check_branch
        %1093 = sbr.rel (%p1091) target = $region36
      $region35: #{torch_model_forward.7} parent=31 // pred_region
        %s1094 = smul.u32 8, %s14
      $region36: #{torch_model_forward.7} parent=31 // pred_fallthru
        _
    $region32: #{torch_model_forward.7} parent=5 // pred_fallthru
      _
    %p1095 = scmp.le.s32.totalorder 2, %s9
    // Predicated region
    $region37: #{torch_model_forward.7} parent=5 // pred_check
      %p1096 = pneg %p1095
    $region38: #{torch_model_forward.7} parent=5 // pred_check_branch
      %1098 = sbr.rel (%p1096) target = $region40
    $region39: #{torch_model_forward.7} parent=5 // pred_region
      %s1099 = ssub.s32 %s9, 2
      // Predicated region
      $region41: #{torch_model_forward.7} parent=39 // pred_check
        %p1100 = pneg %p106
      $region42: #{torch_model_forward.7} parent=39 // pred_check_branch
        %1102 = sbr.rel (%p1100) target = $region44
      $region43: #{torch_model_forward.7} parent=39 // pred_region
        %s1103 = smul.u32 8, %s15
        %p1104 = scmp.lt.s32.totalorder %s1103, 15
        %s1105 = scalar_select %p1104, %s1103, 15
        %s1106 = smul.addr %s1105, 4
        %s1107 = scalar_lea.vmem %s3, %s1106
      $region44: #{torch_model_forward.7} parent=39 // pred_fallthru
        _
    $region40: #{torch_model_forward.7} parent=5 // pred_fallthru
      _
  $region6: #{torch_model_forward.7} parent=0 // loop_footer
    %s13 = sadd.s32 1, %s9
  $region7: #{torch_model_forward.7} parent=0 // loop_footer_branch
    %8 = sbr.rel target = $region3
  $region8: #{torch_model_forward.7} parent=0 // loop_exit
    _

// kernel: torch_model_forward.8
$region0: #{torch_model_forward.8}
  #allocation0 [shape = 'u32[]', space=smem, size = 0x4, offset = 0x4, fixed_abs, tag = 'smem constant byte address 0x4 - core index']
  #allocation1 [shape = 'u32[144,128]{1,0:T(1,128)}', space=vmem, size = 0x12000, scoped, tag = 'internal scratch']
  %s0 = inlined_call_operand.vmem [shape: bf16[8,2,4,256], index: 0, kind: input, shape index: {}]
  %s1 = inlined_call_operand.vmem [shape: bf16[8,4,64], index: 1, kind: output, shape index: {}]
  %s2 = sld [smem:[#allocation0]]
  $region37: #{torch_model_forward.8} parent=0
    _
  %s4 = ssub.s32 1, %s2
  %s5 = scalar_select 0, %s4, %s2
  loop: start=0, step=1, limit=4
  $region2: #{torch_model_forward.8} parent=0 // loop_pre_header
    _
  $region3: #{torch_model_forward.8} parent=0 // loop_header
    %s7 = sphi 0, %s11
    %p8 = scmp.ge.s32.totalorder %s7, 4
    %s17 = sphi 0, %s19
    %s20 = sphi 0, %s17
    %s21 = sphi 0, %s20
    %s37 = sphi 0, %s21
    %s43 = sphi 0, %s45
    %s46 = sphi 0, %s43
    %s47 = sphi 0, %s46
    %s63 = sphi 0, %s47
  $region4: #{torch_model_forward.8} parent=0 // loop_header_branch
    %10 = sbr.rel (%p8) target = $region8
  $region5: #{torch_model_forward.8} parent=0 // loop_body
    %s12 = ssub.s32 %s7, 1
    %s13 = ssub.s32 %s7, 2
    %s14 = sadd.s32 %s7, 1
    %s15 = ssub.s32 %s7, %s14
    %p16 = scmp.eq.s32.totalorder %s15, 0
    %s18 = sadd.s32 %s17, 1
    %s19 = scalar_select %p16, %s17, %s18
    %p22 = pneg %p16
    %p23 = scmp.eq.s32.totalorder %s7, 1
    %p24 = por %p22, %p23
    %p25 = scmp.ne.s32.totalorder %s17, %s20
    %p26 = scmp.eq.s32.totalorder %s7, 0
    %p27 = por %p25, %p26
    %p28 = scmp.ne.s32.totalorder %s17, %s20
    %p29 = scmp.eq.s32.totalorder %s12, 1
    %p30 = por %p28, %p29
    %p31 = scmp.ne.s32.totalorder %s20, %s21
    %p32 = scmp.eq.s32.totalorder %s12, 0
    %p33 = por %p31, %p32
    %p34 = scmp.ne.s32.totalorder %s20, %s21
    %p35 = scmp.eq.s32.totalorder %s13, 1
    %p36 = por %p34, %p35
    %p38 = scmp.ne.s32.totalorder %s21, %s37
    %p39 = scmp.eq.s32.totalorder %s13, 0
    %p40 = por %p38, %p39
    %s41 = ssub.s32 %s7, %s14
    %p42 = scmp.eq.s32.totalorder %s41, 0
    %s44 = sadd.s32 %s43, 1
    %s45 = scalar_select %p42, %s43, %s44
    %p48 = pneg %p42
    %p49 = scmp.eq.s32.totalorder %s7, 1
    %p50 = por %p48, %p49
    %p51 = scmp.ne.s32.totalorder %s43, %s46
    %p52 = scmp.eq.s32.totalorder %s7, 0
    %p53 = por %p51, %p52
    %p54 = scmp.ne.s32.totalorder %s43, %s46
    %p55 = scmp.eq.s32.totalorder %s12, 1
    %p56 = por %p54, %p55
    %p57 = scmp.ne.s32.totalorder %s46, %s47
    %p58 = scmp.eq.s32.totalorder %s12, 0
    %p59 = por %p57, %p58
    %p60 = scmp.ne.s32.totalorder %s46, %s47
    %p61 = scmp.eq.s32.totalorder %s13, 1
    %p62 = por %p60, %p61
    %p64 = scmp.ne.s32.totalorder %s47, %s63
    %p65 = scmp.eq.s32.totalorder %s13, 0
    %p66 = por %p64, %p65
    %p67 = scmp.le.s32.totalorder 1, %s7
    %p68 = scmp.lt.s32.totalorder %s7, 3
    %p69 = pnand %p67, %p68
    %p70 = pneg %p69
    // Predicated region
    $region9: #{torch_model_forward.8} parent=5 // pred_check
      _
    $region10: #{torch_model_forward.8} parent=5 // pred_check_branch
      %72 = sbr.rel (%p69) target = $region12
    $region11: #{torch_model_forward.8} parent=5 // pred_region
      %s73 = ssub.s32 %s7, 1
    $region12: #{torch_model_forward.8} parent=5 // pred_fallthru
      _
    %p74 = scmp.lt.s32.totalorder %s7, 2
    // Predicated region
    $region13: #{torch_model_forward.8} parent=5 // pred_check
      %p75 = pneg %p74
    $region14: #{torch_model_forward.8} parent=5 // pred_check_branch
      %77 = sbr.rel (%p75) target = $region16
    $region15: #{torch_model_forward.8} parent=5 // pred_region
      // Predicated region
      $region17: #{torch_model_forward.8} parent=15 // pred_check
        %p78 = pneg %p27
      $region18: #{torch_model_forward.8} parent=15 // pred_check_branch
        %80 = sbr.rel (%p78) target = $region20
      $region19: #{torch_model_forward.8} parent=15 // pred_region
        %s81 = smul.u32 4, %s7
        %p82 = scmp.lt.s32.totalorder %s81, 7
        %s83 = scalar_select %p82, %s81, 7
        %s84 = smul.addr %s83, 4
        %s85 = smul.addr %s84, 2
        %s86 = scalar_lea.vmem %s0, %s85
        %s87 = smul.u32 4, %s7
      $region20: #{torch_model_forward.8} parent=15 // pred_fallthru
        _
    $region16: #{torch_model_forward.8} parent=5 // pred_fallthru
      _
    %p88 = scmp.le.s32.totalorder 1, %s7
    %p89 = scmp.lt.s32.totalorder %s7, 3
    %p90 = pnand %p88, %p89
    %p91 = pneg %p90
    // Predicated region
    $region21: #{torch_model_forward.8} parent=5 // pred_check
      _
    $region22: #{torch_model_forward.8} parent=5 // pred_check_branch
      %93 = sbr.rel (%p90) target = $region24
    $region23: #{torch_model_forward.8} parent=5 // pred_region
      %s94 = ssub.s32 %s7, 1
      %s95 = smul.u32 4, %s12
      %p96 = scmp.lt.s32.totalorder %s95, 7
      %s97 = scalar_select %p96, %s95, 7
      %s98 = smul.addr %s97, 4
      %s99 = smul.addr %s98, 2
      %s100 = scalar_lea.vmem %s0, %s99
      %p101 = pneg %p33
      %p102 = pneg %p30
      %p103 = pneg %p59
      %p104 = pneg %p56
      %s105 = smul.u32 4, %s12
      %p106 = scmp.lt.s32.totalorder %s105, 7
      %s107 = scalar_select %p106, %s105, 7
      %s108 = smul.addr %s107, 2
      %s109 = scalar_lea.vmem %s1, %s108
      %s110 = smul.u32 4, %s12
      %p111 = scmp.lt.s32.totalorder %s110, 7
      %s112 = scalar_select %p111, %s110, 7
      %s113 = smul.addr %s112, 4
      %s114 = smul.addr %s113, 2
      %s115 = scalar_lea.vmem %s0, %s114
      %s116 = smul.u32 4, %s12
      %s117 = smul.u32 4, %s12
      %p118 = scmp.lt.s32.totalorder %s117, 7
      %s119 = scalar_select %p118, %s117, 7
      %s120 = smul.addr %s119, 2
      %s121 = scalar_lea.vmem %s1, %s120
      %s122 = smul.u32 4, %s12
      %v123 = vld [vmem:[%s115] sm:$0xf]
      %v124 = vld [vmem:[%s115 + $0x4] sm:$0xf]
      %v125 = vld [vmem:[%s115 + $0x8] sm:$0xf]
      %v126 = vld [vmem:[%s115 + $0xc] sm:$0xf]
      %v127 = vld [vmem:[%s115 + $0x10] sm:$0xf]
      %v128 = vld [vmem:[%s115 + $0x14] sm:$0xf]
      %v129 = vld [vmem:[%s115 + $0x18] sm:$0xf]
      %v130 = vld [vmem:[%s115 + $0x1c] sm:$0xf]
      %v131 = vmax.bf16 %v123, %v124
      %v132 = vmax.bf16 %v125, %v126
      %v133 = vmax.bf16 %v127, %v128
      %v134 = vmax.bf16 %v129, %v130
      %v139 = vrot.slane %v131, 2
      %v140 = vrot.slane %v132, 2
      %v141 = vrot.slane %v133, 2
      %v142 = vrot.slane %v134, 2
      %v147 = vmax.bf16 %v131, %v139
      %v148 = vmax.bf16 %v132, %v140
      %v149 = vmax.bf16 %v133, %v141
      %v150 = vmax.bf16 %v134, %v142
      %vm151 = vcmask 517120
      %152 = vst.msk [vmem:[%s121] sm:$0x3] %vm151, %v147
      %153 = vst.msk [vmem:[%s121 + $0x2] sm:$0x3] %vm151, %v148
      %154 = vst.msk [vmem:[%s121 + $0x4] sm:$0x3] %vm151, %v149
      %155 = vst.msk [vmem:[%s121 + $0x6] sm:$0x3] %vm151, %v150
      %s156 = smul.u32 4, %s12
      %p157 = scmp.lt.s32.totalorder %s156, 7
      %s158 = scalar_select %p157, %s156, 7
      %s159 = smul.addr %s158, 2
      %s160 = scalar_lea.vmem %s1, %s159
      // Predicated region
      $region25: #{torch_model_forward.8} parent=23 // pred_check
        %p161 = pneg %p56
      $region26: #{torch_model_forward.8} parent=23 // pred_check_branch
        %163 = sbr.rel (%p161) target = $region28
      $region27: #{torch_model_forward.8} parent=23 // pred_region
        %s164 = smul.u32 4, %s12
      $region28: #{torch_model_forward.8} parent=23 // pred_fallthru
        _
    $region24: #{torch_model_forward.8} parent=5 // pred_fallthru
      _
    %p165 = scmp.le.s32.totalorder 2, %s7
    // Predicated region
    $region29: #{torch_model_forward.8} parent=5 // pred_check
      %p166 = pneg %p165
    $region30: #{torch_model_forward.8} parent=5 // pred_check_branch
      %168 = sbr.rel (%p166) target = $region32
    $region31: #{torch_model_forward.8} parent=5 // pred_region
      %s169 = ssub.s32 %s7, 2
      // Predicated region
      $region33: #{torch_model_forward.8} parent=31 // pred_check
        %p170 = pneg %p62
      $region34: #{torch_model_forward.8} parent=31 // pred_check_branch
        %172 = sbr.rel (%p170) target = $region36
      $region35: #{torch_model_forward.8} parent=31 // pred_region
        %s173 = smul.u32 4, %s13
        %p174 = scmp.lt.s32.totalorder %s173, 7
        %s175 = scalar_select %p174, %s173, 7
        %s176 = smul.addr %s175, 2
        %s177 = scalar_lea.vmem %s1, %s176
      $region36: #{torch_model_forward.8} parent=31 // pred_fallthru
        _
    $region32: #{torch_model_forward.8} parent=5 // pred_fallthru
      _
  $region6: #{torch_model_forward.8} parent=0 // loop_footer
    %s11 = sadd.s32 1, %s7
  $region7: #{torch_model_forward.8} parent=0 // loop_footer_branch
    %6 = sbr.rel target = $region3
  $region8: #{torch_model_forward.8} parent=0 // loop_exit
    _

// kernel: torch_model_forward.9
$region0: #{torch_model_forward.9}
  #allocation0 [shape = 'u32[]', space=smem, size = 0x4, offset = 0x4, fixed_abs, tag = 'smem constant byte address 0x4 - core index']
  #allocation1 [shape = 'u32[144,128]{1,0:T(1,128)}', space=vmem, size = 0x12000, scoped, tag = 'internal scratch']
  %s0 = inlined_call_operand.vmem [shape: bf16[2,1024], index: 0, kind: input, shape index: {}]
  %s1 = inlined_call_operand.vmem [shape: bf16[1024,512], index: 1, kind: input, shape index: {}]
  %s2 = inlined_call_operand.vmem [shape: f32[1,512], index: 2, kind: input, shape index: {}]
  %s3 = inlined_call_operand.vmem [shape: bf16[512,128], index: 3, kind: input, shape index: {}]
  %s4 = inlined_call_operand.vmem [shape: f32[1,128], index: 4, kind: input, shape index: {}]
  %s5 = inlined_call_operand.hbm [shape: f32[2,128], index: 5, kind: output, shape index: {}]
  %s6 = sld [smem:[#allocation0]]
  $region30: #{torch_model_forward.9} parent=0
    _
  %s8 = ssub.s32 1, %s6
  %s9 = scalar_select 0, %s8, %s6
  $region1: #{torch_model_forward.9} parent=0
    #allocation2 [shape = 'u8[1024]{0}', space=vmem, size = 0x400, scoped, tag = 'output window, operand 0, single buffered']
    #allocation3 [shape = 's32[1]{0}', space=sflag, size = 0x4, scoped, tag = 'scoped memory for torch_model_forward.9']
    %10 = vsyncpa [#allocation3], 0
    // Predicated region
    $region2: #{torch_model_forward.9} parent=1 // pred_check
      _
    $region3: #{torch_model_forward.9} parent=1 // pred_check_branch
      %12 = sbr.rel (0) target = $region5
    $region4: #{torch_model_forward.9} parent=1 // pred_region
      _
    $region5: #{torch_model_forward.9} parent=1 // pred_fallthru
      _
    // Predicated region
    $region6: #{torch_model_forward.9} parent=1 // pred_check
      _
    $region7: #{torch_model_forward.9} parent=1 // pred_check_branch
      %14 = sbr.rel (0) target = $region9
    $region8: #{torch_model_forward.9} parent=1 // pred_region
      _
    $region9: #{torch_model_forward.9} parent=1 // pred_fallthru
      _
    // Predicated region
    $region10: #{torch_model_forward.9} parent=1 // pred_check
      _
    $region11: #{torch_model_forward.9} parent=1 // pred_check_branch
      %16 = sbr.rel (0) target = $region13
    $region12: #{torch_model_forward.9} parent=1 // pred_region
      _
    $region13: #{torch_model_forward.9} parent=1 // pred_fallthru
      _
    // Predicated region
    $region14: #{torch_model_forward.9} parent=1 // pred_check
      _
    $region15: #{torch_model_forward.9} parent=1 // pred_check_branch
      %18 = sbr.rel (0) target = $region17
    $region16: #{torch_model_forward.9} parent=1 // pred_region
      _
    $region17: #{torch_model_forward.9} parent=1 // pred_fallthru
      _
    // Predicated region
    $region18: #{torch_model_forward.9} parent=1 // pred_check
      _
    $region19: #{torch_model_forward.9} parent=1 // pred_check_branch
      %20 = sbr.rel (0) target = $region21
    $region20: #{torch_model_forward.9} parent=1 // pred_region
      _
    $region21: #{torch_model_forward.9} parent=1 // pred_fallthru
      _
    %v22 = vld [vmem:[%s0] sm:$0xff]
    %v23 = vld [vmem:[%s1] sm:$0xff]
    %v24 = vld [vmem:[%s1 + $0x8] sm:$0xff]
    %v25 = vld [vmem:[%s1 + $0x10] sm:$0xff]
    %v26 = vld [vmem:[%s1 + $0x18] sm:$0xff]
    %v27 = vld [vmem:[%s1 + $0x20] sm:$0xff]
    %v28 = vld [vmem:[%s1 + $0x28] sm:$0xff]
    %v29 = vld [vmem:[%s1 + $0x30] sm:$0xff]
    %v30 = vld [vmem:[%s1 + $0x38] sm:$0xff]
    %v31 = vld [vmem:[%s1 + $0x40] sm:$0xff]
    %v32 = vld [vmem:[%s1 + $0x48] sm:$0xff]
    %v33 = vld [vmem:[%s1 + $0x50] sm:$0xff]
    %v34 = vld [vmem:[%s1 + $0x58] sm:$0xff]
    %v35 = vld [vmem:[%s1 + $0x60] sm:$0xff]
    %v36 = vld [vmem:[%s1 + $0x68] sm:$0xff]
    %v37 = vld [vmem:[%s1 + $0x70] sm:$0xff]
    %v38 = vld [vmem:[%s1 + $0x78] sm:$0xff]
    %v39 = vld [vmem:[%s1 + $0x80] sm:$0xff]
    %v40 = vld [vmem:[%s1 + $0x88] sm:$0xff]
    %v41 = vld [vmem:[%s1 + $0x90] sm:$0xff]
    %v42 = vld [vmem:[%s1 + $0x98] sm:$0xff]
    %v43 = vld [vmem:[%s1 + $0xa0] sm:$0xff]
    %v44 = vld [vmem:[%s1 + $0xa8] sm:$0xff]
    %v45 = vld [vmem:[%s1 + $0xb0] sm:$0xff]
    %v46 = vld [vmem:[%s1 + $0xb8] sm:$0xff]
    %v47 = vld [vmem:[%s1 + $0xc0] sm:$0xff]
    %v48 = vld [vmem:[%s1 + $0xc8] sm:$0xff]
    %v49 = vld [vmem:[%s1 + $0xd0] sm:$0xff]
    %v50 = vld [vmem:[%s1 + $0xd8] sm:$0xff]
    %v51 = vld [vmem:[%s1 + $0xe0] sm:$0xff]
    %v52 = vld [vmem:[%s1 + $0xe8] sm:$0xff]
    %v53 = vld [vmem:[%s1 + $0xf0] sm:$0xff]
    %v54 = vld [vmem:[%s1 + $0xf8] sm:$0xff]
    %v55 = vld [vmem:[%s1 + $0x100] sm:$0xff]
    %v56 = vld [vmem:[%s1 + $0x108] sm:$0xff]
    %v57 = vld [vmem:[%s1 + $0x110] sm:$0xff]
    %v58 = vld [vmem:[%s1 + $0x118] sm:$0xff]
    %v59 = vld [vmem:[%s1 + $0x120] sm:$0xff]
    %v60 = vld [vmem:[%s1 + $0x128] sm:$0xff]
    %v61 = vld [vmem:[%s1 + $0x130] sm:$0xff]
    %v62 = vld [vmem:[%s1 + $0x138] sm:$0xff]
    %v63 = vld [vmem:[%s1 + $0x140] sm:$0xff]
    %v64 = vld [vmem:[%s1 + $0x148] sm:$0xff]
    %v65 = vld [vmem:[%s1 + $0x150] sm:$0xff]
    %v66 = vld [vmem:[%s1 + $0x158] sm:$0xff]
    %v67 = vld [vmem:[%s1 + $0x160] sm:$0xff]
    %v68 = vld [vmem:[%s1 + $0x168] sm:$0xff]
    %v69 = vld [vmem:[%s1 + $0x170] sm:$0xff]
    %v70 = vld [vmem:[%s1 + $0x178] sm:$0xff]
    %v71 = vld [vmem:[%s1 + $0x180] sm:$0xff]
    %v72 = vld [vmem:[%s1 + $0x188] sm:$0xff]
    %v73 = vld [vmem:[%s1 + $0x190] sm:$0xff]
    %v74 = vld [vmem:[%s1 + $0x198] sm:$0xff]
    %v75 = vld [vmem:[%s1 + $0x1a0] sm:$0xff]
    %v76 = vld [vmem:[%s1 + $0x1a8] sm:$0xff]
    %v77 = vld [vmem:[%s1 + $0x1b0] sm:$0xff]
    %v78 = vld [vmem:[%s1 + $0x1b8] sm:$0xff]
    %v79 = vld [vmem:[%s1 + $0x1c0] sm:$0xff]
    %v80 = vld [vmem:[%s1 + $0x1c8] sm:$0xff]
    %v81 = vld [vmem:[%s1 + $0x1d0] sm:$0xff]
    %v82 = vld [vmem:[%s1 + $0x1d8] sm:$0xff]
    %v83 = vld [vmem:[%s1 + $0x1e0] sm:$0xff]
    %v84 = vld [vmem:[%s1 + $0x1e8] sm:$0xff]
    %v85 = vld [vmem:[%s1 + $0x1f0] sm:$0xff]
    %v86 = vld [vmem:[%s1 + $0x1f8] sm:$0xff]
    %v87 = vld [vmem:[%s1 + $0x200] sm:$0xff]
    %v88 = vld [vmem:[%s1 + $0x208] sm:$0xff]
    %v89 = vld [vmem:[%s1 + $0x210] sm:$0xff]
    %v90 = vld [vmem:[%s1 + $0x218] sm:$0xff]
    %v91 = vld [vmem:[%s1 + $0x220] sm:$0xff]
    %v92 = vld [vmem:[%s1 + $0x228] sm:$0xff]
    %v93 = vld [vmem:[%s1 + $0x230] sm:$0xff]
    %v94 = vld [vmem:[%s1 + $0x238] sm:$0xff]
    %v95 = vld [vmem:[%s1 + $0x240] sm:$0xff]
    %v96 = vld [vmem:[%s1 + $0x248] sm:$0xff]
    %v97 = vld [vmem:[%s1 + $0x250] sm:$0xff]
    %v98 = vld [vmem:[%s1 + $0x258] sm:$0xff]
    %v99 = vld [vmem:[%s1 + $0x260] sm:$0xff]
    %v100 = vld [vmem:[%s1 + $0x268] sm:$0xff]
    %v101 = vld [vmem:[%s1 + $0x270] sm:$0xff]
    %v102 = vld [vmem:[%s1 + $0x278] sm:$0xff]
    %v103 = vld [vmem:[%s1 + $0x280] sm:$0xff]
    %v104 = vld [vmem:[%s1 + $0x288] sm:$0xff]
    %v105 = vld [vmem:[%s1 + $0x290] sm:$0xff]
    %v106 = vld [vmem:[%s1 + $0x298] sm:$0xff]
    %v107 = vld [vmem:[%s1 + $0x2a0] sm:$0xff]
    %v108 = vld [vmem:[%s1 + $0x2a8] sm:$0xff]
    %v109 = vld [vmem:[%s1 + $0x2b0] sm:$0xff]
    %v110 = vld [vmem:[%s1 + $0x2b8] sm:$0xff]
    %v111 = vld [vmem:[%s1 + $0x2c0] sm:$0xff]
    %v112 = vld [vmem:[%s1 + $0x2c8] sm:$0xff]
    %v113 = vld [vmem:[%s1 + $0x2d0] sm:$0xff]
    %v114 = vld [vmem:[%s1 + $0x2d8] sm:$0xff]
    %v115 = vld [vmem:[%s1 + $0x2e0] sm:$0xff]
    %v116 = vld [vmem:[%s1 + $0x2e8] sm:$0xff]
    %v117 = vld [vmem:[%s1 + $0x2f0] sm:$0xff]
    %v118 = vld [vmem:[%s1 + $0x2f8] sm:$0xff]
    %v119 = vld [vmem:[%s1 + $0x300] sm:$0xff]
    %v120 = vld [vmem:[%s1 + $0x308] sm:$0xff]
    %v121 = vld [vmem:[%s1 + $0x310] sm:$0xff]
    %v122 = vld [vmem:[%s1 + $0x318] sm:$0xff]
    %v123 = vld [vmem:[%s1 + $0x320] sm:$0xff]
    %v124 = vld [vmem:[%s1 + $0x328] sm:$0xff]
    %v125 = vld [vmem:[%s1 + $0x330] sm:$0xff]
    %v126 = vld [vmem:[%s1 + $0x338] sm:$0xff]
    %v127 = vld [vmem:[%s1 + $0x340] sm:$0xff]
    %v128 = vld [vmem:[%s1 + $0x348] sm:$0xff]
    %v129 = vld [vmem:[%s1 + $0x350] sm:$0xff]
    %v130 = vld [vmem:[%s1 + $0x358] sm:$0xff]
    %v131 = vld [vmem:[%s1 + $0x360] sm:$0xff]
    %v132 = vld [vmem:[%s1 + $0x368] sm:$0xff]
    %v133 = vld [vmem:[%s1 + $0x370] sm:$0xff]
    %v134 = vld [vmem:[%s1 + $0x378] sm:$0xff]
    %v135 = vld [vmem:[%s1 + $0x380] sm:$0xff]
    %v136 = vld [vmem:[%s1 + $0x388] sm:$0xff]
    %v137 = vld [vmem:[%s1 + $0x390] sm:$0xff]
    %v138 = vld [vmem:[%s1 + $0x398] sm:$0xff]
    %v139 = vld [vmem:[%s1 + $0x3a0] sm:$0xff]
    %v140 = vld [vmem:[%s1 + $0x3a8] sm:$0xff]
    %v141 = vld [vmem:[%s1 + $0x3b0] sm:$0xff]
    %v142 = vld [vmem:[%s1 + $0x3b8] sm:$0xff]
    %v143 = vld [vmem:[%s1 + $0x3c0] sm:$0xff]
    %v144 = vld [vmem:[%s1 + $0x3c8] sm:$0xff]
    %v145 = vld [vmem:[%s1 + $0x3d0] sm:$0xff]
    %v146 = vld [vmem:[%s1 + $0x3d8] sm:$0xff]
    %v147 = vld [vmem:[%s1 + $0x3e0] sm:$0xff]
    %v148 = vld [vmem:[%s1 + $0x3e8] sm:$0xff]
    %v149 = vld [vmem:[%s1 + $0x3f0] sm:$0xff]
    %v150 = vld [vmem:[%s1 + $0x3f8] sm:$0xff]
    %v151 = vld [vmem:[%s1 + $0x400] sm:$0xff]
    %v152 = vld [vmem:[%s1 + $0x408] sm:$0xff]
    %v153 = vld [vmem:[%s1 + $0x410] sm:$0xff]
    %v154 = vld [vmem:[%s1 + $0x418] sm:$0xff]
    %v155 = vld [vmem:[%s1 + $0x420] sm:$0xff]
    %v156 = vld [vmem:[%s1 + $0x428] sm:$0xff]
    %v157 = vld [vmem:[%s1 + $0x430] sm:$0xff]
    %v158 = vld [vmem:[%s1 + $0x438] sm:$0xff]
    %v159 = vld [vmem:[%s1 + $0x440] sm:$0xff]
    %v160 = vld [vmem:[%s1 + $0x448] sm:$0xff]
    %v161 = vld [vmem:[%s1 + $0x450] sm:$0xff]
    %v162 = vld [vmem:[%s1 + $0x458] sm:$0xff]
    %v163 = vld [vmem:[%s1 + $0x460] sm:$0xff]
    %v164 = vld [vmem:[%s1 + $0x468] sm:$0xff]
    %v165 = vld [vmem:[%s1 + $0x470] sm:$0xff]
    %v166 = vld [vmem:[%s1 + $0x478] sm:$0xff]
    %v167 = vld [vmem:[%s1 + $0x480] sm:$0xff]
    %v168 = vld [vmem:[%s1 + $0x488] sm:$0xff]
    %v169 = vld [vmem:[%s1 + $0x490] sm:$0xff]
    %v170 = vld [vmem:[%s1 + $0x498] sm:$0xff]
    %v171 = vld [vmem:[%s1 + $0x4a0] sm:$0xff]
    %v172 = vld [vmem:[%s1 + $0x4a8] sm:$0xff]
    %v173 = vld [vmem:[%s1 + $0x4b0] sm:$0xff]
    %v174 = vld [vmem:[%s1 + $0x4b8] sm:$0xff]
    %v175 = vld [vmem:[%s1 + $0x4c0] sm:$0xff]
    %v176 = vld [vmem:[%s1 + $0x4c8] sm:$0xff]
    %v177 = vld [vmem:[%s1 + $0x4d0] sm:$0xff]
    %v178 = vld [vmem:[%s1 + $0x4d8] sm:$0xff]
    %v179 = vld [vmem:[%s1 + $0x4e0] sm:$0xff]
    %v180 = vld [vmem:[%s1 + $0x4e8] sm:$0xff]
    %v181 = vld [vmem:[%s1 + $0x4f0] sm:$0xff]
    %v182 = vld [vmem:[%s1 + $0x4f8] sm:$0xff]
    %v183 = vld [vmem:[%s1 + $0x500] sm:$0xff]
    %v184 = vld [vmem:[%s1 + $0x508] sm:$0xff]
    %v185 = vld [vmem:[%s1 + $0x510] sm:$0xff]
    %v186 = vld [vmem:[%s1 + $0x518] sm:$0xff]
    %v187 = vld [vmem:[%s1 + $0x520] sm:$0xff]
    %v188 = vld [vmem:[%s1 + $0x528] sm:$0xff]
    %v189 = vld [vmem:[%s1 + $0x530] sm:$0xff]
    %v190 = vld [vmem:[%s1 + $0x538] sm:$0xff]
    %v191 = vld [vmem:[%s1 + $0x540] sm:$0xff]
    %v192 = vld [vmem:[%s1 + $0x548] sm:$0xff]
    %v193 = vld [vmem:[%s1 + $0x550] sm:$0xff]
    %v194 = vld [vmem:[%s1 + $0x558] sm:$0xff]
    %v195 = vld [vmem:[%s1 + $0x560] sm:$0xff]
    %v196 = vld [vmem:[%s1 + $0x568] sm:$0xff]
    %v197 = vld [vmem:[%s1 + $0x570] sm:$0xff]
    %v198 = vld [vmem:[%s1 + $0x578] sm:$0xff]
    %v199 = vld [vmem:[%s1 + $0x580] sm:$0xff]
    %v200 = vld [vmem:[%s1 + $0x588] sm:$0xff]
    %v201 = vld [vmem:[%s1 + $0x590] sm:$0xff]
    %v202 = vld [vmem:[%s1 + $0x598] sm:$0xff]
    %v203 = vld [vmem:[%s1 + $0x5a0] sm:$0xff]
    %v204 = vld [vmem:[%s1 + $0x5a8] sm:$0xff]
    %v205 = vld [vmem:[%s1 + $0x5b0] sm:$0xff]
    %v206 = vld [vmem:[%s1 + $0x5b8] sm:$0xff]
    %v207 = vld [vmem:[%s1 + $0x5c0] sm:$0xff]
    %v208 = vld [vmem:[%s1 + $0x5c8] sm:$0xff]
    %v209 = vld [vmem:[%s1 + $0x5d0] sm:$0xff]
    %v210 = vld [vmem:[%s1 + $0x5d8] sm:$0xff]
    %v211 = vld [vmem:[%s1 + $0x5e0] sm:$0xff]
    %v212 = vld [vmem:[%s1 + $0x5e8] sm:$0xff]
    %v213 = vld [vmem:[%s1 + $0x5f0] sm:$0xff]
    %v214 = vld [vmem:[%s1 + $0x5f8] sm:$0xff]
    %v215 = vld [vmem:[%s1 + $0x600] sm:$0xff]
    %v216 = vld [vmem:[%s1 + $0x608] sm:$0xff]
    %v217 = vld [vmem:[%s1 + $0x610] sm:$0xff]
    %v218 = vld [vmem:[%s1 + $0x618] sm:$0xff]
    %v219 = vld [vmem:[%s1 + $0x620] sm:$0xff]
    %v220 = vld [vmem:[%s1 + $0x628] sm:$0xff]
    %v221 = vld [vmem:[%s1 + $0x630] sm:$0xff]
    %v222 = vld [vmem:[%s1 + $0x638] sm:$0xff]
    %v223 = vld [vmem:[%s1 + $0x640] sm:$0xff]
    %v224 = vld [vmem:[%s1 + $0x648] sm:$0xff]
    %v225 = vld [vmem:[%s1 + $0x650] sm:$0xff]
    %v226 = vld [vmem:[%s1 + $0x658] sm:$0xff]
    %v227 = vld [vmem:[%s1 + $0x660] sm:$0xff]
    %v228 = vld [vmem:[%s1 + $0x668] sm:$0xff]
    %v229 = vld [vmem:[%s1 + $0x670] sm:$0xff]
    %v230 = vld [vmem:[%s1 + $0x678] sm:$0xff]
    %v231 = vld [vmem:[%s1 + $0x680] sm:$0xff]
    %v232 = vld [vmem:[%s1 + $0x688] sm:$0xff]
    %v233 = vld [vmem:[%s1 + $0x690] sm:$0xff]
    %v234 = vld [vmem:[%s1 + $0x698] sm:$0xff]
    %v235 = vld [vmem:[%s1 + $0x6a0] sm:$0xff]
    %v236 = vld [vmem:[%s1 + $0x6a8] sm:$0xff]
    %v237 = vld [vmem:[%s1 + $0x6b0] sm:$0xff]
    %v238 = vld [vmem:[%s1 + $0x6b8] sm:$0xff]
    %v239 = vld [vmem:[%s1 + $0x6c0] sm:$0xff]
    %v240 = vld [vmem:[%s1 + $0x6c8] sm:$0xff]
    %v241 = vld [vmem:[%s1 + $0x6d0] sm:$0xff]
    %v242 = vld [vmem:[%s1 + $0x6d8] sm:$0xff]
    %v243 = vld [vmem:[%s1 + $0x6e0] sm:$0xff]
    %v244 = vld [vmem:[%s1 + $0x6e8] sm:$0xff]
    %v245 = vld [vmem:[%s1 + $0x6f0] sm:$0xff]
    %v246 = vld [vmem:[%s1 + $0x6f8] sm:$0xff]
    %v247 = vld [vmem:[%s1 + $0x700] sm:$0xff]
    %v248 = vld [vmem:[%s1 + $0x708] sm:$0xff]
    %v249 = vld [vmem:[%s1 + $0x710] sm:$0xff]
    %v250 = vld [vmem:[%s1 + $0x718] sm:$0xff]
    %v251 = vld [vmem:[%s1 + $0x720] sm:$0xff]
    %v252 = vld [vmem:[%s1 + $0x728] sm:$0xff]
    %v253 = vld [vmem:[%s1 + $0x730] sm:$0xff]
    %v254 = vld [vmem:[%s1 + $0x738] sm:$0xff]
    %v255 = vld [vmem:[%s1 + $0x740] sm:$0xff]
    %v256 = vld [vmem:[%s1 + $0x748] sm:$0xff]
    %v257 = vld [vmem:[%s1 + $0x750] sm:$0xff]
    %v258 = vld [vmem:[%s1 + $0x758] sm:$0xff]
    %v259 = vld [vmem:[%s1 + $0x760] sm:$0xff]
    %v260 = vld [vmem:[%s1 + $0x768] sm:$0xff]
    %v261 = vld [vmem:[%s1 + $0x770] sm:$0xff]
    %v262 = vld [vmem:[%s1 + $0x778] sm:$0xff]
    %v263 = vld [vmem:[%s1 + $0x780] sm:$0xff]
    %v264 = vld [vmem:[%s1 + $0x788] sm:$0xff]
    %v265 = vld [vmem:[%s1 + $0x790] sm:$0xff]
    %v266 = vld [vmem:[%s1 + $0x798] sm:$0xff]
    %v267 = vld [vmem:[%s1 + $0x7a0] sm:$0xff]
    %v268 = vld [vmem:[%s1 + $0x7a8] sm:$0xff]
    %v269 = vld [vmem:[%s1 + $0x7b0] sm:$0xff]
    %v270 = vld [vmem:[%s1 + $0x7b8] sm:$0xff]
    %v271 = vld [vmem:[%s1 + $0x7c0] sm:$0xff]
    %v272 = vld [vmem:[%s1 + $0x7c8] sm:$0xff]
    %v273 = vld [vmem:[%s1 + $0x7d0] sm:$0xff]
    %v274 = vld [vmem:[%s1 + $0x7d8] sm:$0xff]
    %v275 = vld [vmem:[%s1 + $0x7e0] sm:$0xff]
    %v276 = vld [vmem:[%s1 + $0x7e8] sm:$0xff]
    %v277 = vld [vmem:[%s1 + $0x7f0] sm:$0xff]
    %v278 = vld [vmem:[%s1 + $0x7f8] sm:$0xff]
    %v279 = vld [vmem:[%s2] sm:$0xf]
    %v281 = vlaneseq
    %v282 = vshrl.u32 %v281, 7
    %v283 = vsub.s32 0, %v282
    %v284 = vrot.slane %v279, %v283
    %v285 = vlaneseq
    %v286 = vshrl.u32 %v285, 7
    %v287 = vsub.s32 1, %v286
    %v288 = vrot.slane %v279, %v287
    %v289 = vlaneseq
    %v290 = vshrl.u32 %v289, 7
    %v291 = vsub.s32 2, %v290
    %v292 = vrot.slane %v279, %v291
    %v293 = vlaneseq
    %v294 = vshrl.u32 %v293, 7
    %v295 = vsub.s32 3, %v294
    %v296 = vrot.slane %v279, %v295
    %v302 = vcombine.high %v22, %v22
    %v304 = vunpack.c.l.s4 1966171168
    %v305 = vunpack.c.0.s8 %v304
    %v306 = vlaneseq
    %v307 = vshrl.u32 %v306, 7
    %v308 = vsub.s32 %v305, %v307
    %v309 = vrot.slane %v22, %v308
    %v311 = vunpack.c.l.s4 1966171168
    %v312 = vunpack.c.0.s8 %v311
    %v313 = vlaneseq
    %v314 = vshrl.u32 %v313, 7
    %v315 = vsub.s32 %v312, %v314
    %v316 = vrot.slane %v302, %v315
    %v317 = vcombine.high %v309, %v309
    %v318 = vcombine.high %v316, %v316
    %v320 = vunpack.c.l.s4 1966171168
    %v321 = vunpack.c.0.s8 %v320
    %v322 = vlaneseq
    %v323 = vshrl.u32 %v322, 7
    %v324 = vsub.s32 %v321, %v323
    %v325 = vrot.slane %v309, %v324
    %v327 = vunpack.c.l.s4 1966171168
    %v328 = vunpack.c.0.s8 %v327
    %v329 = vlaneseq
    %v330 = vshrl.u32 %v329, 7
    %v331 = vsub.s32 %v328, %v330
    %v332 = vrot.slane %v316, %v331
    %v334 = vunpack.c.l.s4 1966171168
    %v335 = vunpack.c.0.s8 %v334
    %v336 = vlaneseq
    %v337 = vshrl.u32 %v336, 7
    %v338 = vsub.s32 %v335, %v337
    %v339 = vrot.slane %v317, %v338
    %v341 = vunpack.c.l.s4 1966171168
    %v342 = vunpack.c.0.s8 %v341
    %v343 = vlaneseq
    %v344 = vshrl.u32 %v343, 7
    %v345 = vsub.s32 %v342, %v344
    %v346 = vrot.slane %v318, %v345
    %v347 = vcombine.high %v325, %v325
    %v348 = vcombine.high %v332, %v332
    %v349 = vcombine.high %v339, %v339
    %v350 = vcombine.high %v346, %v346
    %v615 = vunpack.c.l.b16 %v23
    %v616 = vunpack.c.h.b16 %v23
    %v617 = vunpack.c.l.b16 %v24
    %v618 = vunpack.c.h.b16 %v24
    %v619 = vunpack.c.l.b16 %v25
    %v620 = vunpack.c.h.b16 %v25
    %v621 = vunpack.c.l.b16 %v26
    %v622 = vunpack.c.h.b16 %v26
    %v623 = vunpack.c.l.b16 %v27
    %v624 = vunpack.c.h.b16 %v27
    %v625 = vunpack.c.l.b16 %v28
    %v626 = vunpack.c.h.b16 %v28
    %v627 = vunpack.c.l.b16 %v29
    %v628 = vunpack.c.h.b16 %v29
    %v629 = vunpack.c.l.b16 %v30
    %v630 = vunpack.c.h.b16 %v30
    %v631 = vunpack.c.l.b16 %v31
    %v632 = vunpack.c.h.b16 %v31
    %v633 = vunpack.c.l.b16 %v32
    %v634 = vunpack.c.h.b16 %v32
    %v635 = vunpack.c.l.b16 %v33
    %v636 = vunpack.c.h.b16 %v33
    %v637 = vunpack.c.l.b16 %v34
    %v638 = vunpack.c.h.b16 %v34
    %v639 = vunpack.c.l.b16 %v35
    %v640 = vunpack.c.h.b16 %v35
    %v641 = vunpack.c.l.b16 %v36
    %v642 = vunpack.c.h.b16 %v36
    %v643 = vunpack.c.l.b16 %v37
    %v644 = vunpack.c.h.b16 %v37
    %v645 = vunpack.c.l.b16 %v38
    %v646 = vunpack.c.h.b16 %v38
    %v647 = vunpack.c.l.b16 %v39
    %v648 = vunpack.c.h.b16 %v39
    %v649 = vunpack.c.l.b16 %v40
    %v650 = vunpack.c.h.b16 %v40
    %v651 = vunpack.c.l.b16 %v41
    %v652 = vunpack.c.h.b16 %v41
    %v653 = vunpack.c.l.b16 %v42
    %v654 = vunpack.c.h.b16 %v42
    %v655 = vunpack.c.l.b16 %v43
    %v656 = vunpack.c.h.b16 %v43
    %v657 = vunpack.c.l.b16 %v44
    %v658 = vunpack.c.h.b16 %v44
    %v659 = vunpack.c.l.b16 %v45
    %v660 = vunpack.c.h.b16 %v45
    %v661 = vunpack.c.l.b16 %v46
    %v662 = vunpack.c.h.b16 %v46
    %v663 = vunpack.c.l.b16 %v47
    %v664 = vunpack.c.h.b16 %v47
    %v665 = vunpack.c.l.b16 %v48
    %v666 = vunpack.c.h.b16 %v48
    %v667 = vunpack.c.l.b16 %v49
    %v668 = vunpack.c.h.b16 %v49
    %v669 = vunpack.c.l.b16 %v50
    %v670 = vunpack.c.h.b16 %v50
    %v671 = vunpack.c.l.b16 %v51
    %v672 = vunpack.c.h.b16 %v51
    %v673 = vunpack.c.l.b16 %v52
    %v674 = vunpack.c.h.b16 %v52
    %v675 = vunpack.c.l.b16 %v53
    %v676 = vunpack.c.h.b16 %v53
    %v677 = vunpack.c.l.b16 %v54
    %v678 = vunpack.c.h.b16 %v54
    %v679 = vunpack.c.l.b16 %v55
    %v680 = vunpack.c.h.b16 %v55
    %v681 = vunpack.c.l.b16 %v56
    %v682 = vunpack.c.h.b16 %v56
    %v683 = vunpack.c.l.b16 %v57
    %v684 = vunpack.c.h.b16 %v57
    %v685 = vunpack.c.l.b16 %v58
    %v686 = vunpack.c.h.b16 %v58
    %v687 = vunpack.c.l.b16 %v59
    %v688 = vunpack.c.h.b16 %v59
    %v689 = vunpack.c.l.b16 %v60
    %v690 = vunpack.c.h.b16 %v60
    %v691 = vunpack.c.l.b16 %v61
    %v692 = vunpack.c.h.b16 %v61
    %v693 = vunpack.c.l.b16 %v62
    %v694 = vunpack.c.h.b16 %v62
    %v695 = vunpack.c.l.b16 %v63
    %v696 = vunpack.c.h.b16 %v63
    %v697 = vunpack.c.l.b16 %v64
    %v698 = vunpack.c.h.b16 %v64
    %v699 = vunpack.c.l.b16 %v65
    %v700 = vunpack.c.h.b16 %v65
    %v701 = vunpack.c.l.b16 %v66
    %v702 = vunpack.c.h.b16 %v66
    %v703 = vunpack.c.l.b16 %v67
    %v704 = vunpack.c.h.b16 %v67
    %v705 = vunpack.c.l.b16 %v68
    %v706 = vunpack.c.h.b16 %v68
    %v707 = vunpack.c.l.b16 %v69
    %v708 = vunpack.c.h.b16 %v69
    %v709 = vunpack.c.l.b16 %v70
    %v710 = vunpack.c.h.b16 %v70
    %v711 = vunpack.c.l.b16 %v71
    %v712 = vunpack.c.h.b16 %v71
    %v713 = vunpack.c.l.b16 %v72
    %v714 = vunpack.c.h.b16 %v72
    %v715 = vunpack.c.l.b16 %v73
    %v716 = vunpack.c.h.b16 %v73
    %v717 = vunpack.c.l.b16 %v74
    %v718 = vunpack.c.h.b16 %v74
    %v719 = vunpack.c.l.b16 %v75
    %v720 = vunpack.c.h.b16 %v75
    %v721 = vunpack.c.l.b16 %v76
    %v722 = vunpack.c.h.b16 %v76
    %v723 = vunpack.c.l.b16 %v77
    %v724 = vunpack.c.h.b16 %v77
    %v725 = vunpack.c.l.b16 %v78
    %v726 = vunpack.c.h.b16 %v78
    %v727 = vunpack.c.l.b16 %v79
    %v728 = vunpack.c.h.b16 %v79
    %v729 = vunpack.c.l.b16 %v80
    %v730 = vunpack.c.h.b16 %v80
    %v731 = vunpack.c.l.b16 %v81
    %v732 = vunpack.c.h.b16 %v81
    %v733 = vunpack.c.l.b16 %v82
    %v734 = vunpack.c.h.b16 %v82
    %v735 = vunpack.c.l.b16 %v83
    %v736 = vunpack.c.h.b16 %v83
    %v737 = vunpack.c.l.b16 %v84
    %v738 = vunpack.c.h.b16 %v84
    %v739 = vunpack.c.l.b16 %v85
    %v740 = vunpack.c.h.b16 %v85
    %v741 = vunpack.c.l.b16 %v86
    %v742 = vunpack.c.h.b16 %v86
    %v743 = vunpack.c.l.b16 %v87
    %v744 = vunpack.c.h.b16 %v87
    %v745 = vunpack.c.l.b16 %v88
    %v746 = vunpack.c.h.b16 %v88
    %v747 = vunpack.c.l.b16 %v89
    %v748 = vunpack.c.h.b16 %v89
    %v749 = vunpack.c.l.b16 %v90
    %v750 = vunpack.c.h.b16 %v90
    %v751 = vunpack.c.l.b16 %v91
    %v752 = vunpack.c.h.b16 %v91
    %v753 = vunpack.c.l.b16 %v92
    %v754 = vunpack.c.h.b16 %v92
    %v755 = vunpack.c.l.b16 %v93
    %v756 = vunpack.c.h.b16 %v93
    %v757 = vunpack.c.l.b16 %v94
    %v758 = vunpack.c.h.b16 %v94
    %v759 = vunpack.c.l.b16 %v95
    %v760 = vunpack.c.h.b16 %v95
    %v761 = vunpack.c.l.b16 %v96
    %v762 = vunpack.c.h.b16 %v96
    %v763 = vunpack.c.l.b16 %v97
    %v764 = vunpack.c.h.b16 %v97
    %v765 = vunpack.c.l.b16 %v98
    %v766 = vunpack.c.h.b16 %v98
    %v767 = vunpack.c.l.b16 %v99
    %v768 = vunpack.c.h.b16 %v99
    %v769 = vunpack.c.l.b16 %v100
    %v770 = vunpack.c.h.b16 %v100
    %v771 = vunpack.c.l.b16 %v101
    %v772 = vunpack.c.h.b16 %v101
    %v773 = vunpack.c.l.b16 %v102
    %v774 = vunpack.c.h.b16 %v102
    %v775 = vunpack.c.l.b16 %v103
    %v776 = vunpack.c.h.b16 %v103
    %v777 = vunpack.c.l.b16 %v104
    %v778 = vunpack.c.h.b16 %v104
    %v779 = vunpack.c.l.b16 %v105
    %v780 = vunpack.c.h.b16 %v105
    %v781 = vunpack.c.l.b16 %v106
    %v782 = vunpack.c.h.b16 %v106
    %v783 = vunpack.c.l.b16 %v107
    %v784 = vunpack.c.h.b16 %v107
    %v785 = vunpack.c.l.b16 %v108
    %v786 = vunpack.c.h.b16 %v108
    %v787 = vunpack.c.l.b16 %v109
    %v788 = vunpack.c.h.b16 %v109
    %v789 = vunpack.c.l.b16 %v110
    %v790 = vunpack.c.h.b16 %v110
    %v791 = vunpack.c.l.b16 %v111
    %v792 = vunpack.c.h.b16 %v111
    %v793 = vunpack.c.l.b16 %v112
    %v794 = vunpack.c.h.b16 %v112
    %v795 = vunpack.c.l.b16 %v113
    %v796 = vunpack.c.h.b16 %v113
    %v797 = vunpack.c.l.b16 %v114
    %v798 = vunpack.c.h.b16 %v114
    %v799 = vunpack.c.l.b16 %v115
    %v800 = vunpack.c.h.b16 %v115
    %v801 = vunpack.c.l.b16 %v116
    %v802 = vunpack.c.h.b16 %v116
    %v803 = vunpack.c.l.b16 %v117
    %v804 = vunpack.c.h.b16 %v117
    %v805 = vunpack.c.l.b16 %v118
    %v806 = vunpack.c.h.b16 %v118
    %v807 = vunpack.c.l.b16 %v119
    %v808 = vunpack.c.h.b16 %v119
    %v809 = vunpack.c.l.b16 %v120
    %v810 = vunpack.c.h.b16 %v120
    %v811 = vunpack.c.l.b16 %v121
    %v812 = vunpack.c.h.b16 %v121
    %v813 = vunpack.c.l.b16 %v122
    %v814 = vunpack.c.h.b16 %v122
    %v815 = vunpack.c.l.b16 %v123
    %v816 = vunpack.c.h.b16 %v123
    %v817 = vunpack.c.l.b16 %v124
    %v818 = vunpack.c.h.b16 %v124
    %v819 = vunpack.c.l.b16 %v125
    %v820 = vunpack.c.h.b16 %v125
    %v821 = vunpack.c.l.b16 %v126
    %v822 = vunpack.c.h.b16 %v126
    %v823 = vunpack.c.l.b16 %v127
    %v824 = vunpack.c.h.b16 %v127
    %v825 = vunpack.c.l.b16 %v128
    %v826 = vunpack.c.h.b16 %v128
    %v827 = vunpack.c.l.b16 %v129
    %v828 = vunpack.c.h.b16 %v129
    %v829 = vunpack.c.l.b16 %v130
    %v830 = vunpack.c.h.b16 %v130
    %v831 = vunpack.c.l.b16 %v131
    %v832 = vunpack.c.h.b16 %v131
    %v833 = vunpack.c.l.b16 %v132
    %v834 = vunpack.c.h.b16 %v132
    %v835 = vunpack.c.l.b16 %v133
    %v836 = vunpack.c.h.b16 %v133
    %v837 = vunpack.c.l.b16 %v134
    %v838 = vunpack.c.h.b16 %v134
    %v839 = vunpack.c.l.b16 %v135
    %v840 = vunpack.c.h.b16 %v135
    %v841 = vunpack.c.l.b16 %v136
    %v842 = vunpack.c.h.b16 %v136
    %v843 = vunpack.c.l.b16 %v137
    %v844 = vunpack.c.h.b16 %v137
    %v845 = vunpack.c.l.b16 %v138
    %v846 = vunpack.c.h.b16 %v138
    %v847 = vunpack.c.l.b16 %v139
    %v848 = vunpack.c.h.b16 %v139
    %v849 = vunpack.c.l.b16 %v140
    %v850 = vunpack.c.h.b16 %v140
    %v851 = vunpack.c.l.b16 %v141
    %v852 = vunpack.c.h.b16 %v141
    %v853 = vunpack.c.l.b16 %v142
    %v854 = vunpack.c.h.b16 %v142
    %v855 = vunpack.c.l.b16 %v143
    %v856 = vunpack.c.h.b16 %v143
    %v857 = vunpack.c.l.b16 %v144
    %v858 = vunpack.c.h.b16 %v144
    %v859 = vunpack.c.l.b16 %v145
    %v860 = vunpack.c.h.b16 %v145
    %v861 = vunpack.c.l.b16 %v146
    %v862 = vunpack.c.h.b16 %v146
    %v863 = vunpack.c.l.b16 %v147
    %v864 = vunpack.c.h.b16 %v147
    %v865 = vunpack.c.l.b16 %v148
    %v866 = vunpack.c.h.b16 %v148
    %v867 = vunpack.c.l.b16 %v149
    %v868 = vunpack.c.h.b16 %v149
    %v869 = vunpack.c.l.b16 %v150
    %v870 = vunpack.c.h.b16 %v150
    %v871 = vunpack.c.l.b16 %v151
    %v872 = vunpack.c.h.b16 %v151
    %v873 = vunpack.c.l.b16 %v152
    %v874 = vunpack.c.h.b16 %v152
    %v875 = vunpack.c.l.b16 %v153
    %v876 = vunpack.c.h.b16 %v153
    %v877 = vunpack.c.l.b16 %v154
    %v878 = vunpack.c.h.b16 %v154
    %v879 = vunpack.c.l.b16 %v155
    %v880 = vunpack.c.h.b16 %v155
    %v881 = vunpack.c.l.b16 %v156
    %v882 = vunpack.c.h.b16 %v156
    %v883 = vunpack.c.l.b16 %v157
    %v884 = vunpack.c.h.b16 %v157
    %v885 = vunpack.c.l.b16 %v158
    %v886 = vunpack.c.h.b16 %v158
    %v887 = vunpack.c.l.b16 %v159
    %v888 = vunpack.c.h.b16 %v159
    %v889 = vunpack.c.l.b16 %v160
    %v890 = vunpack.c.h.b16 %v160
    %v891 = vunpack.c.l.b16 %v161
    %v892 = vunpack.c.h.b16 %v161
    %v893 = vunpack.c.l.b16 %v162
    %v894 = vunpack.c.h.b16 %v162
    %v895 = vunpack.c.l.b16 %v163
    %v896 = vunpack.c.h.b16 %v163
    %v897 = vunpack.c.l.b16 %v164
    %v898 = vunpack.c.h.b16 %v164
    %v899 = vunpack.c.l.b16 %v165
    %v900 = vunpack.c.h.b16 %v165
    %v901 = vunpack.c.l.b16 %v166
    %v902 = vunpack.c.h.b16 %v166
    %v903 = vunpack.c.l.b16 %v167
    %v904 = vunpack.c.h.b16 %v167
    %v905 = vunpack.c.l.b16 %v168
    %v906 = vunpack.c.h.b16 %v168
    %v907 = vunpack.c.l.b16 %v169
    %v908 = vunpack.c.h.b16 %v169
    %v909 = vunpack.c.l.b16 %v170
    %v910 = vunpack.c.h.b16 %v170
    %v911 = vunpack.c.l.b16 %v171
    %v912 = vunpack.c.h.b16 %v171
    %v913 = vunpack.c.l.b16 %v172
    %v914 = vunpack.c.h.b16 %v172
    %v915 = vunpack.c.l.b16 %v173
    %v916 = vunpack.c.h.b16 %v173
    %v917 = vunpack.c.l.b16 %v174
    %v918 = vunpack.c.h.b16 %v174
    %v919 = vunpack.c.l.b16 %v175
    %v920 = vunpack.c.h.b16 %v175
    %v921 = vunpack.c.l.b16 %v176
    %v922 = vunpack.c.h.b16 %v176
    %v923 = vunpack.c.l.b16 %v177
    %v924 = vunpack.c.h.b16 %v177
    %v925 = vunpack.c.l.b16 %v178
    %v926 = vunpack.c.h.b16 %v178
    %v927 = vunpack.c.l.b16 %v179
    %v928 = vunpack.c.h.b16 %v179
    %v929 = vunpack.c.l.b16 %v180
    %v930 = vunpack.c.h.b16 %v180
    %v931 = vunpack.c.l.b16 %v181
    %v932 = vunpack.c.h.b16 %v181
    %v933 = vunpack.c.l.b16 %v182
    %v934 = vunpack.c.h.b16 %v182
    %v935 = vunpack.c.l.b16 %v183
    %v936 = vunpack.c.h.b16 %v183
    %v937 = vunpack.c.l.b16 %v184
    %v938 = vunpack.c.h.b16 %v184
    %v939 = vunpack.c.l.b16 %v185
    %v940 = vunpack.c.h.b16 %v185
    %v941 = vunpack.c.l.b16 %v186
    %v942 = vunpack.c.h.b16 %v186
    %v943 = vunpack.c.l.b16 %v187
    %v944 = vunpack.c.h.b16 %v187
    %v945 = vunpack.c.l.b16 %v188
    %v946 = vunpack.c.h.b16 %v188
    %v947 = vunpack.c.l.b16 %v189
    %v948 = vunpack.c.h.b16 %v189
    %v949 = vunpack.c.l.b16 %v190
    %v950 = vunpack.c.h.b16 %v190
    %v951 = vunpack.c.l.b16 %v191
    %v952 = vunpack.c.h.b16 %v191
    %v953 = vunpack.c.l.b16 %v192
    %v954 = vunpack.c.h.b16 %v192
    %v955 = vunpack.c.l.b16 %v193
    %v956 = vunpack.c.h.b16 %v193
    %v957 = vunpack.c.l.b16 %v194
    %v958 = vunpack.c.h.b16 %v194
    %v959 = vunpack.c.l.b16 %v195
    %v960 = vunpack.c.h.b16 %v195
    %v961 = vunpack.c.l.b16 %v196
    %v962 = vunpack.c.h.b16 %v196
    %v963 = vunpack.c.l.b16 %v197
    %v964 = vunpack.c.h.b16 %v197
    %v965 = vunpack.c.l.b16 %v198
    %v966 = vunpack.c.h.b16 %v198
    %v967 = vunpack.c.l.b16 %v199
    %v968 = vunpack.c.h.b16 %v199
    %v969 = vunpack.c.l.b16 %v200
    %v970 = vunpack.c.h.b16 %v200
    %v971 = vunpack.c.l.b16 %v201
    %v972 = vunpack.c.h.b16 %v201
    %v973 = vunpack.c.l.b16 %v202
    %v974 = vunpack.c.h.b16 %v202
    %v975 = vunpack.c.l.b16 %v203
    %v976 = vunpack.c.h.b16 %v203
    %v977 = vunpack.c.l.b16 %v204
    %v978 = vunpack.c.h.b16 %v204
    %v979 = vunpack.c.l.b16 %v205
    %v980 = vunpack.c.h.b16 %v205
    %v981 = vunpack.c.l.b16 %v206
    %v982 = vunpack.c.h.b16 %v206
    %v983 = vunpack.c.l.b16 %v207
    %v984 = vunpack.c.h.b16 %v207
    %v985 = vunpack.c.l.b16 %v208
    %v986 = vunpack.c.h.b16 %v208
    %v987 = vunpack.c.l.b16 %v209
    %v988 = vunpack.c.h.b16 %v209
    %v989 = vunpack.c.l.b16 %v210
    %v990 = vunpack.c.h.b16 %v210
    %v991 = vunpack.c.l.b16 %v211
    %v992 = vunpack.c.h.b16 %v211
    %v993 = vunpack.c.l.b16 %v212
    %v994 = vunpack.c.h.b16 %v212
    %v995 = vunpack.c.l.b16 %v213
    %v996 = vunpack.c.h.b16 %v213
    %v997 = vunpack.c.l.b16 %v214
    %v998 = vunpack.c.h.b16 %v214
    %v999 = vunpack.c.l.b16 %v215
    %v1000 = vunpack.c.h.b16 %v215
    %v1001 = vunpack.c.l.b16 %v216
    %v1002 = vunpack.c.h.b16 %v216
    %v1003 = vunpack.c.l.b16 %v217
    %v1004 = vunpack.c.h.b16 %v217
    %v1005 = vunpack.c.l.b16 %v218
    %v1006 = vunpack.c.h.b16 %v218
    %v1007 = vunpack.c.l.b16 %v219
    %v1008 = vunpack.c.h.b16 %v219
    %v1009 = vunpack.c.l.b16 %v220
    %v1010 = vunpack.c.h.b16 %v220
    %v1011 = vunpack.c.l.b16 %v221
    %v1012 = vunpack.c.h.b16 %v221
    %v1013 = vunpack.c.l.b16 %v222
    %v1014 = vunpack.c.h.b16 %v222
    %v1015 = vunpack.c.l.b16 %v223
    %v1016 = vunpack.c.h.b16 %v223
    %v1017 = vunpack.c.l.b16 %v224
    %v1018 = vunpack.c.h.b16 %v224
    %v1019 = vunpack.c.l.b16 %v225
    %v1020 = vunpack.c.h.b16 %v225
    %v1021 = vunpack.c.l.b16 %v226
    %v1022 = vunpack.c.h.b16 %v226
    %v1023 = vunpack.c.l.b16 %v227
    %v1024 = vunpack.c.h.b16 %v227
    %v1025 = vunpack.c.l.b16 %v228
    %v1026 = vunpack.c.h.b16 %v228
    %v1027 = vunpack.c.l.b16 %v229
    %v1028 = vunpack.c.h.b16 %v229
    %v1029 = vunpack.c.l.b16 %v230
    %v1030 = vunpack.c.h.b16 %v230
    %v1031 = vunpack.c.l.b16 %v231
    %v1032 = vunpack.c.h.b16 %v231
    %v1033 = vunpack.c.l.b16 %v232
    %v1034 = vunpack.c.h.b16 %v232
    %v1035 = vunpack.c.l.b16 %v233
    %v1036 = vunpack.c.h.b16 %v233
    %v1037 = vunpack.c.l.b16 %v234
    %v1038 = vunpack.c.h.b16 %v234
    %v1039 = vunpack.c.l.b16 %v235
    %v1040 = vunpack.c.h.b16 %v235
    %v1041 = vunpack.c.l.b16 %v236
    %v1042 = vunpack.c.h.b16 %v236
    %v1043 = vunpack.c.l.b16 %v237
    %v1044 = vunpack.c.h.b16 %v237
    %v1045 = vunpack.c.l.b16 %v238
    %v1046 = vunpack.c.h.b16 %v238
    %v1047 = vunpack.c.l.b16 %v239
    %v1048 = vunpack.c.h.b16 %v239
    %v1049 = vunpack.c.l.b16 %v240
    %v1050 = vunpack.c.h.b16 %v240
    %v1051 = vunpack.c.l.b16 %v241
    %v1052 = vunpack.c.h.b16 %v241
    %v1053 = vunpack.c.l.b16 %v242
    %v1054 = vunpack.c.h.b16 %v242
    %v1055 = vunpack.c.l.b16 %v243
    %v1056 = vunpack.c.h.b16 %v243
    %v1057 = vunpack.c.l.b16 %v244
    %v1058 = vunpack.c.h.b16 %v244
    %v1059 = vunpack.c.l.b16 %v245
    %v1060 = vunpack.c.h.b16 %v245
    %v1061 = vunpack.c.l.b16 %v246
    %v1062 = vunpack.c.h.b16 %v246
    %v1063 = vunpack.c.l.b16 %v247
    %v1064 = vunpack.c.h.b16 %v247
    %v1065 = vunpack.c.l.b16 %v248
    %v1066 = vunpack.c.h.b16 %v248
    %v1067 = vunpack.c.l.b16 %v249
    %v1068 = vunpack.c.h.b16 %v249
    %v1069 = vunpack.c.l.b16 %v250
    %v1070 = vunpack.c.h.b16 %v250
    %v1071 = vunpack.c.l.b16 %v251
    %v1072 = vunpack.c.h.b16 %v251
    %v1073 = vunpack.c.l.b16 %v252
    %v1074 = vunpack.c.h.b16 %v252
    %v1075 = vunpack.c.l.b16 %v253
    %v1076 = vunpack.c.h.b16 %v253
    %v1077 = vunpack.c.l.b16 %v254
    %v1078 = vunpack.c.h.b16 %v254
    %v1079 = vunpack.c.l.b16 %v255
    %v1080 = vunpack.c.h.b16 %v255
    %v1081 = vunpack.c.l.b16 %v256
    %v1082 = vunpack.c.h.b16 %v256
    %v1083 = vunpack.c.l.b16 %v257
    %v1084 = vunpack.c.h.b16 %v257
    %v1085 = vunpack.c.l.b16 %v258
    %v1086 = vunpack.c.h.b16 %v258
    %v1087 = vunpack.c.l.b16 %v259
    %v1088 = vunpack.c.h.b16 %v259
    %v1089 = vunpack.c.l.b16 %v260
    %v1090 = vunpack.c.h.b16 %v260
    %v1091 = vunpack.c.l.b16 %v261
    %v1092 = vunpack.c.h.b16 %v261
    %v1093 = vunpack.c.l.b16 %v262
    %v1094 = vunpack.c.h.b16 %v262
    %v1095 = vunpack.c.l.b16 %v263
    %v1096 = vunpack.c.h.b16 %v263
    %v1097 = vunpack.c.l.b16 %v264
    %v1098 = vunpack.c.h.b16 %v264
    %v1099 = vunpack.c.l.b16 %v265
    %v1100 = vunpack.c.h.b16 %v265
    %v1101 = vunpack.c.l.b16 %v266
    %v1102 = vunpack.c.h.b16 %v266
    %v1103 = vunpack.c.l.b16 %v267
    %v1104 = vunpack.c.h.b16 %v267
    %v1105 = vunpack.c.l.b16 %v268
    %v1106 = vunpack.c.h.b16 %v268
    %v1107 = vunpack.c.l.b16 %v269
    %v1108 = vunpack.c.h.b16 %v269
    %v1109 = vunpack.c.l.b16 %v270
    %v1110 = vunpack.c.h.b16 %v270
    %v1111 = vunpack.c.l.b16 %v271
    %v1112 = vunpack.c.h.b16 %v271
    %v1113 = vunpack.c.l.b16 %v272
    %v1114 = vunpack.c.h.b16 %v272
    %v1115 = vunpack.c.l.b16 %v273
    %v1116 = vunpack.c.h.b16 %v273
    %v1117 = vunpack.c.l.b16 %v274
    %v1118 = vunpack.c.h.b16 %v274
    %v1119 = vunpack.c.l.b16 %v275
    %v1120 = vunpack.c.h.b16 %v275
    %v1121 = vunpack.c.l.b16 %v276
    %v1122 = vunpack.c.h.b16 %v276
    %v1123 = vunpack.c.l.b16 %v277
    %v1124 = vunpack.c.h.b16 %v277
    %v1125 = vunpack.c.l.b16 %v278
    %v1126 = vunpack.c.h.b16 %v278
    %v1127 = vpack.c.b16 %v619, %v615
    %v1128 = vpack.c.b16 %v620, %v616
    %v1129 = vpack.c.b16 %v621, %v617
    %v1130 = vpack.c.b16 %v622, %v618
    %v1131 = vpack.c.b16 %v627, %v623
    %v1132 = vpack.c.b16 %v628, %v624
    %v1133 = vpack.c.b16 %v629, %v625
    %v1134 = vpack.c.b16 %v630, %v626
    %v1135 = vpack.c.b16 %v635, %v631
    %v1136 = vpack.c.b16 %v636, %v632
    %v1137 = vpack.c.b16 %v637, %v633
    %v1138 = vpack.c.b16 %v638, %v634
    %v1139 = vpack.c.b16 %v643, %v639
    %v1140 = vpack.c.b16 %v644, %v640
    %v1141 = vpack.c.b16 %v645, %v641
    %v1142 = vpack.c.b16 %v646, %v642
    %v1143 = vpack.c.b16 %v651, %v647
    %v1144 = vpack.c.b16 %v652, %v648
    %v1145 = vpack.c.b16 %v653, %v649
    %v1146 = vpack.c.b16 %v654, %v650
    %v1147 = vpack.c.b16 %v659, %v655
    %v1148 = vpack.c.b16 %v660, %v656
    %v1149 = vpack.c.b16 %v661, %v657
    %v1150 = vpack.c.b16 %v662, %v658
    %v1151 = vpack.c.b16 %v667, %v663
    %v1152 = vpack.c.b16 %v668, %v664
    %v1153 = vpack.c.b16 %v669, %v665
    %v1154 = vpack.c.b16 %v670, %v666
    %v1155 = vpack.c.b16 %v675, %v671
    %v1156 = vpack.c.b16 %v676, %v672
    %v1157 = vpack.c.b16 %v677, %v673
    %v1158 = vpack.c.b16 %v678, %v674
    %v1159 = vpack.c.b16 %v683, %v679
    %v1160 = vpack.c.b16 %v684, %v680
    %v1161 = vpack.c.b16 %v685, %v681
    %v1162 = vpack.c.b16 %v686, %v682
    %v1163 = vpack.c.b16 %v691, %v687
    %v1164 = vpack.c.b16 %v692, %v688
    %v1165 = vpack.c.b16 %v693, %v689
    %v1166 = vpack.c.b16 %v694, %v690
    %v1167 = vpack.c.b16 %v699, %v695
    %v1168 = vpack.c.b16 %v700, %v696
    %v1169 = vpack.c.b16 %v701, %v697
    %v1170 = vpack.c.b16 %v702, %v698
    %v1171 = vpack.c.b16 %v707, %v703
    %v1172 = vpack.c.b16 %v708, %v704
    %v1173 = vpack.c.b16 %v709, %v705
    %v1174 = vpack.c.b16 %v710, %v706
    %v1175 = vpack.c.b16 %v715, %v711
    %v1176 = vpack.c.b16 %v716, %v712
    %v1177 = vpack.c.b16 %v717, %v713
    %v1178 = vpack.c.b16 %v718, %v714
    %v1179 = vpack.c.b16 %v723, %v719
    %v1180 = vpack.c.b16 %v724, %v720
    %v1181 = vpack.c.b16 %v725, %v721
    %v1182 = vpack.c.b16 %v726, %v722
    %v1183 = vpack.c.b16 %v731, %v727
    %v1184 = vpack.c.b16 %v732, %v728
    %v1185 = vpack.c.b16 %v733, %v729
    %v1186 = vpack.c.b16 %v734, %v730
    %v1187 = vpack.c.b16 %v739, %v735
    %v1188 = vpack.c.b16 %v740, %v736
    %v1189 = vpack.c.b16 %v741, %v737
    %v1190 = vpack.c.b16 %v742, %v738
    %v1191 = vpack.c.b16 %v747, %v743
    %v1192 = vpack.c.b16 %v748, %v744
    %v1193 = vpack.c.b16 %v749, %v745
    %v1194 = vpack.c.b16 %v750, %v746
    %v1195 = vpack.c.b16 %v755, %v751
    %v1196 = vpack.c.b16 %v756, %v752
    %v1197 = vpack.c.b16 %v757, %v753
    %v1198 = vpack.c.b16 %v758, %v754
    %v1199 = vpack.c.b16 %v763, %v759
    %v1200 = vpack.c.b16 %v764, %v760
    %v1201 = vpack.c.b16 %v765, %v761
    %v1202 = vpack.c.b16 %v766, %v762
    %v1203 = vpack.c.b16 %v771, %v767
    %v1204 = vpack.c.b16 %v772, %v768
    %v1205 = vpack.c.b16 %v773, %v769
    %v1206 = vpack.c.b16 %v774, %v770
    %v1207 = vpack.c.b16 %v779, %v775
    %v1208 = vpack.c.b16 %v780, %v776
    %v1209 = vpack.c.b16 %v781, %v777
    %v1210 = vpack.c.b16 %v782, %v778
    %v1211 = vpack.c.b16 %v787, %v783
    %v1212 = vpack.c.b16 %v788, %v784
    %v1213 = vpack.c.b16 %v789, %v785
    %v1214 = vpack.c.b16 %v790, %v786
    %v1215 = vpack.c.b16 %v795, %v791
    %v1216 = vpack.c.b16 %v796, %v792
    %v1217 = vpack.c.b16 %v797, %v793
    %v1218 = vpack.c.b16 %v798, %v794
    %v1219 = vpack.c.b16 %v803, %v799
    %v1220 = vpack.c.b16 %v804, %v800
    %v1221 = vpack.c.b16 %v805, %v801
    %v1222 = vpack.c.b16 %v806, %v802
    %v1223 = vpack.c.b16 %v811, %v807
    %v1224 = vpack.c.b16 %v812, %v808
    %v1225 = vpack.c.b16 %v813, %v809
    %v1226 = vpack.c.b16 %v814, %v810
    %v1227 = vpack.c.b16 %v819, %v815
    %v1228 = vpack.c.b16 %v820, %v816
    %v1229 = vpack.c.b16 %v821, %v817
    %v1230 = vpack.c.b16 %v822, %v818
    %v1231 = vpack.c.b16 %v827, %v823
    %v1232 = vpack.c.b16 %v828, %v824
    %v1233 = vpack.c.b16 %v829, %v825
    %v1234 = vpack.c.b16 %v830, %v826
    %v1235 = vpack.c.b16 %v835, %v831
    %v1236 = vpack.c.b16 %v836, %v832
    %v1237 = vpack.c.b16 %v837, %v833
    %v1238 = vpack.c.b16 %v838, %v834
    %v1239 = vpack.c.b16 %v843, %v839
    %v1240 = vpack.c.b16 %v844, %v840
    %v1241 = vpack.c.b16 %v845, %v841
    %v1242 = vpack.c.b16 %v846, %v842
    %v1243 = vpack.c.b16 %v851, %v847
    %v1244 = vpack.c.b16 %v852, %v848
    %v1245 = vpack.c.b16 %v853, %v849
    %v1246 = vpack.c.b16 %v854, %v850
    %v1247 = vpack.c.b16 %v859, %v855
    %v1248 = vpack.c.b16 %v860, %v856
    %v1249 = vpack.c.b16 %v861, %v857
    %v1250 = vpack.c.b16 %v862, %v858
    %v1251 = vpack.c.b16 %v867, %v863
    %v1252 = vpack.c.b16 %v868, %v864
    %v1253 = vpack.c.b16 %v869, %v865
    %v1254 = vpack.c.b16 %v870, %v866
    %v1255 = vpack.c.b16 %v875, %v871
    %v1256 = vpack.c.b16 %v876, %v872
    %v1257 = vpack.c.b16 %v877, %v873
    %v1258 = vpack.c.b16 %v878, %v874
    %v1259 = vpack.c.b16 %v883, %v879
    %v1260 = vpack.c.b16 %v884, %v880
    %v1261 = vpack.c.b16 %v885, %v881
    %v1262 = vpack.c.b16 %v886, %v882
    %v1263 = vpack.c.b16 %v891, %v887
    %v1264 = vpack.c.b16 %v892, %v888
    %v1265 = vpack.c.b16 %v893, %v889
    %v1266 = vpack.c.b16 %v894, %v890
    %v1267 = vpack.c.b16 %v899, %v895
    %v1268 = vpack.c.b16 %v900, %v896
    %v1269 = vpack.c.b16 %v901, %v897
    %v1270 = vpack.c.b16 %v902, %v898
    %v1271 = vpack.c.b16 %v907, %v903
    %v1272 = vpack.c.b16 %v908, %v904
    %v1273 = vpack.c.b16 %v909, %v905
    %v1274 = vpack.c.b16 %v910, %v906
    %v1275 = vpack.c.b16 %v915, %v911
    %v1276 = vpack.c.b16 %v916, %v912
    %v1277 = vpack.c.b16 %v917, %v913
    %v1278 = vpack.c.b16 %v918, %v914
    %v1279 = vpack.c.b16 %v923, %v919
    %v1280 = vpack.c.b16 %v924, %v920
    %v1281 = vpack.c.b16 %v925, %v921
    %v1282 = vpack.c.b16 %v926, %v922
    %v1283 = vpack.c.b16 %v931, %v927
    %v1284 = vpack.c.b16 %v932, %v928
    %v1285 = vpack.c.b16 %v933, %v929
    %v1286 = vpack.c.b16 %v934, %v930
    %v1287 = vpack.c.b16 %v939, %v935
    %v1288 = vpack.c.b16 %v940, %v936
    %v1289 = vpack.c.b16 %v941, %v937
    %v1290 = vpack.c.b16 %v942, %v938
    %v1291 = vpack.c.b16 %v947, %v943
    %v1292 = vpack.c.b16 %v948, %v944
    %v1293 = vpack.c.b16 %v949, %v945
    %v1294 = vpack.c.b16 %v950, %v946
    %v1295 = vpack.c.b16 %v955, %v951
    %v1296 = vpack.c.b16 %v956, %v952
    %v1297 = vpack.c.b16 %v957, %v953
    %v1298 = vpack.c.b16 %v958, %v954
    %v1299 = vpack.c.b16 %v963, %v959
    %v1300 = vpack.c.b16 %v964, %v960
    %v1301 = vpack.c.b16 %v965, %v961
    %v1302 = vpack.c.b16 %v966, %v962
    %v1303 = vpack.c.b16 %v971, %v967
    %v1304 = vpack.c.b16 %v972, %v968
    %v1305 = vpack.c.b16 %v973, %v969
    %v1306 = vpack.c.b16 %v974, %v970
    %v1307 = vpack.c.b16 %v979, %v975
    %v1308 = vpack.c.b16 %v980, %v976
    %v1309 = vpack.c.b16 %v981, %v977
    %v1310 = vpack.c.b16 %v982, %v978
    %v1311 = vpack.c.b16 %v987, %v983
    %v1312 = vpack.c.b16 %v988, %v984
    %v1313 = vpack.c.b16 %v989, %v985
    %v1314 = vpack.c.b16 %v990, %v986
    %v1315 = vpack.c.b16 %v995, %v991
    %v1316 = vpack.c.b16 %v996, %v992
    %v1317 = vpack.c.b16 %v997, %v993
    %v1318 = vpack.c.b16 %v998, %v994
    %v1319 = vpack.c.b16 %v1003, %v999
    %v1320 = vpack.c.b16 %v1004, %v1000
    %v1321 = vpack.c.b16 %v1005, %v1001
    %v1322 = vpack.c.b16 %v1006, %v1002
    %v1323 = vpack.c.b16 %v1011, %v1007
    %v1324 = vpack.c.b16 %v1012, %v1008
    %v1325 = vpack.c.b16 %v1013, %v1009
    %v1326 = vpack.c.b16 %v1014, %v1010
    %v1327 = vpack.c.b16 %v1019, %v1015
    %v1328 = vpack.c.b16 %v1020, %v1016
    %v1329 = vpack.c.b16 %v1021, %v1017
    %v1330 = vpack.c.b16 %v1022, %v1018
    %v1331 = vpack.c.b16 %v1027, %v1023
    %v1332 = vpack.c.b16 %v1028, %v1024
    %v1333 = vpack.c.b16 %v1029, %v1025
    %v1334 = vpack.c.b16 %v1030, %v1026
    %v1335 = vpack.c.b16 %v1035, %v1031
    %v1336 = vpack.c.b16 %v1036, %v1032
    %v1337 = vpack.c.b16 %v1037, %v1033
    %v1338 = vpack.c.b16 %v1038, %v1034
    %v1339 = vpack.c.b16 %v1043, %v1039
    %v1340 = vpack.c.b16 %v1044, %v1040
    %v1341 = vpack.c.b16 %v1045, %v1041
    %v1342 = vpack.c.b16 %v1046, %v1042
    %v1343 = vpack.c.b16 %v1051, %v1047
    %v1344 = vpack.c.b16 %v1052, %v1048
    %v1345 = vpack.c.b16 %v1053, %v1049
    %v1346 = vpack.c.b16 %v1054, %v1050
    %v1347 = vpack.c.b16 %v1059, %v1055
    %v1348 = vpack.c.b16 %v1060, %v1056
    %v1349 = vpack.c.b16 %v1061, %v1057
    %v1350 = vpack.c.b16 %v1062, %v1058
    %v1351 = vpack.c.b16 %v1067, %v1063
    %v1352 = vpack.c.b16 %v1068, %v1064
    %v1353 = vpack.c.b16 %v1069, %v1065
    %v1354 = vpack.c.b16 %v1070, %v1066
    %v1355 = vpack.c.b16 %v1075, %v1071
    %v1356 = vpack.c.b16 %v1076, %v1072
    %v1357 = vpack.c.b16 %v1077, %v1073
    %v1358 = vpack.c.b16 %v1078, %v1074
    %v1359 = vpack.c.b16 %v1083, %v1079
    %v1360 = vpack.c.b16 %v1084, %v1080
    %v1361 = vpack.c.b16 %v1085, %v1081
    %v1362 = vpack.c.b16 %v1086, %v1082
    %v1363 = vpack.c.b16 %v1091, %v1087
    %v1364 = vpack.c.b16 %v1092, %v1088
    %v1365 = vpack.c.b16 %v1093, %v1089
    %v1366 = vpack.c.b16 %v1094, %v1090
    %v1367 = vpack.c.b16 %v1099, %v1095
    %v1368 = vpack.c.b16 %v1100, %v1096
    %v1369 = vpack.c.b16 %v1101, %v1097
    %v1370 = vpack.c.b16 %v1102, %v1098
    %v1371 = vpack.c.b16 %v1107, %v1103
    %v1372 = vpack.c.b16 %v1108, %v1104
    %v1373 = vpack.c.b16 %v1109, %v1105
    %v1374 = vpack.c.b16 %v1110, %v1106
    %v1375 = vpack.c.b16 %v1115, %v1111
    %v1376 = vpack.c.b16 %v1116, %v1112
    %v1377 = vpack.c.b16 %v1117, %v1113
    %v1378 = vpack.c.b16 %v1118, %v1114
    %v1379 = vpack.c.b16 %v1123, %v1119
    %v1380 = vpack.c.b16 %v1124, %v1120
    %v1381 = vpack.c.b16 %v1125, %v1121
    %v1382 = vpack.c.b16 %v1126, %v1122
    %1639 = vmatprep.subr.bf16.mxu0 %v1156
    %1640 = vmatpush1.bf16.msra.mxu0 %v1155
    %1641 = vmatprep.subr.bf16.mxu0 %v1152
    %1642 = vmatpush1.bf16.msra.mxu0 %v1151
    %1643 = vmatprep.subr.bf16.mxu0 %v1148
    %1644 = vmatpush1.bf16.msra.mxu0 %v1147
    %1645 = vmatprep.subr.bf16.mxu0 %v1144
    %1646 = vmatpush1.bf16.msra.mxu0 %v1143
    %1647 = vmatprep.subr.bf16.mxu0 %v1140
    %1648 = vmatpush1.bf16.msra.mxu0 %v1139
    %1649 = vmatprep.subr.bf16.mxu0 %v1136
    %1650 = vmatpush1.bf16.msra.mxu0 %v1135
    %1651 = vmatprep.subr.bf16.mxu0 %v1132
    %1652 = vmatpush1.bf16.msra.mxu0 %v1131
    %1653 = vmatprep.subr.bf16.mxu0 %v1128
    %1654 = vmatpush1.bf16.msra.mxu0 %v1127
    %1655 = vmatprep.subr.bf16.mxu0 %v1188
    %1656 = vmatpush2.bf16.msra.mxu0 %v1187
    %1657 = vmatprep.subr.bf16.mxu0 %v1184
    %1658 = vmatpush2.bf16.msra.mxu0 %v1183
    %1659 = vmatprep.subr.bf16.mxu0 %v1180
    %1660 = vmatpush2.bf16.msra.mxu0 %v1179
    %1661 = vmatprep.subr.bf16.mxu0 %v1176
    %1662 = vmatpush2.bf16.msra.mxu0 %v1175
    %1663 = vmatprep.subr.bf16.mxu0 %v1172
    %1664 = vmatpush2.bf16.msra.mxu0 %v1171
    %1665 = vmatprep.subr.bf16.mxu0 %v1168
    %1666 = vmatpush2.bf16.msra.mxu0 %v1167
    %1667 = vmatprep.subr.bf16.mxu0 %v1164
    %1668 = vmatpush2.bf16.msra.mxu0 %v1163
    %1669 = vmatprep.subr.bf16.mxu0 %v1160
    %1670 = vmatpush2.bf16.msra.mxu0 %v1159
    %1671 = vmatprep.mubr.bf16.mxu0 %v339
    %1672 = vmatmul.mubr.bf16.gmra.mxu0 %v325
    %v1673 = vpop.f32.mrf.mxu0
    %v1674 = vadd.f32 %v284, %v1673
    %v1675 = vpop.f32.mrf.mxu0
    %v1676 = vadd.f32 %v288, %v1675
    %v1677 = vpop.f32.mrf.mxu0
    %v1678 = vpop.f32.mrf.mxu0
    %1679 = vdwg.mxu0
    %1680 = vmatprep.subr.bf16.mxu0 %v1220
    %1681 = vmatpush1.bf16.msra.mxu0 %v1219
    %1682 = vmatprep.subr.bf16.mxu0 %v1216
    %1683 = vmatpush1.bf16.msra.mxu0 %v1215
    %1684 = vmatprep.subr.bf16.mxu0 %v1212
    %1685 = vmatpush1.bf16.msra.mxu0 %v1211
    %1686 = vmatprep.subr.bf16.mxu0 %v1208
    %1687 = vmatpush1.bf16.msra.mxu0 %v1207
    %1688 = vmatprep.subr.bf16.mxu0 %v1204
    %1689 = vmatpush1.bf16.msra.mxu0 %v1203
    %1690 = vmatprep.subr.bf16.mxu0 %v1200
    %1691 = vmatpush1.bf16.msra.mxu0 %v1199
    %1692 = vmatprep.subr.bf16.mxu0 %v1196
    %1693 = vmatpush1.bf16.msra.mxu0 %v1195
    %1694 = vmatprep.subr.bf16.mxu0 %v1192
    %1695 = vmatpush1.bf16.msra.mxu0 %v1191
    %1696 = vmatprep.subr.bf16.mxu0 %v1252
    %1697 = vmatpush2.bf16.msra.mxu0 %v1251
    %1698 = vmatprep.subr.bf16.mxu0 %v1248
    %1699 = vmatpush2.bf16.msra.mxu0 %v1247
    %1700 = vmatprep.subr.bf16.mxu0 %v1244
    %1701 = vmatpush2.bf16.msra.mxu0 %v1243
    %1702 = vmatprep.subr.bf16.mxu0 %v1240
    %1703 = vmatpush2.bf16.msra.mxu0 %v1239
    %1704 = vmatprep.subr.bf16.mxu0 %v1236
    %1705 = vmatpush2.bf16.msra.mxu0 %v1235
    %1706 = vmatprep.subr.bf16.mxu0 %v1232
    %1707 = vmatpush2.bf16.msra.mxu0 %v1231
    %1708 = vmatprep.subr.bf16.mxu0 %v1228
    %1709 = vmatpush2.bf16.msra.mxu0 %v1227
    %1710 = vmatprep.subr.bf16.mxu0 %v1224
    %1711 = vmatpush2.bf16.msra.mxu0 %v1223
    %1712 = vmatprep.mubr.bf16.mxu0 %v349
    %1713 = vmatmul.mubr.bf16.gmra.mxu0 %v347
    %v1714 = vpop.f32.mrf.mxu0
    %v1715 = vadd.f32 %v1674, %v1714
    %v1716 = vpop.f32.mrf.mxu0
    %v1717 = vadd.f32 %v1676, %v1716
    %v1718 = vpop.f32.mrf.mxu0
    %v1719 = vpop.f32.mrf.mxu0
    %1720 = vdwg.mxu0
    %1721 = vmatprep.subr.bf16.mxu0 %v1284
    %1722 = vmatpush1.bf16.msra.mxu0 %v1283
    %1723 = vmatprep.subr.bf16.mxu0 %v1280
    %1724 = vmatpush1.bf16.msra.mxu0 %v1279
    %1725 = vmatprep.subr.bf16.mxu0 %v1276
    %1726 = vmatpush1.bf16.msra.mxu0 %v1275
    %1727 = vmatprep.subr.bf16.mxu0 %v1272
    %1728 = vmatpush1.bf16.msra.mxu0 %v1271
    %1729 = vmatprep.subr.bf16.mxu0 %v1268
    %1730 = vmatpush1.bf16.msra.mxu0 %v1267
    %1731 = vmatprep.subr.bf16.mxu0 %v1264
    %1732 = vmatpush1.bf16.msra.mxu0 %v1263
    %1733 = vmatprep.subr.bf16.mxu0 %v1260
    %1734 = vmatpush1.bf16.msra.mxu0 %v1259
    %1735 = vmatprep.subr.bf16.mxu0 %v1256
    %1736 = vmatpush1.bf16.msra.mxu0 %v1255
    %1737 = vmatprep.subr.bf16.mxu0 %v1316
    %1738 = vmatpush2.bf16.msra.mxu0 %v1315
    %1739 = vmatprep.subr.bf16.mxu0 %v1312
    %1740 = vmatpush2.bf16.msra.mxu0 %v1311
    %1741 = vmatprep.subr.bf16.mxu0 %v1308
    %1742 = vmatpush2.bf16.msra.mxu0 %v1307
    %1743 = vmatprep.subr.bf16.mxu0 %v1304
    %1744 = vmatpush2.bf16.msra.mxu0 %v1303
    %1745 = vmatprep.subr.bf16.mxu0 %v1300
    %1746 = vmatpush2.bf16.msra.mxu0 %v1299
    %1747 = vmatprep.subr.bf16.mxu0 %v1296
    %1748 = vmatpush2.bf16.msra.mxu0 %v1295
    %1749 = vmatprep.subr.bf16.mxu0 %v1292
    %1750 = vmatpush2.bf16.msra.mxu0 %v1291
    %1751 = vmatprep.subr.bf16.mxu0 %v1288
    %1752 = vmatpush2.bf16.msra.mxu0 %v1287
    %1753 = vmatprep.mubr.bf16.mxu0 %v346
    %1754 = vmatmul.mubr.bf16.gmra.mxu0 %v332
    %v1755 = vpop.f32.mrf.mxu0
    %v1756 = vadd.f32 %v1715, %v1755
    %v1757 = vpop.f32.mrf.mxu0
    %v1758 = vadd.f32 %v1717, %v1757
    %v1759 = vpop.f32.mrf.mxu0
    %v1760 = vpop.f32.mrf.mxu0
    %1761 = vdwg.mxu0
    %1762 = vmatprep.subr.bf16.mxu0 %v1348
    %1763 = vmatpush1.bf16.msra.mxu0 %v1347
    %1764 = vmatprep.subr.bf16.mxu0 %v1344
    %1765 = vmatpush1.bf16.msra.mxu0 %v1343
    %1766 = vmatprep.subr.bf16.mxu0 %v1340
    %1767 = vmatpush1.bf16.msra.mxu0 %v1339
    %1768 = vmatprep.subr.bf16.mxu0 %v1336
    %1769 = vmatpush1.bf16.msra.mxu0 %v1335
    %1770 = vmatprep.subr.bf16.mxu0 %v1332
    %1771 = vmatpush1.bf16.msra.mxu0 %v1331
    %1772 = vmatprep.subr.bf16.mxu0 %v1328
    %1773 = vmatpush1.bf16.msra.mxu0 %v1327
    %1774 = vmatprep.subr.bf16.mxu0 %v1324
    %1775 = vmatpush1.bf16.msra.mxu0 %v1323
    %1776 = vmatprep.subr.bf16.mxu0 %v1320
    %1777 = vmatpush1.bf16.msra.mxu0 %v1319
    %1778 = vmatprep.subr.bf16.mxu0 %v1380
    %1779 = vmatpush2.bf16.msra.mxu0 %v1379
    %1780 = vmatprep.subr.bf16.mxu0 %v1376
    %1781 = vmatpush2.bf16.msra.mxu0 %v1375
    %1782 = vmatprep.subr.bf16.mxu0 %v1372
    %1783 = vmatpush2.bf16.msra.mxu0 %v1371
    %1784 = vmatprep.subr.bf16.mxu0 %v1368
    %1785 = vmatpush2.bf16.msra.mxu0 %v1367
    %1786 = vmatprep.subr.bf16.mxu0 %v1364
    %1787 = vmatpush2.bf16.msra.mxu0 %v1363
    %1788 = vmatprep.subr.bf16.mxu0 %v1360
    %1789 = vmatpush2.bf16.msra.mxu0 %v1359
    %1790 = vmatprep.subr.bf16.mxu0 %v1356
    %1791 = vmatpush2.bf16.msra.mxu0 %v1355
    %1792 = vmatprep.subr.bf16.mxu0 %v1352
    %1793 = vmatpush2.bf16.msra.mxu0 %v1351
    %1794 = vmatprep.mubr.bf16.mxu0 %v350
    %1795 = vmatmul.mubr.bf16.gmra.mxu0 %v348
    %v1796 = vpop.f32.mrf.mxu0
    %v1797 = vadd.f32 %v1756, %v1796
    %v1798 = vpop.f32.mrf.mxu0
    %v1799 = vadd.f32 %v1758, %v1798
    %v1800 = vpop.f32.mrf.mxu0
    %v1801 = vpop.f32.mrf.mxu0
    %1802 = vdwg.mxu0
    %1803 = vmatprep.subr.bf16.mxu0 %v1158
    %1804 = vmatpush1.bf16.msra.mxu0 %v1157
    %1805 = vmatprep.subr.bf16.mxu0 %v1154
    %1806 = vmatpush1.bf16.msra.mxu0 %v1153
    %1807 = vmatprep.subr.bf16.mxu0 %v1150
    %1808 = vmatpush1.bf16.msra.mxu0 %v1149
    %1809 = vmatprep.subr.bf16.mxu0 %v1146
    %1810 = vmatpush1.bf16.msra.mxu0 %v1145
    %1811 = vmatprep.subr.bf16.mxu0 %v1142
    %1812 = vmatpush1.bf16.msra.mxu0 %v1141
    %1813 = vmatprep.subr.bf16.mxu0 %v1138
    %1814 = vmatpush1.bf16.msra.mxu0 %v1137
    %1815 = vmatprep.subr.bf16.mxu0 %v1134
    %1816 = vmatpush1.bf16.msra.mxu0 %v1133
    %1817 = vmatprep.subr.bf16.mxu0 %v1130
    %1818 = vmatpush1.bf16.msra.mxu0 %v1129
    %1819 = vmatprep.subr.bf16.mxu0 %v1190
    %1820 = vmatpush2.bf16.msra.mxu0 %v1189
    %1821 = vmatprep.subr.bf16.mxu0 %v1186
    %1822 = vmatpush2.bf16.msra.mxu0 %v1185
    %1823 = vmatprep.subr.bf16.mxu0 %v1182
    %1824 = vmatpush2.bf16.msra.mxu0 %v1181
    %1825 = vmatprep.subr.bf16.mxu0 %v1178
    %1826 = vmatpush2.bf16.msra.mxu0 %v1177
    %1827 = vmatprep.subr.bf16.mxu0 %v1174
    %1828 = vmatpush2.bf16.msra.mxu0 %v1173
    %1829 = vmatprep.subr.bf16.mxu0 %v1170
    %1830 = vmatpush2.bf16.msra.mxu0 %v1169
    %1831 = vmatprep.subr.bf16.mxu0 %v1166
    %1832 = vmatpush2.bf16.msra.mxu0 %v1165
    %1833 = vmatprep.subr.bf16.mxu0 %v1162
    %1834 = vmatpush2.bf16.msra.mxu0 %v1161
    %1835 = vmatprep.mubr.bf16.mxu0 %v339
    %1836 = vmatmul.mubr.bf16.gmra.mxu0 %v325
    %v1837 = vpop.f32.mrf.mxu0
    %v1838 = vadd.f32 %v292, %v1837
    %v1839 = vpop.f32.mrf.mxu0
    %v1840 = vadd.f32 %v296, %v1839
    %v1841 = vpop.f32.mrf.mxu0
    %v1842 = vpop.f32.mrf.mxu0
    %1843 = vdwg.mxu0
    %1844 = vmatprep.subr.bf16.mxu0 %v1222
    %1845 = vmatpush1.bf16.msra.mxu0 %v1221
    %1846 = vmatprep.subr.bf16.mxu0 %v1218
    %1847 = vmatpush1.bf16.msra.mxu0 %v1217
    %1848 = vmatprep.subr.bf16.mxu0 %v1214
    %1849 = vmatpush1.bf16.msra.mxu0 %v1213
    %1850 = vmatprep.subr.bf16.mxu0 %v1210
    %1851 = vmatpush1.bf16.msra.mxu0 %v1209
    %1852 = vmatprep.subr.bf16.mxu0 %v1206
    %1853 = vmatpush1.bf16.msra.mxu0 %v1205
    %1854 = vmatprep.subr.bf16.mxu0 %v1202
    %1855 = vmatpush1.bf16.msra.mxu0 %v1201
    %1856 = vmatprep.subr.bf16.mxu0 %v1198
    %1857 = vmatpush1.bf16.msra.mxu0 %v1197
    %1858 = vmatprep.subr.bf16.mxu0 %v1194
    %1859 = vmatpush1.bf16.msra.mxu0 %v1193
    %1860 = vmatprep.subr.bf16.mxu0 %v1254
    %1861 = vmatpush2.bf16.msra.mxu0 %v1253
    %1862 = vmatprep.subr.bf16.mxu0 %v1250
    %1863 = vmatpush2.bf16.msra.mxu0 %v1249
    %1864 = vmatprep.subr.bf16.mxu0 %v1246
    %1865 = vmatpush2.bf16.msra.mxu0 %v1245
    %1866 = vmatprep.subr.bf16.mxu0 %v1242
    %1867 = vmatpush2.bf16.msra.mxu0 %v1241
    %1868 = vmatprep.subr.bf16.mxu0 %v1238
    %1869 = vmatpush2.bf16.msra.mxu0 %v1237
    %1870 = vmatprep.subr.bf16.mxu0 %v1234
    %1871 = vmatpush2.bf16.msra.mxu0 %v1233
    %1872 = vmatprep.subr.bf16.mxu0 %v1230
    %1873 = vmatpush2.bf16.msra.mxu0 %v1229
    %1874 = vmatprep.subr.bf16.mxu0 %v1226
    %1875 = vmatpush2.bf16.msra.mxu0 %v1225
    %1876 = vmatprep.mubr.bf16.mxu0 %v349
    %1877 = vmatmul.mubr.bf16.gmra.mxu0 %v347
    %v1878 = vpop.f32.mrf.mxu0
    %v1879 = vadd.f32 %v1838, %v1878
    %v1880 = vpop.f32.mrf.mxu0
    %v1881 = vadd.f32 %v1840, %v1880
    %v1882 = vpop.f32.mrf.mxu0
    %v1883 = vpop.f32.mrf.mxu0
    %1884 = vdwg.mxu0
    %1885 = vmatprep.subr.bf16.mxu0 %v1286
    %1886 = vmatpush1.bf16.msra.mxu0 %v1285
    %1887 = vmatprep.subr.bf16.mxu0 %v1282
    %1888 = vmatpush1.bf16.msra.mxu0 %v1281
    %1889 = vmatprep.subr.bf16.mxu0 %v1278
    %1890 = vmatpush1.bf16.msra.mxu0 %v1277
    %1891 = vmatprep.subr.bf16.mxu0 %v1274
    %1892 = vmatpush1.bf16.msra.mxu0 %v1273
    %1893 = vmatprep.subr.bf16.mxu0 %v1270
    %1894 = vmatpush1.bf16.msra.mxu0 %v1269
    %1895 = vmatprep.subr.bf16.mxu0 %v1266
    %1896 = vmatpush1.bf16.msra.mxu0 %v1265
    %1897 = vmatprep.subr.bf16.mxu0 %v1262
    %1898 = vmatpush1.bf16.msra.mxu0 %v1261
    %1899 = vmatprep.subr.bf16.mxu0 %v1258
    %1900 = vmatpush1.bf16.msra.mxu0 %v1257
    %1901 = vmatprep.subr.bf16.mxu0 %v1318
    %1902 = vmatpush2.bf16.msra.mxu0 %v1317
    %1903 = vmatprep.subr.bf16.mxu0 %v1314
    %1904 = vmatpush2.bf16.msra.mxu0 %v1313
    %1905 = vmatprep.subr.bf16.mxu0 %v1310
    %1906 = vmatpush2.bf16.msra.mxu0 %v1309
    %1907 = vmatprep.subr.bf16.mxu0 %v1306
    %1908 = vmatpush2.bf16.msra.mxu0 %v1305
    %1909 = vmatprep.subr.bf16.mxu0 %v1302
    %1910 = vmatpush2.bf16.msra.mxu0 %v1301
    %1911 = vmatprep.subr.bf16.mxu0 %v1298
    %1912 = vmatpush2.bf16.msra.mxu0 %v1297
    %1913 = vmatprep.subr.bf16.mxu0 %v1294
    %1914 = vmatpush2.bf16.msra.mxu0 %v1293
    %1915 = vmatprep.subr.bf16.mxu0 %v1290
    %1916 = vmatpush2.bf16.msra.mxu0 %v1289
    %1917 = vmatprep.mubr.bf16.mxu0 %v346
    %1918 = vmatmul.mubr.bf16.gmra.mxu0 %v332
    %v1919 = vpop.f32.mrf.mxu0
    %v1920 = vadd.f32 %v1879, %v1919
    %v1921 = vpop.f32.mrf.mxu0
    %v1922 = vadd.f32 %v1881, %v1921
    %v1923 = vpop.f32.mrf.mxu0
    %v1924 = vpop.f32.mrf.mxu0
    %1925 = vdwg.mxu0
    %1926 = vmatprep.subr.bf16.mxu0 %v1350
    %1927 = vmatpush1.bf16.msra.mxu0 %v1349
    %1928 = vmatprep.subr.bf16.mxu0 %v1346
    %1929 = vmatpush1.bf16.msra.mxu0 %v1345
    %1930 = vmatprep.subr.bf16.mxu0 %v1342
    %1931 = vmatpush1.bf16.msra.mxu0 %v1341
    %1932 = vmatprep.subr.bf16.mxu0 %v1338
    %1933 = vmatpush1.bf16.msra.mxu0 %v1337
    %1934 = vmatprep.subr.bf16.mxu0 %v1334
    %1935 = vmatpush1.bf16.msra.mxu0 %v1333
    %1936 = vmatprep.subr.bf16.mxu0 %v1330
    %1937 = vmatpush1.bf16.msra.mxu0 %v1329
    %1938 = vmatprep.subr.bf16.mxu0 %v1326
    %1939 = vmatpush1.bf16.msra.mxu0 %v1325
    %1940 = vmatprep.subr.bf16.mxu0 %v1322
    %1941 = vmatpush1.bf16.msra.mxu0 %v1321
    %1942 = vmatprep.subr.bf16.mxu0 %v1382
    %1943 = vmatpush2.bf16.msra.mxu0 %v1381
    %1944 = vmatprep.subr.bf16.mxu0 %v1378
    %1945 = vmatpush2.bf16.msra.mxu0 %v1377
    %1946 = vmatprep.subr.bf16.mxu0 %v1374
    %1947 = vmatpush2.bf16.msra.mxu0 %v1373
    %1948 = vmatprep.subr.bf16.mxu0 %v1370
    %1949 = vmatpush2.bf16.msra.mxu0 %v1369
    %1950 = vmatprep.subr.bf16.mxu0 %v1366
    %1951 = vmatpush2.bf16.msra.mxu0 %v1365
    %1952 = vmatprep.subr.bf16.mxu0 %v1362
    %1953 = vmatpush2.bf16.msra.mxu0 %v1361
    %1954 = vmatprep.subr.bf16.mxu0 %v1358
    %1955 = vmatpush2.bf16.msra.mxu0 %v1357
    %1956 = vmatprep.subr.bf16.mxu0 %v1354
    %1957 = vmatpush2.bf16.msra.mxu0 %v1353
    %1958 = vmatprep.mubr.bf16.mxu0 %v350
    %1959 = vmatmul.mubr.bf16.gmra.mxu0 %v348
    %v1960 = vpop.f32.mrf.mxu0
    %v1961 = vadd.f32 %v1920, %v1960
    %v1962 = vpop.f32.mrf.mxu0
    %v1963 = vadd.f32 %v1922, %v1962
    %v1964 = vpop.f32.mrf.mxu0
    %v1965 = vpop.f32.mrf.mxu0
    %1966 = vdwg.mxu0
    %v1967 = vmax.f32 %v1797, 0.0
    %v1968 = vmax.f32 %v1799, 0.0
    %v1969 = vmax.f32 %v1961, 0.0
    %v1970 = vmax.f32 %v1963, 0.0
    %v1971 = vmin.f32 %v1967, 6.0
    %v1972 = vmin.f32 %v1968, 6.0
    %v1973 = vmin.f32 %v1969, 6.0
    %v1974 = vmin.f32 %v1970, 6.0
    %v1975 = vpack.c.bf16 %v1971, %v1971
    %v1976 = vpack.c.bf16 %v1972, %v1972
    %v1977 = vpack.c.bf16 %v1973, %v1973
    %v1978 = vpack.c.bf16 %v1974, %v1974
    %v1979 = vld [vmem:[%s3] sm:$0xf]
    %v1980 = vld [vmem:[%s3 + $0x4] sm:$0xf]
    %v1981 = vld [vmem:[%s3 + $0x8] sm:$0xf]
    %v1982 = vld [vmem:[%s3 + $0xc] sm:$0xf]
    %v1983 = vld [vmem:[%s3 + $0x10] sm:$0xf]
    %v1984 = vld [vmem:[%s3 + $0x14] sm:$0xf]
    %v1985 = vld [vmem:[%s3 + $0x18] sm:$0xf]
    %v1986 = vld [vmem:[%s3 + $0x1c] sm:$0xf]
    %v1987 = vld [vmem:[%s3 + $0x20] sm:$0xf]
    %v1988 = vld [vmem:[%s3 + $0x24] sm:$0xf]
    %v1989 = vld [vmem:[%s3 + $0x28] sm:$0xf]
    %v1990 = vld [vmem:[%s3 + $0x2c] sm:$0xf]
    %v1991 = vld [vmem:[%s3 + $0x30] sm:$0xf]
    %v1992 = vld [vmem:[%s3 + $0x34] sm:$0xf]
    %v1993 = vld [vmem:[%s3 + $0x38] sm:$0xf]
    %v1994 = vld [vmem:[%s3 + $0x3c] sm:$0xf]
    %v1995 = vld [vmem:[%s3 + $0x40] sm:$0xf]
    %v1996 = vld [vmem:[%s3 + $0x44] sm:$0xf]
    %v1997 = vld [vmem:[%s3 + $0x48] sm:$0xf]
    %v1998 = vld [vmem:[%s3 + $0x4c] sm:$0xf]
    %v1999 = vld [vmem:[%s3 + $0x50] sm:$0xf]
    %v2000 = vld [vmem:[%s3 + $0x54] sm:$0xf]
    %v2001 = vld [vmem:[%s3 + $0x58] sm:$0xf]
    %v2002 = vld [vmem:[%s3 + $0x5c] sm:$0xf]
    %v2003 = vld [vmem:[%s3 + $0x60] sm:$0xf]
    %v2004 = vld [vmem:[%s3 + $0x64] sm:$0xf]
    %v2005 = vld [vmem:[%s3 + $0x68] sm:$0xf]
    %v2006 = vld [vmem:[%s3 + $0x6c] sm:$0xf]
    %v2007 = vld [vmem:[%s3 + $0x70] sm:$0xf]
    %v2008 = vld [vmem:[%s3 + $0x74] sm:$0xf]
    %v2009 = vld [vmem:[%s3 + $0x78] sm:$0xf]
    %v2010 = vld [vmem:[%s3 + $0x7c] sm:$0xf]
    %v2011 = vld [vmem:[%s3 + $0x80] sm:$0xf]
    %v2012 = vld [vmem:[%s3 + $0x84] sm:$0xf]
    %v2013 = vld [vmem:[%s3 + $0x88] sm:$0xf]
    %v2014 = vld [vmem:[%s3 + $0x8c] sm:$0xf]
    %v2015 = vld [vmem:[%s3 + $0x90] sm:$0xf]
    %v2016 = vld [vmem:[%s3 + $0x94] sm:$0xf]
    %v2017 = vld [vmem:[%s3 + $0x98] sm:$0xf]
    %v2018 = vld [vmem:[%s3 + $0x9c] sm:$0xf]
    %v2019 = vld [vmem:[%s3 + $0xa0] sm:$0xf]
    %v2020 = vld [vmem:[%s3 + $0xa4] sm:$0xf]
    %v2021 = vld [vmem:[%s3 + $0xa8] sm:$0xf]
    %v2022 = vld [vmem:[%s3 + $0xac] sm:$0xf]
    %v2023 = vld [vmem:[%s3 + $0xb0] sm:$0xf]
    %v2024 = vld [vmem:[%s3 + $0xb4] sm:$0xf]
    %v2025 = vld [vmem:[%s3 + $0xb8] sm:$0xf]
    %v2026 = vld [vmem:[%s3 + $0xbc] sm:$0xf]
    %v2027 = vld [vmem:[%s3 + $0xc0] sm:$0xf]
    %v2028 = vld [vmem:[%s3 + $0xc4] sm:$0xf]
    %v2029 = vld [vmem:[%s3 + $0xc8] sm:$0xf]
    %v2030 = vld [vmem:[%s3 + $0xcc] sm:$0xf]
    %v2031 = vld [vmem:[%s3 + $0xd0] sm:$0xf]
    %v2032 = vld [vmem:[%s3 + $0xd4] sm:$0xf]
    %v2033 = vld [vmem:[%s3 + $0xd8] sm:$0xf]
    %v2034 = vld [vmem:[%s3 + $0xdc] sm:$0xf]
    %v2035 = vld [vmem:[%s3 + $0xe0] sm:$0xf]
    %v2036 = vld [vmem:[%s3 + $0xe4] sm:$0xf]
    %v2037 = vld [vmem:[%s3 + $0xe8] sm:$0xf]
    %v2038 = vld [vmem:[%s3 + $0xec] sm:$0xf]
    %v2039 = vld [vmem:[%s3 + $0xf0] sm:$0xf]
    %v2040 = vld [vmem:[%s3 + $0xf4] sm:$0xf]
    %v2041 = vld [vmem:[%s3 + $0xf8] sm:$0xf]
    %v2042 = vld [vmem:[%s3 + $0xfc] sm:$0xf]
    %v2043 = vld [vmem:[%s4] sm:$0x1]
    %v2045 = vlaneseq
    %v2046 = vshrl.u32 %v2045, 7
    %v2047 = vsub.s32 0, %v2046
    %v2048 = vrot.slane %v2043, %v2047
    %v2114 = vunpack.c.l.b16 %v1979
    %v2115 = vunpack.c.l.b16 %v1980
    %v2116 = vunpack.c.l.b16 %v1981
    %v2117 = vunpack.c.l.b16 %v1982
    %v2118 = vunpack.c.l.b16 %v1983
    %v2119 = vunpack.c.l.b16 %v1984
    %v2120 = vunpack.c.l.b16 %v1985
    %v2121 = vunpack.c.l.b16 %v1986
    %v2122 = vunpack.c.l.b16 %v1987
    %v2123 = vunpack.c.l.b16 %v1988
    %v2124 = vunpack.c.l.b16 %v1989
    %v2125 = vunpack.c.l.b16 %v1990
    %v2126 = vunpack.c.l.b16 %v1991
    %v2127 = vunpack.c.l.b16 %v1992
    %v2128 = vunpack.c.l.b16 %v1993
    %v2129 = vunpack.c.l.b16 %v1994
    %v2130 = vunpack.c.l.b16 %v1995
    %v2131 = vunpack.c.l.b16 %v1996
    %v2132 = vunpack.c.l.b16 %v1997
    %v2133 = vunpack.c.l.b16 %v1998
    %v2134 = vunpack.c.l.b16 %v1999
    %v2135 = vunpack.c.l.b16 %v2000
    %v2136 = vunpack.c.l.b16 %v2001
    %v2137 = vunpack.c.l.b16 %v2002
    %v2138 = vunpack.c.l.b16 %v2003
    %v2139 = vunpack.c.l.b16 %v2004
    %v2140 = vunpack.c.l.b16 %v2005
    %v2141 = vunpack.c.l.b16 %v2006
    %v2142 = vunpack.c.l.b16 %v2007
    %v2143 = vunpack.c.l.b16 %v2008
    %v2144 = vunpack.c.l.b16 %v2009
    %v2145 = vunpack.c.l.b16 %v2010
    %v2146 = vunpack.c.l.b16 %v2011
    %v2147 = vunpack.c.l.b16 %v2012
    %v2148 = vunpack.c.l.b16 %v2013
    %v2149 = vunpack.c.l.b16 %v2014
    %v2150 = vunpack.c.l.b16 %v2015
    %v2151 = vunpack.c.l.b16 %v2016
    %v2152 = vunpack.c.l.b16 %v2017
    %v2153 = vunpack.c.l.b16 %v2018
    %v2154 = vunpack.c.l.b16 %v2019
    %v2155 = vunpack.c.l.b16 %v2020
    %v2156 = vunpack.c.l.b16 %v2021
    %v2157 = vunpack.c.l.b16 %v2022
    %v2158 = vunpack.c.l.b16 %v2023
    %v2159 = vunpack.c.l.b16 %v2024
    %v2160 = vunpack.c.l.b16 %v2025
    %v2161 = vunpack.c.l.b16 %v2026
    %v2162 = vunpack.c.l.b16 %v2027
    %v2163 = vunpack.c.l.b16 %v2028
    %v2164 = vunpack.c.l.b16 %v2029
    %v2165 = vunpack.c.l.b16 %v2030
    %v2166 = vunpack.c.l.b16 %v2031
    %v2167 = vunpack.c.l.b16 %v2032
    %v2168 = vunpack.c.l.b16 %v2033
    %v2169 = vunpack.c.l.b16 %v2034
    %v2170 = vunpack.c.l.b16 %v2035
    %v2171 = vunpack.c.l.b16 %v2036
    %v2172 = vunpack.c.l.b16 %v2037
    %v2173 = vunpack.c.l.b16 %v2038
    %v2174 = vunpack.c.l.b16 %v2039
    %v2175 = vunpack.c.l.b16 %v2040
    %v2176 = vunpack.c.l.b16 %v2041
    %v2177 = vunpack.c.l.b16 %v2042
    %v2178 = vpack.c.b16 %v2115, %v2114
    %v2179 = vpack.c.b16 %v2117, %v2116
    %v2180 = vpack.c.b16 %v2119, %v2118
    %v2181 = vpack.c.b16 %v2121, %v2120
    %v2182 = vpack.c.b16 %v2123, %v2122
    %v2183 = vpack.c.b16 %v2125, %v2124
    %v2184 = vpack.c.b16 %v2127, %v2126
    %v2185 = vpack.c.b16 %v2129, %v2128
    %v2186 = vpack.c.b16 %v2131, %v2130
    %v2187 = vpack.c.b16 %v2133, %v2132
    %v2188 = vpack.c.b16 %v2135, %v2134
    %v2189 = vpack.c.b16 %v2137, %v2136
    %v2190 = vpack.c.b16 %v2139, %v2138
    %v2191 = vpack.c.b16 %v2141, %v2140
    %v2192 = vpack.c.b16 %v2143, %v2142
    %v2193 = vpack.c.b16 %v2145, %v2144
    %v2194 = vpack.c.b16 %v2147, %v2146
    %v2195 = vpack.c.b16 %v2149, %v2148
    %v2196 = vpack.c.b16 %v2151, %v2150
    %v2197 = vpack.c.b16 %v2153, %v2152
    %v2198 = vpack.c.b16 %v2155, %v2154
    %v2199 = vpack.c.b16 %v2157, %v2156
    %v2200 = vpack.c.b16 %v2159, %v2158
    %v2201 = vpack.c.b16 %v2161, %v2160
    %v2202 = vpack.c.b16 %v2163, %v2162
    %v2203 = vpack.c.b16 %v2165, %v2164
    %v2204 = vpack.c.b16 %v2167, %v2166
    %v2205 = vpack.c.b16 %v2169, %v2168
    %v2206 = vpack.c.b16 %v2171, %v2170
    %v2207 = vpack.c.b16 %v2173, %v2172
    %v2208 = vpack.c.b16 %v2175, %v2174
    %v2209 = vpack.c.b16 %v2177, %v2176
    %2242 = vmatprep.subr.bf16.mxu0 0
    %2243 = vmatpush1.bf16.msra.mxu0 %v2185
    %2244 = vmatprep.subr.bf16.mxu0 0
    %2245 = vmatpush1.bf16.msra.mxu0 %v2184
    %2246 = vmatprep.subr.bf16.mxu0 0
    %2247 = vmatpush1.bf16.msra.mxu0 %v2183
    %2248 = vmatprep.subr.bf16.mxu0 0
    %2249 = vmatpush1.bf16.msra.mxu0 %v2182
    %2250 = vmatprep.subr.bf16.mxu0 0
    %2251 = vmatpush1.bf16.msra.mxu0 %v2181
    %2252 = vmatprep.subr.bf16.mxu0 0
    %2253 = vmatpush1.bf16.msra.mxu0 %v2180
    %2254 = vmatprep.subr.bf16.mxu0 0
    %2255 = vmatpush1.bf16.msra.mxu0 %v2179
    %2256 = vmatprep.subr.bf16.mxu0 0
    %2257 = vmatpush1.bf16.msra.mxu0 %v2178
    %2258 = vmatprep.subr.bf16.mxu0 0
    %2259 = vmatpush2.bf16.msra.mxu0 %v2193
    %2260 = vmatprep.subr.bf16.mxu0 0
    %2261 = vmatpush2.bf16.msra.mxu0 %v2192
    %2262 = vmatprep.subr.bf16.mxu0 0
    %2263 = vmatpush2.bf16.msra.mxu0 %v2191
    %2264 = vmatprep.subr.bf16.mxu0 0
    %2265 = vmatpush2.bf16.msra.mxu0 %v2190
    %2266 = vmatprep.subr.bf16.mxu0 0
    %2267 = vmatpush2.bf16.msra.mxu0 %v2189
    %2268 = vmatprep.subr.bf16.mxu0 0
    %2269 = vmatpush2.bf16.msra.mxu0 %v2188
    %2270 = vmatprep.subr.bf16.mxu0 0
    %2271 = vmatpush2.bf16.msra.mxu0 %v2187
    %2272 = vmatprep.subr.bf16.mxu0 0
    %2273 = vmatpush2.bf16.msra.mxu0 %v2186
    %2274 = vmatprep.mubr.bf16.mxu0 %v1976
    %2275 = vmatmul.mubr.bf16.gmra.mxu0 %v1975
    %v2276 = vpop.f32.mrf.mxu0
    %v2277 = vadd.f32 %v2048, %v2276
    %v2278 = vpop.f32.mrf.mxu0
    %v2279 = vpop.f32.mrf.mxu0
    %v2280 = vpop.f32.mrf.mxu0
    %2281 = vdwg.mxu0
    %2282 = vmatprep.subr.bf16.mxu0 0
    %2283 = vmatpush1.bf16.msra.mxu0 %v2201
    %2284 = vmatprep.subr.bf16.mxu0 0
    %2285 = vmatpush1.bf16.msra.mxu0 %v2200
    %2286 = vmatprep.subr.bf16.mxu0 0
    %2287 = vmatpush1.bf16.msra.mxu0 %v2199
    %2288 = vmatprep.subr.bf16.mxu0 0
    %2289 = vmatpush1.bf16.msra.mxu0 %v2198
    %2290 = vmatprep.subr.bf16.mxu0 0
    %2291 = vmatpush1.bf16.msra.mxu0 %v2197
    %2292 = vmatprep.subr.bf16.mxu0 0
    %2293 = vmatpush1.bf16.msra.mxu0 %v2196
    %2294 = vmatprep.subr.bf16.mxu0 0
    %2295 = vmatpush1.bf16.msra.mxu0 %v2195
    %2296 = vmatprep.subr.bf16.mxu0 0
    %2297 = vmatpush1.bf16.msra.mxu0 %v2194
    %2298 = vmatprep.subr.bf16.mxu0 0
    %2299 = vmatpush2.bf16.msra.mxu0 %v2209
    %2300 = vmatprep.subr.bf16.mxu0 0
    %2301 = vmatpush2.bf16.msra.mxu0 %v2208
    %2302 = vmatprep.subr.bf16.mxu0 0
    %2303 = vmatpush2.bf16.msra.mxu0 %v2207
    %2304 = vmatprep.subr.bf16.mxu0 0
    %2305 = vmatpush2.bf16.msra.mxu0 %v2206
    %2306 = vmatprep.subr.bf16.mxu0 0
    %2307 = vmatpush2.bf16.msra.mxu0 %v2205
    %2308 = vmatprep.subr.bf16.mxu0 0
    %2309 = vmatpush2.bf16.msra.mxu0 %v2204
    %2310 = vmatprep.subr.bf16.mxu0 0
    %2311 = vmatpush2.bf16.msra.mxu0 %v2203
    %2312 = vmatprep.subr.bf16.mxu0 0
    %2313 = vmatpush2.bf16.msra.mxu0 %v2202
    %2314 = vmatprep.mubr.bf16.mxu0 %v1978
    %2315 = vmatmul.mubr.bf16.gmra.mxu0 %v1977
    %v2316 = vpop.f32.mrf.mxu0
    %v2317 = vadd.f32 %v2277, %v2316
    %v2318 = vpop.f32.mrf.mxu0
    %v2319 = vpop.f32.mrf.mxu0
    %v2320 = vpop.f32.mrf.mxu0
    %2321 = vdwg.mxu0
    %vm2322 = vcmask 1041408
    %v2323 = vsel %vm2322, %v2317, -inf
    %2324 = vmax.xlane.f32.xlu0 %v2323
    %v2325 = vpop.xlane.xlu0 %2324
    %v2326 = vsub.f32 %v2317, %v2325
    %v2327 = vmul.f32 %v2326, 1.442695
    %v2328 = vpow.pop %v2327
    %v2329 = vsel %vm2322, %v2328, 0.0
    %2330 = vadd.xlane.f32.xlu0 %v2329
    %v2331 = vpop.xlane.xlu0 %2330
    %v2332 = vlog2.pop %v2331
    %v2333 = vmul.f32 %v2332, 0.6931472
    %v2334 = vsub.f32 %v2326, %v2333
    %2335 = vst [vmem:[#allocation2] sm:$0x3] %v2334
    // Predicated region
    $region22: #{torch_model_forward.9} parent=1 // pred_check
      _
    $region23: #{torch_model_forward.9} parent=1 // pred_check_branch
      %2337 = sbr.rel (0) target = $region25
    $region24: #{torch_model_forward.9} parent=1 // pred_region
      %s2339 = ssub.s32 32, 32
      %2340 = vsyncadd [#allocation3], %s2339
      %s2342 = sshll.u32 [#allocation2], 4
      %s2343 = int_to_ptr.vmem [resolvable:$true] %s2342
      %2345 = dma.vmem_to_hbm [thread:$0]  %s2343, 32, %s5, [#allocation3]
    $region25: #{torch_model_forward.9} parent=1 // pred_fallthru
      _
    // Predicated region
    $region26: #{torch_model_forward.9} parent=1 // pred_check
      _
    $region27: #{torch_model_forward.9} parent=1 // pred_check_branch
      %2347 = sbr.rel (0) target = $region29
    $region28: #{torch_model_forward.9} parent=1 // pred_region
      %2348 = dma.done [#allocation3], 32
    $region29: #{torch_model_forward.9} parent=1 // pred_fallthru
      _
    %2349 = vsyncpa [#allocation3], 1

</llo_original>
